<compile_context>
chip_gen: v7x
topology: tpu7x:2x2x1
jax: 0.10.0
libtpu: 0.0.40
codegen_flags: <defaults>
</compile_context>

<pallas_src>
import functools
import math

import jax
import jax.numpy as jnp
from jax import lax
from jax.experimental import pallas as pl
from jax.experimental.pallas import tpu as pltpu


def _round_up(x, m):
    return ((x + m - 1) // m) * m


# ----------------------------- fused Pallas kernel ------------------------------


def _make_fused_kernel(num_layers, T, Bt, Hp, Dp0, unroll):
    """Builds the fused kernel for one padded batch tile (static shapes)."""

    def kernel(*refs):
        idx = 0
        x_ref = refs[idx]; idx += 1                      # (T, Bt, Dp0) f32
        layer_refs = []
        for _ in range(num_layers):
            layer_refs.append(tuple(refs[idx:idx + 4]))  # wih (Din,3Hp) bf16, whh (Hp,3Hp) bf16,
            idx += 4                                     # bih (1,3Hp) f32,   bhn (1,Hp) f32
        fc1_w_ref, fc1_b_ref, fc_w_ref, fc_b_ref = refs[idx:idx + 4]; idx += 4
        out_ref = refs[idx]; idx += 1                    # (Bt, Cp) f32
        gi_ref, seq_ref = refs[idx:idx + 2]              # (T,Bt,3Hp) f32, (T,Bt,Hp) bf16

        h_last = None
        for l, (wih_ref, whh_ref, bih_ref, bhn_ref) in enumerate(layer_refs):
            # ---- hoisted input projection: one big bf16 MXU matmul over all timesteps ----
            if l == 0:
                x_all = x_ref[...].astype(jnp.bfloat16).reshape(T * Bt, Dp0)
            else:
                x_all = seq_ref[...].reshape(T * Bt, Hp)          # already bf16
            gi_all = jnp.dot(x_all, wih_ref[...],
                             preferred_element_type=jnp.float32) + bih_ref[...]
            gi_ref[...] = gi_all.reshape(T, Bt, 3 * Hp)

            # invariant loads hoisted out of the recurrence
            whh = whh_ref[...]                                    # bf16 (Hp, 3Hp)
            bhn = bhn_ref[...]                                    # f32  (1, Hp)
            write_seq = (l != num_layers - 1)   # only interior layers need the full sequence

            def step(t, h_prev):
                gi_t = gi_ref[t]                                  # (Bt, 3Hp) f32
                gh = jnp.dot(h_prev.astype(jnp.bfloat16), whh,
                             preferred_element_type=jnp.float32)  # (Bt, 3Hp) f32
                # Gate slices are 128-lane aligned (Hp multiple of 128); gate math in f32.
                r = jax.nn.sigmoid(gi_t[:, 0:Hp] + gh[:, 0:Hp])
                z = jax.nn.sigmoid(gi_t[:, Hp:2 * Hp] + gh[:, Hp:2 * Hp])
                n = jnp.tanh(gi_t[:, 2 * Hp:3 * Hp] + r * (gh[:, 2 * Hp:3 * Hp] + bhn))
                h_new = (1.0 - z) * n + z * h_prev
                if write_seq:
                    seq_ref[t] = h_new.astype(jnp.bfloat16)
                return h_new

            h0 = jnp.zeros((Bt, Hp), jnp.float32)
            h_last = lax.fori_loop(0, T, step, h0, unroll=unroll)

        # ---- MLP head on the last hidden state of the top layer ----
        z1 = jnp.dot(h_last.astype(jnp.bfloat16), fc1_w_ref[...],
                     preferred_element_type=jnp.float32) + fc1_b_ref[...]
        z1 = jnp.maximum(z1, 0.0)
        out = jnp.dot(z1.astype(jnp.bfloat16), fc_w_ref[...],
                      preferred_element_type=jnp.float32) + fc_b_ref[...]
        out_ref[...] = out.astype(out_ref.dtype)

    return kernel


# ------------------------------ parameter packing -------------------------------


def prepare_params(params, input_size, hidden_size):
    """Pad / transpose / bias-fold parameters once (lane-aligned, gate-blocked, bf16 weights)."""
    H = hidden_size
    Hp = _round_up(H, 128)
    Dp0 = _round_up(input_size, 128)
    Fp = _round_up(64, 128)
    C = params["fc_w"].shape[0]
    Cp = _round_up(C, 128)

    def pad_gate_weight(w, din, dpad):
        # w: (3H, din) with gate blocks [r|z|n]; pad each gate block, transpose to (dpad, 3Hp).
        w3 = w.reshape(3, H, din)
        w3 = jnp.pad(w3, ((0, 0), (0, Hp - H), (0, dpad - din)))
        return jnp.transpose(w3.reshape(3 * Hp, dpad)).astype(jnp.bfloat16)

    layers = []
    for l, lyr in enumerate(params["gru_layers"]):
        din = input_size if l == 0 else H
        dpad = Dp0 if l == 0 else Hp
        wih_t = pad_gate_weight(lyr["w_ih"], din, dpad)     # (dpad, 3Hp) bf16
        whh_t = pad_gate_weight(lyr["w_hh"], H, Hp)         # (Hp, 3Hp)  bf16
        bi = lyr["b_ih"].reshape(3, H).astype(jnp.float32)
        bh = lyr["b_hh"].reshape(3, H).astype(jnp.float32)
        # Fold b_hh_r / b_hh_z into the hoisted input-projection bias; b_hh_n must stay
        # separate since PyTorch computes n = tanh(gi_n + r*(Whn h + b_hn)).
        b_comb = jnp.stack([bi[0] + bh[0], bi[1] + bh[1], bi[2]], axis=0)
        b_comb = jnp.pad(b_comb, ((0, 0), (0, Hp - H))).reshape(1, 3 * Hp)
        b_hn = jnp.pad(bh[2], (0, Hp - H)).reshape(1, Hp)
        layers.append((wih_t, whh_t, b_comb, b_hn))

    # NOTE: weights AND biases are zero-padded and h0 = 0, so padded hidden lanes / batch rows
    # stay exactly 0 through every layer (r=z=0.5, n=tanh(0)=0 => h stays 0). Do not change.
    fc1_w = jnp.pad(params["fc1_w"], ((0, Fp - 64), (0, Hp - H)))     # (Fp, Hp)
    fc1_b = jnp.pad(params["fc1_b"], (0, Fp - 64)).reshape(1, Fp).astype(jnp.float32)
    fc_w = jnp.pad(params["fc_w"], ((0, Cp - C), (0, Fp - 64)))       # (Cp, Fp)
    fc_b = jnp.pad(params["fc_b"], (0, Cp - C)).reshape(1, Cp).astype(jnp.float32)

    return {
        "layers": layers,
        "fc1_w_t": jnp.transpose(fc1_w).astype(jnp.bfloat16),   # (Hp, Fp)
        "fc1_b": fc1_b,                                          # (1, Fp)
        "fc_w_t": jnp.transpose(fc_w).astype(jnp.bfloat16),      # (Fp, Cp)
        "fc_b": fc_b,                                            # (1, Cp)
    }


# --------------------------------- forward --------------------------------------


@functools.partial(jax.jit, static_argnames=("batch_tile",))
def _gru_model_forward_padded(x, prepared, batch_tile=None):
    """x: (B, T, input_size) batch_first. Returns padded logits (Bp, Cp)."""
    B, T, Din = x.shape
    layers = prepared["layers"]
    num_layers = len(layers)
    Dp0 = layers[0][0].shape[0]
    Hp = layers[0][1].shape[0]
    Cp = prepared["fc_w_t"].shape[1]

    Bp = _round_up(B, 8)
    Bt = Bp if batch_tile is None else _round_up(min(batch_tile, Bp), 8)
    Bp = _round_up(Bp, Bt)
    n_tiles = Bp // Bt

    # time-major, zero-padded to sublane/lane-aligned shapes
    # TODO(synk): for large T*B*Din do this pad/transpose on the DMA path (index_map over an
    # unpadded batch-major input) instead of a separate XLA copy in HBM.
    x_tbd = jnp.transpose(x, (1, 0, 2)).astype(jnp.float32)
    x_pad = jnp.pad(x_tbd, ((0, 0), (0, Bp - B), (0, Dp0 - Din)))

    flat_args = [x_pad]
    in_specs = [pl.BlockSpec((T, Bt, Dp0), lambda b: (0, b, 0))]
    for (wih, whh, bih, bhn) in layers:
        for w in (wih, whh, bih, bhn):
            flat_args.append(w)
            in_specs.append(pl.BlockSpec(w.shape, lambda b: (0, 0)))
    for w in (prepared["fc1_w_t"], prepared["fc1_b"],
              prepared["fc_w_t"], prepared["fc_b"]):
        flat_args.append(w)
        in_specs.append(pl.BlockSpec(w.shape, lambda b: (0, 0)))

    scratch_shapes = [
        pltpu.VMEM((T, Bt, 3 * Hp), jnp.float32),   # hoisted input projections (f32: gate math)
        pltpu.VMEM((T, Bt, Hp), jnp.bfloat16),      # inter-layer sequence buffer (bf16 operand)
    ]

    # Scoped-VMEM limit sized from actual operands (double-buffered) + scratch, with headroom.
    def _nbytes(a):
        return math.prod(a.shape) * jnp.dtype(a.dtype).itemsize

    block_bytes = sum(_nbytes(a) for a in flat_args) + Bt * Cp * 4
    scratch_bytes = T * Bt * 3 * Hp * 4 + T * Bt * Hp * 2
    needed = 2 * block_bytes + scratch_bytes
    vmem_limit = int(min(max(2 * needed + (2 << 20), 16 << 20), 127 << 20))

    kernel = _make_fused_kernel(num_layers, T, Bt, Hp, Dp0, unroll=min(T, 8))
    return pl.pallas_call(
        kernel,
        grid=(n_tiles,),
        in_specs=in_specs,
        out_specs=pl.BlockSpec((Bt, Cp), lambda b: (b, 0)),
        out_shape=jax.ShapeDtypeStruct((Bp, Cp), jnp.float32),
        scratch_shapes=scratch_shapes,
        compiler_params=pltpu.CompilerParams(
            dimension_semantics=("parallel",),        # batch tiles split across TCs on v7x
            vmem_limit_bytes=vmem_limit),
    )(*flat_args)


def gru_model_forward(x, prepared, num_classes, batch_tile=None):
    """Equivalent of GRU.forward; returns (B, num_classes)."""
    out_full = _gru_model_forward_padded(x, prepared, batch_tile=batch_tile)
    return out_full[:x.shape[0], :num_classes]


# -------------------------- reference (plain JAX) --------------------------


def _ref_forward(x, params):
    B, T, _ = x.shape
    h_seq = jnp.transpose(x, (1, 0, 2))
    for layer in params["gru_layers"]:
        H = layer["w_hh"].shape[1]
        wih_t = layer["w_ih"].T
        whh_t = layer["w_hh"].T
        bih = layer["b_ih"]
        bhh = layer["b_hh"]
        h = jnp.zeros((B, H), jnp.float32)
        outs = []
        for t in range(T):
            gi = h_seq[t] @ wih_t + bih
            gh = h @ whh_t + bhh
            r = jax.nn.sigmoid(gi[:, :H] + gh[:, :H])
            z = jax.nn.sigmoid(gi[:, H:2 * H] + gh[:, H:2 * H])
            n = jnp.tanh(gi[:, 2 * H:] + r * gh[:, 2 * H:])
            h = (1.0 - z) * n + z * h
            outs.append(h)
        h_seq = jnp.stack(outs, axis=0)
    h_last = h_seq[-1]
    z = jnp.maximum(h_last @ params["fc1_w"].T + params["fc1_b"], 0.0)
    return z @ params["fc_w"].T + params["fc_b"]


# --------------------------------- init / main -------------------------------------


def _init_params(key, num_classes, input_size, hidden_size, num_layers):
    """Deterministic init mimicking PyTorch's uniform(-1/sqrt(fan), 1/sqrt(fan))."""
    params = {"gru_layers": []}
    k = key
    bound_h = 1.0 / jnp.sqrt(hidden_size)
    for layer in range(num_layers):
        d_in = input_size if layer == 0 else hidden_size
        k, k1, k2, k3, k4 = jax.random.split(k, 5)
        params["gru_layers"].append({
            "w_ih": jax.random.uniform(k1, (3 * hidden_size, d_in),
                                       jnp.float32, -bound_h, bound_h),
            "w_hh": jax.random.uniform(k2, (3 * hidden_size, hidden_size),
                                       jnp.float32, -bound_h, bound_h),
            "b_ih": jax.random.uniform(k3, (3 * hidden_size,),
                                       jnp.float32, -bound_h, bound_h),
            "b_hh": jax.random.uniform(k4, (3 * hidden_size,),
                                       jnp.float32, -bound_h, bound_h),
        })
    k, k1, k2, k3, k4 = jax.random.split(k, 5)
    b1 = 1.0 / jnp.sqrt(hidden_size)
    b2 = 1.0 / jnp.sqrt(64.0)
    params["fc1_w"] = jax.random.uniform(k1, (64, hidden_size), jnp.float32, -b1, b1)
    params["fc1_b"] = jax.random.uniform(k2, (64,), jnp.float32, -b1, b1)
    params["fc_w"] = jax.random.uniform(k3, (num_classes, 64), jnp.float32, -b2, b2)
    params["fc_b"] = jax.random.uniform(k4, (num_classes,), jnp.float32, -b2, b2)
    return params


if __name__ == "__main__":
    # Small shapes consistent with the module's forward.
    batch, seq_length, input_size = 2, 8, 4
    hidden_size, num_layers, num_classes = 32, 2, 5

    key = jax.random.PRNGKey(0)
    key, kx, kp = jax.random.split(key, 3)
    x = jax.random.normal(kx, (batch, seq_length, input_size), jnp.float32)
    params = _init_params(kp, num_classes, input_size, hidden_size, num_layers)

    # Pad / transpose / bias-fold weights once (not per forward call).
    prepared = prepare_params(params, input_size, hidden_size)

    out = gru_model_forward(x, prepared, num_classes)
    out = jax.block_until_ready(out)

    assert out.shape == (batch, num_classes), out.shape
    assert bool(jnp.all(jnp.isfinite(out)))

    # Sanity check against a plain-JAX f32 reference (loose tol: kernel uses bf16 MXU operands).
    ref = _ref_forward(x, params)
    assert bool(jnp.allclose(out, ref, atol=5e-2, rtol=5e-2)), (out, ref)

    print("KERNEL_OK")
</pallas_src>

<mosaic_0001>
module attributes {stable_mosaic.version = 11 : i64} {
  func.func @kernel(%arg0: i32, %arg1: memref<8x8x128xf32, #tpu.memory_space<vmem>>, %arg2: memref<128x384xbf16, #tpu.memory_space<vmem>>, %arg3: memref<128x384xbf16, #tpu.memory_space<vmem>>, %arg4: memref<1x384xf32, #tpu.memory_space<vmem>>, %arg5: memref<1x128xf32, #tpu.memory_space<vmem>>, %arg6: memref<128x384xbf16, #tpu.memory_space<vmem>>, %arg7: memref<128x384xbf16, #tpu.memory_space<vmem>>, %arg8: memref<1x384xf32, #tpu.memory_space<vmem>>, %arg9: memref<1x128xf32, #tpu.memory_space<vmem>>, %arg10: memref<128x128xbf16, #tpu.memory_space<vmem>>, %arg11: memref<1x128xf32, #tpu.memory_space<vmem>>, %arg12: memref<128x128xbf16, #tpu.memory_space<vmem>>, %arg13: memref<1x128xf32, #tpu.memory_space<vmem>>, %arg14: memref<8x128xf32, #tpu.memory_space<vmem>>, %arg15: memref<8x8x384xf32, #tpu.memory_space<vmem>>, %arg16: memref<8x8x128xbf16, #tpu.memory_space<vmem>>) attributes {dimension_semantics = [#tpu.dimension_semantics<parallel>], iteration_bounds = array<i64: 1>, scalar_prefetch = 0 : i64, scratch_operands = 2 : i64, tpu.core_type = #tpu.core_type<tc>, window_params = [{transform_indices = @transform_0, window_bounds = array<i64: 8, 8, 128>}, {pipeline_mode = #tpu.pipeline_mode<synchronous>, transform_indices = @transform_1, window_bounds = array<i64: 128, 384>}, {pipeline_mode = #tpu.pipeline_mode<synchronous>, transform_indices = @transform_2, window_bounds = array<i64: 128, 384>}, {pipeline_mode = #tpu.pipeline_mode<synchronous>, transform_indices = @transform_3, window_bounds = array<i64: 1, 384>}, {pipeline_mode = #tpu.pipeline_mode<synchronous>, transform_indices = @transform_4, window_bounds = array<i64: 1, 128>}, {pipeline_mode = #tpu.pipeline_mode<synchronous>, transform_indices = @transform_5, window_bounds = array<i64: 128, 384>}, {pipeline_mode = #tpu.pipeline_mode<synchronous>, transform_indices = @transform_6, window_bounds = array<i64: 128, 384>}, {pipeline_mode = #tpu.pipeline_mode<synchronous>, transform_indices = @transform_7, window_bounds = array<i64: 1, 384>}, {pipeline_mode = #tpu.pipeline_mode<synchronous>, transform_indices = @transform_8, window_bounds = array<i64: 1, 128>}, {pipeline_mode = #tpu.pipeline_mode<synchronous>, transform_indices = @transform_9, window_bounds = array<i64: 128, 128>}, {pipeline_mode = #tpu.pipeline_mode<synchronous>, transform_indices = @transform_10, window_bounds = array<i64: 1, 128>}, {pipeline_mode = #tpu.pipeline_mode<synchronous>, transform_indices = @transform_11, window_bounds = array<i64: 128, 128>}, {pipeline_mode = #tpu.pipeline_mode<synchronous>, transform_indices = @transform_12, window_bounds = array<i64: 1, 128>}, {transform_indices = @transform_13, window_bounds = array<i64: 8, 128>}]} {
    %c0 = arith.constant 0 : index
    %c0_0 = arith.constant 0 : index
    %c0_1 = arith.constant 0 : index
    %0 = vector.load %arg1[%c0, %c0_0, %c0_1] : memref<8x8x128xf32, #tpu.memory_space<vmem>>, vector<8x8x128xf32>
    %1 = arith.truncf %0 : vector<8x8x128xf32> to vector<8x8x128xbf16>
    %2 = vector.shape_cast %1 : vector<8x8x128xbf16> to vector<64x128xbf16>
    %c0_2 = arith.constant 0 : index
    %c0_3 = arith.constant 0 : index
    %3 = vector.load %arg2[%c0_2, %c0_3] : memref<128x384xbf16, #tpu.memory_space<vmem>>, vector<128x384xbf16>
    %cst = arith.constant dense<0.000000e+00> : vector<64x384xf32>
    %4 = tpu.matmul %2, %3, %cst {dimension_numbers = #tpu.dot_dimension_numbers<[1], [0], [0], [1], [0, 0, 1, 1], [], []>} : vector<64x128xbf16>, vector<128x384xbf16>, vector<64x384xf32> -> vector<64x384xf32>
    %c0_4 = arith.constant 0 : index
    %c0_5 = arith.constant 0 : index
    %5 = vector.load %arg4[%c0_4, %c0_5] : memref<1x384xf32, #tpu.memory_space<vmem>>, vector<1x384xf32>
    %6 = vector.broadcast %5 : vector<1x384xf32> to vector<64x384xf32>
    %7 = arith.addf %4, %6 : vector<64x384xf32>
    %8 = vector.shape_cast %7 : vector<64x384xf32> to vector<8x8x384xf32>
    %c0_6 = arith.constant 0 : index
    %c0_7 = arith.constant 0 : index
    %c0_8 = arith.constant 0 : index
    %9 = vector.load %arg15[%c0_6, %c0_7, %c0_8] : memref<8x8x384xf32, #tpu.memory_space<vmem>>, vector<8x8x384xf32>
    tpu.vector_store %arg15[%c0_6, %c0_7, %c0_8], %8 {strides = array<i32>} : memref<8x8x384xf32, #tpu.memory_space<vmem>>, vector<8x8x384xf32>,
    %c0_9 = arith.constant 0 : index
    %c0_10 = arith.constant 0 : index
    %10 = vector.load %arg3[%c0_9, %c0_10] : memref<128x384xbf16, #tpu.memory_space<vmem>>, vector<128x384xbf16>
    %c0_11 = arith.constant 0 : index
    %c0_12 = arith.constant 0 : index
    %11 = vector.load %arg5[%c0_11, %c0_12] : memref<1x128xf32, #tpu.memory_space<vmem>>, vector<1x128xf32>
    %cst_13 = arith.constant 0.000000e+00 : f32
    %12 = vector.broadcast %cst_13 : f32 to vector<8x128xf32>
    %c0_i32 = arith.constant 0 : i32
    %13 = arith.index_cast %c0_i32 : i32 to index
    %c0_14 = arith.constant 0 : index
    %c0_15 = arith.constant 0 : index
    %14 = vector.load %arg15[%13, %c0_14, %c0_15] : memref<8x8x384xf32, #tpu.memory_space<vmem>>, vector<1x8x384xf32>
    %15 = vector.shape_cast %14 : vector<1x8x384xf32> to vector<8x384xf32>
    %16 = arith.truncf %12 : vector<8x128xf32> to vector<8x128xbf16>
    %cst_16 = arith.constant dense<0.000000e+00> : vector<8x384xf32>
    %17 = tpu.matmul %16, %10, %cst_16 {dimension_numbers = #tpu.dot_dimension_numbers<[1], [0], [0], [1], [0, 0, 1, 1], [], []>} : vector<8x128xbf16>, vector<128x384xbf16>, vector<8x384xf32> -> vector<8x384xf32>
    %18 = vector.extract_strided_slice %15 {offsets = [0, 0], sizes = [8, 128], strides = [1, 1]} : vector<8x384xf32> to vector<8x128xf32>
    %19 = vector.extract_strided_slice %17 {offsets = [0, 0], sizes = [8, 128], strides = [1, 1]} : vector<8x384xf32> to vector<8x128xf32>
    %20 = arith.addf %18, %19 : vector<8x128xf32>
    %21 = arith.negf %20 : vector<8x128xf32>
    %22 = math.exp %21 : vector<8x128xf32>
    %cst_17 = arith.constant 1.000000e+00 : f32
    %23 = vector.broadcast %cst_17 : f32 to vector<8x128xf32>
    %24 = arith.addf %23, %22 : vector<8x128xf32>
    %25 = arith.divf %23, %24 : vector<8x128xf32>
    %26 = vector.extract_strided_slice %15 {offsets = [0, 128], sizes = [8, 128], strides = [1, 1]} : vector<8x384xf32> to vector<8x128xf32>
    %27 = vector.extract_strided_slice %17 {offsets = [0, 128], sizes = [8, 128], strides = [1, 1]} : vector<8x384xf32> to vector<8x128xf32>
    %28 = arith.addf %26, %27 : vector<8x128xf32>
    %29 = arith.negf %28 : vector<8x128xf32>
    %30 = math.exp %29 : vector<8x128xf32>
    %cst_18 = arith.constant 1.000000e+00 : f32
    %31 = vector.broadcast %cst_18 : f32 to vector<8x128xf32>
    %32 = arith.addf %31, %30 : vector<8x128xf32>
    %33 = arith.divf %31, %32 : vector<8x128xf32>
    %34 = vector.extract_strided_slice %15 {offsets = [0, 256], sizes = [8, 128], strides = [1, 1]} : vector<8x384xf32> to vector<8x128xf32>
    %35 = vector.extract_strided_slice %17 {offsets = [0, 256], sizes = [8, 128], strides = [1, 1]} : vector<8x384xf32> to vector<8x128xf32>
    %36 = vector.broadcast %11 : vector<1x128xf32> to vector<8x128xf32>
    %37 = arith.addf %35, %36 : vector<8x128xf32>
    %38 = arith.mulf %25, %37 : vector<8x128xf32>
    %39 = arith.addf %34, %38 : vector<8x128xf32>
    %40 = math.tanh %39 : vector<8x128xf32>
    %cst_19 = arith.constant 1.000000e+00 : f32
    %41 = vector.broadcast %cst_19 : f32 to vector<8x128xf32>
    %42 = arith.subf %41, %33 : vector<8x128xf32>
    %43 = arith.mulf %42, %40 : vector<8x128xf32>
    %44 = arith.mulf %33, %12 : vector<8x128xf32>
    %45 = arith.addf %43, %44 : vector<8x128xf32>
    %46 = arith.truncf %45 : vector<8x128xf32> to vector<8x128xbf16>
    %47 = arith.index_cast %c0_i32 : i32 to index
    %c0_20 = arith.constant 0 : index
    %c0_21 = arith.constant 0 : index
    %48 = vector.load %arg16[%47, %c0_20, %c0_21] : memref<8x8x128xbf16, #tpu.memory_space<vmem>>, vector<1x8x128xbf16>
    %49 = vector.shape_cast %48 : vector<1x8x128xbf16> to vector<8x128xbf16>
    %50 = vector.shape_cast %46 : vector<8x128xbf16> to vector<1x8x128xbf16>
    tpu.vector_store %arg16[%47, %c0_20, %c0_21], %50 {strides = array<i32>} : memref<8x8x128xbf16, #tpu.memory_space<vmem>>, vector<1x8x128xbf16>,
    %c1_i32 = arith.constant 1 : i32
    %51 = arith.index_cast %c1_i32 : i32 to index
    %c0_22 = arith.constant 0 : index
    %c0_23 = arith.constant 0 : index
    %52 = vector.load %arg15[%51, %c0_22, %c0_23] : memref<8x8x384xf32, #tpu.memory_space<vmem>>, vector<1x8x384xf32>
    %53 = vector.shape_cast %52 : vector<1x8x384xf32> to vector<8x384xf32>
    %54 = arith.truncf %45 : vector<8x128xf32> to vector<8x128xbf16>
    %cst_24 = arith.constant dense<0.000000e+00> : vector<8x384xf32>
    %55 = tpu.matmul %54, %10, %cst_24 {dimension_numbers = #tpu.dot_dimension_numbers<[1], [0], [0], [1], [0, 0, 1, 1], [], []>} : vector<8x128xbf16>, vector<128x384xbf16>, vector<8x384xf32> -> vector<8x384xf32>
    %56 = vector.extract_strided_slice %53 {offsets = [0, 0], sizes = [8, 128], strides = [1, 1]} : vector<8x384xf32> to vector<8x128xf32>
    %57 = vector.extract_strided_slice %55 {offsets = [0, 0], sizes = [8, 128], strides = [1, 1]} : vector<8x384xf32> to vector<8x128xf32>
    %58 = arith.addf %56, %57 : vector<8x128xf32>
    %59 = arith.negf %58 : vector<8x128xf32>
    %60 = math.exp %59 : vector<8x128xf32>
    %cst_25 = arith.constant 1.000000e+00 : f32
    %61 = vector.broadcast %cst_25 : f32 to vector<8x128xf32>
    %62 = arith.addf %61, %60 : vector<8x128xf32>
    %63 = arith.divf %61, %62 : vector<8x128xf32>
    %64 = vector.extract_strided_slice %53 {offsets = [0, 128], sizes = [8, 128], strides = [1, 1]} : vector<8x384xf32> to vector<8x128xf32>
    %65 = vector.extract_strided_slice %55 {offsets = [0, 128], sizes = [8, 128], strides = [1, 1]} : vector<8x384xf32> to vector<8x128xf32>
    %66 = arith.addf %64, %65 : vector<8x128xf32>
    %67 = arith.negf %66 : vector<8x128xf32>
    %68 = math.exp %67 : vector<8x128xf32>
    %cst_26 = arith.constant 1.000000e+00 : f32
    %69 = vector.broadcast %cst_26 : f32 to vector<8x128xf32>
    %70 = arith.addf %69, %68 : vector<8x128xf32>
    %71 = arith.divf %69, %70 : vector<8x128xf32>
    %72 = vector.extract_strided_slice %53 {offsets = [0, 256], sizes = [8, 128], strides = [1, 1]} : vector<8x384xf32> to vector<8x128xf32>
    %73 = vector.extract_strided_slice %55 {offsets = [0, 256], sizes = [8, 128], strides = [1, 1]} : vector<8x384xf32> to vector<8x128xf32>
    %74 = vector.broadcast %11 : vector<1x128xf32> to vector<8x128xf32>
    %75 = arith.addf %73, %74 : vector<8x128xf32>
    %76 = arith.mulf %63, %75 : vector<8x128xf32>
    %77 = arith.addf %72, %76 : vector<8x128xf32>
    %78 = math.tanh %77 : vector<8x128xf32>
    %cst_27 = arith.constant 1.000000e+00 : f32
    %79 = vector.broadcast %cst_27 : f32 to vector<8x128xf32>
    %80 = arith.subf %79, %71 : vector<8x128xf32>
    %81 = arith.mulf %80, %78 : vector<8x128xf32>
    %82 = arith.mulf %71, %45 : vector<8x128xf32>
    %83 = arith.addf %81, %82 : vector<8x128xf32>
    %84 = arith.truncf %83 : vector<8x128xf32> to vector<8x128xbf16>
    %85 = arith.index_cast %c1_i32 : i32 to index
    %c0_28 = arith.constant 0 : index
    %c0_29 = arith.constant 0 : index
    %86 = vector.load %arg16[%85, %c0_28, %c0_29] : memref<8x8x128xbf16, #tpu.memory_space<vmem>>, vector<1x8x128xbf16>
    %87 = vector.shape_cast %86 : vector<1x8x128xbf16> to vector<8x128xbf16>
    %88 = vector.shape_cast %84 : vector<8x128xbf16> to vector<1x8x128xbf16>
    tpu.vector_store %arg16[%85, %c0_28, %c0_29], %88 {strides = array<i32>} : memref<8x8x128xbf16, #tpu.memory_space<vmem>>, vector<1x8x128xbf16>,
    %c2_i32 = arith.constant 2 : i32
    %89 = arith.index_cast %c2_i32 : i32 to index
    %c0_30 = arith.constant 0 : index
    %c0_31 = arith.constant 0 : index
    %90 = vector.load %arg15[%89, %c0_30, %c0_31] : memref<8x8x384xf32, #tpu.memory_space<vmem>>, vector<1x8x384xf32>
    %91 = vector.shape_cast %90 : vector<1x8x384xf32> to vector<8x384xf32>
    %92 = arith.truncf %83 : vector<8x128xf32> to vector<8x128xbf16>
    %cst_32 = arith.constant dense<0.000000e+00> : vector<8x384xf32>
    %93 = tpu.matmul %92, %10, %cst_32 {dimension_numbers = #tpu.dot_dimension_numbers<[1], [0], [0], [1], [0, 0, 1, 1], [], []>} : vector<8x128xbf16>, vector<128x384xbf16>, vector<8x384xf32> -> vector<8x384xf32>
    %94 = vector.extract_strided_slice %91 {offsets = [0, 0], sizes = [8, 128], strides = [1, 1]} : vector<8x384xf32> to vector<8x128xf32>
    %95 = vector.extract_strided_slice %93 {offsets = [0, 0], sizes = [8, 128], strides = [1, 1]} : vector<8x384xf32> to vector<8x128xf32>
    %96 = arith.addf %94, %95 : vector<8x128xf32>
    %97 = arith.negf %96 : vector<8x128xf32>
    %98 = math.exp %97 : vector<8x128xf32>
    %cst_33 = arith.constant 1.000000e+00 : f32
    %99 = vector.broadcast %cst_33 : f32 to vector<8x128xf32>
    %100 = arith.addf %99, %98 : vector<8x128xf32>
    %101 = arith.divf %99, %100 : vector<8x128xf32>
    %102 = vector.extract_strided_slice %91 {offsets = [0, 128], sizes = [8, 128], strides = [1, 1]} : vector<8x384xf32> to vector<8x128xf32>
    %103 = vector.extract_strided_slice %93 {offsets = [0, 128], sizes = [8, 128], strides = [1, 1]} : vector<8x384xf32> to vector<8x128xf32>
    %104 = arith.addf %102, %103 : vector<8x128xf32>
    %105 = arith.negf %104 : vector<8x128xf32>
    %106 = math.exp %105 : vector<8x128xf32>
    %cst_34 = arith.constant 1.000000e+00 : f32
    %107 = vector.broadcast %cst_34 : f32 to vector<8x128xf32>
    %108 = arith.addf %107, %106 : vector<8x128xf32>
    %109 = arith.divf %107, %108 : vector<8x128xf32>
    %110 = vector.extract_strided_slice %91 {offsets = [0, 256], sizes = [8, 128], strides = [1, 1]} : vector<8x384xf32> to vector<8x128xf32>
    %111 = vector.extract_strided_slice %93 {offsets = [0, 256], sizes = [8, 128], strides = [1, 1]} : vector<8x384xf32> to vector<8x128xf32>
    %112 = vector.broadcast %11 : vector<1x128xf32> to vector<8x128xf32>
    %113 = arith.addf %111, %112 : vector<8x128xf32>
    %114 = arith.mulf %101, %113 : vector<8x128xf32>
    %115 = arith.addf %110, %114 : vector<8x128xf32>
    %116 = math.tanh %115 : vector<8x128xf32>
    %cst_35 = arith.constant 1.000000e+00 : f32
    %117 = vector.broadcast %cst_35 : f32 to vector<8x128xf32>
    %118 = arith.subf %117, %109 : vector<8x128xf32>
    %119 = arith.mulf %118, %116 : vector<8x128xf32>
    %120 = arith.mulf %109, %83 : vector<8x128xf32>
    %121 = arith.addf %119, %120 : vector<8x128xf32>
    %122 = arith.truncf %121 : vector<8x128xf32> to vector<8x128xbf16>
    %123 = arith.index_cast %c2_i32 : i32 to index
    %c0_36 = arith.constant 0 : index
    %c0_37 = arith.constant 0 : index
    %124 = vector.load %arg16[%123, %c0_36, %c0_37] : memref<8x8x128xbf16, #tpu.memory_space<vmem>>, vector<1x8x128xbf16>
    %125 = vector.shape_cast %124 : vector<1x8x128xbf16> to vector<8x128xbf16>
    %126 = vector.shape_cast %122 : vector<8x128xbf16> to vector<1x8x128xbf16>
    tpu.vector_store %arg16[%123, %c0_36, %c0_37], %126 {strides = array<i32>} : memref<8x8x128xbf16, #tpu.memory_space<vmem>>, vector<1x8x128xbf16>,
    %c3_i32 = arith.constant 3 : i32
    %127 = arith.index_cast %c3_i32 : i32 to index
    %c0_38 = arith.constant 0 : index
    %c0_39 = arith.constant 0 : index
    %128 = vector.load %arg15[%127, %c0_38, %c0_39] : memref<8x8x384xf32, #tpu.memory_space<vmem>>, vector<1x8x384xf32>
    %129 = vector.shape_cast %128 : vector<1x8x384xf32> to vector<8x384xf32>
    %130 = arith.truncf %121 : vector<8x128xf32> to vector<8x128xbf16>
    %cst_40 = arith.constant dense<0.000000e+00> : vector<8x384xf32>
    %131 = tpu.matmul %130, %10, %cst_40 {dimension_numbers = #tpu.dot_dimension_numbers<[1], [0], [0], [1], [0, 0, 1, 1], [], []>} : vector<8x128xbf16>, vector<128x384xbf16>, vector<8x384xf32> -> vector<8x384xf32>
    %132 = vector.extract_strided_slice %129 {offsets = [0, 0], sizes = [8, 128], strides = [1, 1]} : vector<8x384xf32> to vector<8x128xf32>
    %133 = vector.extract_strided_slice %131 {offsets = [0, 0], sizes = [8, 128], strides = [1, 1]} : vector<8x384xf32> to vector<8x128xf32>
    %134 = arith.addf %132, %133 : vector<8x128xf32>
    %135 = arith.negf %134 : vector<8x128xf32>
    %136 = math.exp %135 : vector<8x128xf32>
    %cst_41 = arith.constant 1.000000e+00 : f32
    %137 = vector.broadcast %cst_41 : f32 to vector<8x128xf32>
    %138 = arith.addf %137, %136 : vector<8x128xf32>
    %139 = arith.divf %137, %138 : vector<8x128xf32>
    %140 = vector.extract_strided_slice %129 {offsets = [0, 128], sizes = [8, 128], strides = [1, 1]} : vector<8x384xf32> to vector<8x128xf32>
    %141 = vector.extract_strided_slice %131 {offsets = [0, 128], sizes = [8, 128], strides = [1, 1]} : vector<8x384xf32> to vector<8x128xf32>
    %142 = arith.addf %140, %141 : vector<8x128xf32>
    %143 = arith.negf %142 : vector<8x128xf32>
    %144 = math.exp %143 : vector<8x128xf32>
    %cst_42 = arith.constant 1.000000e+00 : f32
    %145 = vector.broadcast %cst_42 : f32 to vector<8x128xf32>
    %146 = arith.addf %145, %144 : vector<8x128xf32>
    %147 = arith.divf %145, %146 : vector<8x128xf32>
    %148 = vector.extract_strided_slice %129 {offsets = [0, 256], sizes = [8, 128], strides = [1, 1]} : vector<8x384xf32> to vector<8x128xf32>
    %149 = vector.extract_strided_slice %131 {offsets = [0, 256], sizes = [8, 128], strides = [1, 1]} : vector<8x384xf32> to vector<8x128xf32>
    %150 = vector.broadcast %11 : vector<1x128xf32> to vector<8x128xf32>
    %151 = arith.addf %149, %150 : vector<8x128xf32>
    %152 = arith.mulf %139, %151 : vector<8x128xf32>
    %153 = arith.addf %148, %152 : vector<8x128xf32>
    %154 = math.tanh %153 : vector<8x128xf32>
    %cst_43 = arith.constant 1.000000e+00 : f32
    %155 = vector.broadcast %cst_43 : f32 to vector<8x128xf32>
    %156 = arith.subf %155, %147 : vector<8x128xf32>
    %157 = arith.mulf %156, %154 : vector<8x128xf32>
    %158 = arith.mulf %147, %121 : vector<8x128xf32>
    %159 = arith.addf %157, %158 : vector<8x128xf32>
    %160 = arith.truncf %159 : vector<8x128xf32> to vector<8x128xbf16>
    %161 = arith.index_cast %c3_i32 : i32 to index
    %c0_44 = arith.constant 0 : index
    %c0_45 = arith.constant 0 : index
    %162 = vector.load %arg16[%161, %c0_44, %c0_45] : memref<8x8x128xbf16, #tpu.memory_space<vmem>>, vector<1x8x128xbf16>
    %163 = vector.shape_cast %162 : vector<1x8x128xbf16> to vector<8x128xbf16>
    %164 = vector.shape_cast %160 : vector<8x128xbf16> to vector<1x8x128xbf16>
    tpu.vector_store %arg16[%161, %c0_44, %c0_45], %164 {strides = array<i32>} : memref<8x8x128xbf16, #tpu.memory_space<vmem>>, vector<1x8x128xbf16>,
    %c4_i32 = arith.constant 4 : i32
    %165 = arith.index_cast %c4_i32 : i32 to index
    %c0_46 = arith.constant 0 : index
    %c0_47 = arith.constant 0 : index
    %166 = vector.load %arg15[%165, %c0_46, %c0_47] : memref<8x8x384xf32, #tpu.memory_space<vmem>>, vector<1x8x384xf32>
    %167 = vector.shape_cast %166 : vector<1x8x384xf32> to vector<8x384xf32>
    %168 = arith.truncf %159 : vector<8x128xf32> to vector<8x128xbf16>
    %cst_48 = arith.constant dense<0.000000e+00> : vector<8x384xf32>
    %169 = tpu.matmul %168, %10, %cst_48 {dimension_numbers = #tpu.dot_dimension_numbers<[1], [0], [0], [1], [0, 0, 1, 1], [], []>} : vector<8x128xbf16>, vector<128x384xbf16>, vector<8x384xf32> -> vector<8x384xf32>
    %170 = vector.extract_strided_slice %167 {offsets = [0, 0], sizes = [8, 128], strides = [1, 1]} : vector<8x384xf32> to vector<8x128xf32>
    %171 = vector.extract_strided_slice %169 {offsets = [0, 0], sizes = [8, 128], strides = [1, 1]} : vector<8x384xf32> to vector<8x128xf32>
    %172 = arith.addf %170, %171 : vector<8x128xf32>
    %173 = arith.negf %172 : vector<8x128xf32>
    %174 = math.exp %173 : vector<8x128xf32>
    %cst_49 = arith.constant 1.000000e+00 : f32
    %175 = vector.broadcast %cst_49 : f32 to vector<8x128xf32>
    %176 = arith.addf %175, %174 : vector<8x128xf32>
    %177 = arith.divf %175, %176 : vector<8x128xf32>
    %178 = vector.extract_strided_slice %167 {offsets = [0, 128], sizes = [8, 128], strides = [1, 1]} : vector<8x384xf32> to vector<8x128xf32>
    %179 = vector.extract_strided_slice %169 {offsets = [0, 128], sizes = [8, 128], strides = [1, 1]} : vector<8x384xf32> to vector<8x128xf32>
    %180 = arith.addf %178, %179 : vector<8x128xf32>
    %181 = arith.negf %180 : vector<8x128xf32>
    %182 = math.exp %181 : vector<8x128xf32>
    %cst_50 = arith.constant 1.000000e+00 : f32
    %183 = vector.broadcast %cst_50 : f32 to vector<8x128xf32>
    %184 = arith.addf %183, %182 : vector<8x128xf32>
    %185 = arith.divf %183, %184 : vector<8x128xf32>
    %186 = vector.extract_strided_slice %167 {offsets = [0, 256], sizes = [8, 128], strides = [1, 1]} : vector<8x384xf32> to vector<8x128xf32>
    %187 = vector.extract_strided_slice %169 {offsets = [0, 256], sizes = [8, 128], strides = [1, 1]} : vector<8x384xf32> to vector<8x128xf32>
    %188 = vector.broadcast %11 : vector<1x128xf32> to vector<8x128xf32>
    %189 = arith.addf %187, %188 : vector<8x128xf32>
    %190 = arith.mulf %177, %189 : vector<8x128xf32>
    %191 = arith.addf %186, %190 : vector<8x128xf32>
    %192 = math.tanh %191 : vector<8x128xf32>
    %cst_51 = arith.constant 1.000000e+00 : f32
    %193 = vector.broadcast %cst_51 : f32 to vector<8x128xf32>
    %194 = arith.subf %193, %185 : vector<8x128xf32>
    %195 = arith.mulf %194, %192 : vector<8x128xf32>
    %196 = arith.mulf %185, %159 : vector<8x128xf32>
    %197 = arith.addf %195, %196 : vector<8x128xf32>
    %198 = arith.truncf %197 : vector<8x128xf32> to vector<8x128xbf16>
    %199 = arith.index_cast %c4_i32 : i32 to index
    %c0_52 = arith.constant 0 : index
    %c0_53 = arith.constant 0 : index
    %200 = vector.load %arg16[%199, %c0_52, %c0_53] : memref<8x8x128xbf16, #tpu.memory_space<vmem>>, vector<1x8x128xbf16>
    %201 = vector.shape_cast %200 : vector<1x8x128xbf16> to vector<8x128xbf16>
    %202 = vector.shape_cast %198 : vector<8x128xbf16> to vector<1x8x128xbf16>
    tpu.vector_store %arg16[%199, %c0_52, %c0_53], %202 {strides = array<i32>} : memref<8x8x128xbf16, #tpu.memory_space<vmem>>, vector<1x8x128xbf16>,
    %c5_i32 = arith.constant 5 : i32
    %203 = arith.index_cast %c5_i32 : i32 to index
    %c0_54 = arith.constant 0 : index
    %c0_55 = arith.constant 0 : index
    %204 = vector.load %arg15[%203, %c0_54, %c0_55] : memref<8x8x384xf32, #tpu.memory_space<vmem>>, vector<1x8x384xf32>
    %205 = vector.shape_cast %204 : vector<1x8x384xf32> to vector<8x384xf32>
    %206 = arith.truncf %197 : vector<8x128xf32> to vector<8x128xbf16>
    %cst_56 = arith.constant dense<0.000000e+00> : vector<8x384xf32>
    %207 = tpu.matmul %206, %10, %cst_56 {dimension_numbers = #tpu.dot_dimension_numbers<[1], [0], [0], [1], [0, 0, 1, 1], [], []>} : vector<8x128xbf16>, vector<128x384xbf16>, vector<8x384xf32> -> vector<8x384xf32>
    %208 = vector.extract_strided_slice %205 {offsets = [0, 0], sizes = [8, 128], strides = [1, 1]} : vector<8x384xf32> to vector<8x128xf32>
    %209 = vector.extract_strided_slice %207 {offsets = [0, 0], sizes = [8, 128], strides = [1, 1]} : vector<8x384xf32> to vector<8x128xf32>
    %210 = arith.addf %208, %209 : vector<8x128xf32>
    %211 = arith.negf %210 : vector<8x128xf32>
    %212 = math.exp %211 : vector<8x128xf32>
    %cst_57 = arith.constant 1.000000e+00 : f32
    %213 = vector.broadcast %cst_57 : f32 to vector<8x128xf32>
    %214 = arith.addf %213, %212 : vector<8x128xf32>
    %215 = arith.divf %213, %214 : vector<8x128xf32>
    %216 = vector.extract_strided_slice %205 {offsets = [0, 128], sizes = [8, 128], strides = [1, 1]} : vector<8x384xf32> to vector<8x128xf32>
    %217 = vector.extract_strided_slice %207 {offsets = [0, 128], sizes = [8, 128], strides = [1, 1]} : vector<8x384xf32> to vector<8x128xf32>
    %218 = arith.addf %216, %217 : vector<8x128xf32>
    %219 = arith.negf %218 : vector<8x128xf32>
    %220 = math.exp %219 : vector<8x128xf32>
    %cst_58 = arith.constant 1.000000e+00 : f32
    %221 = vector.broadcast %cst_58 : f32 to vector<8x128xf32>
    %222 = arith.addf %221, %220 : vector<8x128xf32>
    %223 = arith.divf %221, %222 : vector<8x128xf32>
    %224 = vector.extract_strided_slice %205 {offsets = [0, 256], sizes = [8, 128], strides = [1, 1]} : vector<8x384xf32> to vector<8x128xf32>
    %225 = vector.extract_strided_slice %207 {offsets = [0, 256], sizes = [8, 128], strides = [1, 1]} : vector<8x384xf32> to vector<8x128xf32>
    %226 = vector.broadcast %11 : vector<1x128xf32> to vector<8x128xf32>
    %227 = arith.addf %225, %226 : vector<8x128xf32>
    %228 = arith.mulf %215, %227 : vector<8x128xf32>
    %229 = arith.addf %224, %228 : vector<8x128xf32>
    %230 = math.tanh %229 : vector<8x128xf32>
    %cst_59 = arith.constant 1.000000e+00 : f32
    %231 = vector.broadcast %cst_59 : f32 to vector<8x128xf32>
    %232 = arith.subf %231, %223 : vector<8x128xf32>
    %233 = arith.mulf %232, %230 : vector<8x128xf32>
    %234 = arith.mulf %223, %197 : vector<8x128xf32>
    %235 = arith.addf %233, %234 : vector<8x128xf32>
    %236 = arith.truncf %235 : vector<8x128xf32> to vector<8x128xbf16>
    %237 = arith.index_cast %c5_i32 : i32 to index
    %c0_60 = arith.constant 0 : index
    %c0_61 = arith.constant 0 : index
    %238 = vector.load %arg16[%237, %c0_60, %c0_61] : memref<8x8x128xbf16, #tpu.memory_space<vmem>>, vector<1x8x128xbf16>
    %239 = vector.shape_cast %238 : vector<1x8x128xbf16> to vector<8x128xbf16>
    %240 = vector.shape_cast %236 : vector<8x128xbf16> to vector<1x8x128xbf16>
    tpu.vector_store %arg16[%237, %c0_60, %c0_61], %240 {strides = array<i32>} : memref<8x8x128xbf16, #tpu.memory_space<vmem>>, vector<1x8x128xbf16>,
    %c6_i32 = arith.constant 6 : i32
    %241 = arith.index_cast %c6_i32 : i32 to index
    %c0_62 = arith.constant 0 : index
    %c0_63 = arith.constant 0 : index
    %242 = vector.load %arg15[%241, %c0_62, %c0_63] : memref<8x8x384xf32, #tpu.memory_space<vmem>>, vector<1x8x384xf32>
    %243 = vector.shape_cast %242 : vector<1x8x384xf32> to vector<8x384xf32>
    %244 = arith.truncf %235 : vector<8x128xf32> to vector<8x128xbf16>
    %cst_64 = arith.constant dense<0.000000e+00> : vector<8x384xf32>
    %245 = tpu.matmul %244, %10, %cst_64 {dimension_numbers = #tpu.dot_dimension_numbers<[1], [0], [0], [1], [0, 0, 1, 1], [], []>} : vector<8x128xbf16>, vector<128x384xbf16>, vector<8x384xf32> -> vector<8x384xf32>
    %246 = vector.extract_strided_slice %243 {offsets = [0, 0], sizes = [8, 128], strides = [1, 1]} : vector<8x384xf32> to vector<8x128xf32>
    %247 = vector.extract_strided_slice %245 {offsets = [0, 0], sizes = [8, 128], strides = [1, 1]} : vector<8x384xf32> to vector<8x128xf32>
    %248 = arith.addf %246, %247 : vector<8x128xf32>
    %249 = arith.negf %248 : vector<8x128xf32>
    %250 = math.exp %249 : vector<8x128xf32>
    %cst_65 = arith.constant 1.000000e+00 : f32
    %251 = vector.broadcast %cst_65 : f32 to vector<8x128xf32>
    %252 = arith.addf %251, %250 : vector<8x128xf32>
    %253 = arith.divf %251, %252 : vector<8x128xf32>
    %254 = vector.extract_strided_slice %243 {offsets = [0, 128], sizes = [8, 128], strides = [1, 1]} : vector<8x384xf32> to vector<8x128xf32>
    %255 = vector.extract_strided_slice %245 {offsets = [0, 128], sizes = [8, 128], strides = [1, 1]} : vector<8x384xf32> to vector<8x128xf32>
    %256 = arith.addf %254, %255 : vector<8x128xf32>
    %257 = arith.negf %256 : vector<8x128xf32>
    %258 = math.exp %257 : vector<8x128xf32>
    %cst_66 = arith.constant 1.000000e+00 : f32
    %259 = vector.broadcast %cst_66 : f32 to vector<8x128xf32>
    %260 = arith.addf %259, %258 : vector<8x128xf32>
    %261 = arith.divf %259, %260 : vector<8x128xf32>
    %262 = vector.extract_strided_slice %243 {offsets = [0, 256], sizes = [8, 128], strides = [1, 1]} : vector<8x384xf32> to vector<8x128xf32>
    %263 = vector.extract_strided_slice %245 {offsets = [0, 256], sizes = [8, 128], strides = [1, 1]} : vector<8x384xf32> to vector<8x128xf32>
    %264 = vector.broadcast %11 : vector<1x128xf32> to vector<8x128xf32>
    %265 = arith.addf %263, %264 : vector<8x128xf32>
    %266 = arith.mulf %253, %265 : vector<8x128xf32>
    %267 = arith.addf %262, %266 : vector<8x128xf32>
    %268 = math.tanh %267 : vector<8x128xf32>
    %cst_67 = arith.constant 1.000000e+00 : f32
    %269 = vector.broadcast %cst_67 : f32 to vector<8x128xf32>
    %270 = arith.subf %269, %261 : vector<8x128xf32>
    %271 = arith.mulf %270, %268 : vector<8x128xf32>
    %272 = arith.mulf %261, %235 : vector<8x128xf32>
    %273 = arith.addf %271, %272 : vector<8x128xf32>
    %274 = arith.truncf %273 : vector<8x128xf32> to vector<8x128xbf16>
    %275 = arith.index_cast %c6_i32 : i32 to index
    %c0_68 = arith.constant 0 : index
    %c0_69 = arith.constant 0 : index
    %276 = vector.load %arg16[%275, %c0_68, %c0_69] : memref<8x8x128xbf16, #tpu.memory_space<vmem>>, vector<1x8x128xbf16>
    %277 = vector.shape_cast %276 : vector<1x8x128xbf16> to vector<8x128xbf16>
    %278 = vector.shape_cast %274 : vector<8x128xbf16> to vector<1x8x128xbf16>
    tpu.vector_store %arg16[%275, %c0_68, %c0_69], %278 {strides = array<i32>} : memref<8x8x128xbf16, #tpu.memory_space<vmem>>, vector<1x8x128xbf16>,
    %c7_i32 = arith.constant 7 : i32
    %279 = arith.index_cast %c7_i32 : i32 to index
    %c0_70 = arith.constant 0 : index
    %c0_71 = arith.constant 0 : index
    %280 = vector.load %arg15[%279, %c0_70, %c0_71] : memref<8x8x384xf32, #tpu.memory_space<vmem>>, vector<1x8x384xf32>
    %281 = vector.shape_cast %280 : vector<1x8x384xf32> to vector<8x384xf32>
    %282 = arith.truncf %273 : vector<8x128xf32> to vector<8x128xbf16>
    %cst_72 = arith.constant dense<0.000000e+00> : vector<8x384xf32>
    %283 = tpu.matmul %282, %10, %cst_72 {dimension_numbers = #tpu.dot_dimension_numbers<[1], [0], [0], [1], [0, 0, 1, 1], [], []>} : vector<8x128xbf16>, vector<128x384xbf16>, vector<8x384xf32> -> vector<8x384xf32>
    %284 = vector.extract_strided_slice %281 {offsets = [0, 0], sizes = [8, 128], strides = [1, 1]} : vector<8x384xf32> to vector<8x128xf32>
    %285 = vector.extract_strided_slice %283 {offsets = [0, 0], sizes = [8, 128], strides = [1, 1]} : vector<8x384xf32> to vector<8x128xf32>
    %286 = arith.addf %284, %285 : vector<8x128xf32>
    %287 = arith.negf %286 : vector<8x128xf32>
    %288 = math.exp %287 : vector<8x128xf32>
    %cst_73 = arith.constant 1.000000e+00 : f32
    %289 = vector.broadcast %cst_73 : f32 to vector<8x128xf32>
    %290 = arith.addf %289, %288 : vector<8x128xf32>
    %291 = arith.divf %289, %290 : vector<8x128xf32>
    %292 = vector.extract_strided_slice %281 {offsets = [0, 128], sizes = [8, 128], strides = [1, 1]} : vector<8x384xf32> to vector<8x128xf32>
    %293 = vector.extract_strided_slice %283 {offsets = [0, 128], sizes = [8, 128], strides = [1, 1]} : vector<8x384xf32> to vector<8x128xf32>
    %294 = arith.addf %292, %293 : vector<8x128xf32>
    %295 = arith.negf %294 : vector<8x128xf32>
    %296 = math.exp %295 : vector<8x128xf32>
    %cst_74 = arith.constant 1.000000e+00 : f32
    %297 = vector.broadcast %cst_74 : f32 to vector<8x128xf32>
    %298 = arith.addf %297, %296 : vector<8x128xf32>
    %299 = arith.divf %297, %298 : vector<8x128xf32>
    %300 = vector.extract_strided_slice %281 {offsets = [0, 256], sizes = [8, 128], strides = [1, 1]} : vector<8x384xf32> to vector<8x128xf32>
    %301 = vector.extract_strided_slice %283 {offsets = [0, 256], sizes = [8, 128], strides = [1, 1]} : vector<8x384xf32> to vector<8x128xf32>
    %302 = vector.broadcast %11 : vector<1x128xf32> to vector<8x128xf32>
    %303 = arith.addf %301, %302 : vector<8x128xf32>
    %304 = arith.mulf %291, %303 : vector<8x128xf32>
    %305 = arith.addf %300, %304 : vector<8x128xf32>
    %306 = math.tanh %305 : vector<8x128xf32>
    %cst_75 = arith.constant 1.000000e+00 : f32
    %307 = vector.broadcast %cst_75 : f32 to vector<8x128xf32>
    %308 = arith.subf %307, %299 : vector<8x128xf32>
    %309 = arith.mulf %308, %306 : vector<8x128xf32>
    %310 = arith.mulf %299, %273 : vector<8x128xf32>
    %311 = arith.addf %309, %310 : vector<8x128xf32>
    %312 = arith.truncf %311 : vector<8x128xf32> to vector<8x128xbf16>
    %313 = arith.index_cast %c7_i32 : i32 to index
    %c0_76 = arith.constant 0 : index
    %c0_77 = arith.constant 0 : index
    %314 = vector.load %arg16[%313, %c0_76, %c0_77] : memref<8x8x128xbf16, #tpu.memory_space<vmem>>, vector<1x8x128xbf16>
    %315 = vector.shape_cast %314 : vector<1x8x128xbf16> to vector<8x128xbf16>
    %316 = vector.shape_cast %312 : vector<8x128xbf16> to vector<1x8x128xbf16>
    tpu.vector_store %arg16[%313, %c0_76, %c0_77], %316 {strides = array<i32>} : memref<8x8x128xbf16, #tpu.memory_space<vmem>>, vector<1x8x128xbf16>,
    %c8_i32 = arith.constant 8 : i32
    %c0_78 = arith.constant 0 : index
    %c0_79 = arith.constant 0 : index
    %c0_80 = arith.constant 0 : index
    %317 = vector.load %arg16[%c0_78, %c0_79, %c0_80] : memref<8x8x128xbf16, #tpu.memory_space<vmem>>, vector<8x8x128xbf16>
    %318 = vector.shape_cast %317 : vector<8x8x128xbf16> to vector<64x128xbf16>
    %c0_81 = arith.constant 0 : index
    %c0_82 = arith.constant 0 : index
    %319 = vector.load %arg6[%c0_81, %c0_82] : memref<128x384xbf16, #tpu.memory_space<vmem>>, vector<128x384xbf16>
    %cst_83 = arith.constant dense<0.000000e+00> : vector<64x384xf32>
    %320 = tpu.matmul %318, %319, %cst_83 {dimension_numbers = #tpu.dot_dimension_numbers<[1], [0], [0], [1], [0, 0, 1, 1], [], []>} : vector<64x128xbf16>, vector<128x384xbf16>, vector<64x384xf32> -> vector<64x384xf32>
    %c0_84 = arith.constant 0 : index
    %c0_85 = arith.constant 0 : index
    %321 = vector.load %arg8[%c0_84, %c0_85] : memref<1x384xf32, #tpu.memory_space<vmem>>, vector<1x384xf32>
    %322 = vector.broadcast %321 : vector<1x384xf32> to vector<64x384xf32>
    %323 = arith.addf %320, %322 : vector<64x384xf32>
    %324 = vector.shape_cast %323 : vector<64x384xf32> to vector<8x8x384xf32>
    %c0_86 = arith.constant 0 : index
    %c0_87 = arith.constant 0 : index
    %c0_88 = arith.constant 0 : index
    %325 = vector.load %arg15[%c0_86, %c0_87, %c0_88] : memref<8x8x384xf32, #tpu.memory_space<vmem>>, vector<8x8x384xf32>
    tpu.vector_store %arg15[%c0_86, %c0_87, %c0_88], %324 {strides = array<i32>} : memref<8x8x384xf32, #tpu.memory_space<vmem>>, vector<8x8x384xf32>,
    %c0_89 = arith.constant 0 : index
    %c0_90 = arith.constant 0 : index
    %326 = vector.load %arg7[%c0_89, %c0_90] : memref<128x384xbf16, #tpu.memory_space<vmem>>, vector<128x384xbf16>
    %c0_91 = arith.constant 0 : index
    %c0_92 = arith.constant 0 : index
    %327 = vector.load %arg9[%c0_91, %c0_92] : memref<1x128xf32, #tpu.memory_space<vmem>>, vector<1x128xf32>
    %cst_93 = arith.constant 0.000000e+00 : f32
    %328 = vector.broadcast %cst_93 : f32 to vector<8x128xf32>
    %c0_i32_94 = arith.constant 0 : i32
    %329 = arith.index_cast %c0_i32_94 : i32 to index
    %c0_95 = arith.constant 0 : index
    %c0_96 = arith.constant 0 : index
    %330 = vector.load %arg15[%329, %c0_95, %c0_96] : memref<8x8x384xf32, #tpu.memory_space<vmem>>, vector<1x8x384xf32>
    %331 = vector.shape_cast %330 : vector<1x8x384xf32> to vector<8x384xf32>
    %332 = arith.truncf %328 : vector<8x128xf32> to vector<8x128xbf16>
    %cst_97 = arith.constant dense<0.000000e+00> : vector<8x384xf32>
    %333 = tpu.matmul %332, %326, %cst_97 {dimension_numbers = #tpu.dot_dimension_numbers<[1], [0], [0], [1], [0, 0, 1, 1], [], []>} : vector<8x128xbf16>, vector<128x384xbf16>, vector<8x384xf32> -> vector<8x384xf32>
    %334 = vector.extract_strided_slice %331 {offsets = [0, 0], sizes = [8, 128], strides = [1, 1]} : vector<8x384xf32> to vector<8x128xf32>
    %335 = vector.extract_strided_slice %333 {offsets = [0, 0], sizes = [8, 128], strides = [1, 1]} : vector<8x384xf32> to vector<8x128xf32>
    %336 = arith.addf %334, %335 : vector<8x128xf32>
    %337 = arith.negf %336 : vector<8x128xf32>
    %338 = math.exp %337 : vector<8x128xf32>
    %cst_98 = arith.constant 1.000000e+00 : f32
    %339 = vector.broadcast %cst_98 : f32 to vector<8x128xf32>
    %340 = arith.addf %339, %338 : vector<8x128xf32>
    %341 = arith.divf %339, %340 : vector<8x128xf32>
    %342 = vector.extract_strided_slice %331 {offsets = [0, 128], sizes = [8, 128], strides = [1, 1]} : vector<8x384xf32> to vector<8x128xf32>
    %343 = vector.extract_strided_slice %333 {offsets = [0, 128], sizes = [8, 128], strides = [1, 1]} : vector<8x384xf32> to vector<8x128xf32>
    %344 = arith.addf %342, %343 : vector<8x128xf32>
    %345 = arith.negf %344 : vector<8x128xf32>
    %346 = math.exp %345 : vector<8x128xf32>
    %cst_99 = arith.constant 1.000000e+00 : f32
    %347 = vector.broadcast %cst_99 : f32 to vector<8x128xf32>
    %348 = arith.addf %347, %346 : vector<8x128xf32>
    %349 = arith.divf %347, %348 : vector<8x128xf32>
    %350 = vector.extract_strided_slice %331 {offsets = [0, 256], sizes = [8, 128], strides = [1, 1]} : vector<8x384xf32> to vector<8x128xf32>
    %351 = vector.extract_strided_slice %333 {offsets = [0, 256], sizes = [8, 128], strides = [1, 1]} : vector<8x384xf32> to vector<8x128xf32>
    %352 = vector.broadcast %327 : vector<1x128xf32> to vector<8x128xf32>
    %353 = arith.addf %351, %352 : vector<8x128xf32>
    %354 = arith.mulf %341, %353 : vector<8x128xf32>
    %355 = arith.addf %350, %354 : vector<8x128xf32>
    %356 = math.tanh %355 : vector<8x128xf32>
    %cst_100 = arith.constant 1.000000e+00 : f32
    %357 = vector.broadcast %cst_100 : f32 to vector<8x128xf32>
    %358 = arith.subf %357, %349 : vector<8x128xf32>
    %359 = arith.mulf %358, %356 : vector<8x128xf32>
    %360 = arith.mulf %349, %328 : vector<8x128xf32>
    %361 = arith.addf %359, %360 : vector<8x128xf32>
    %c1_i32_101 = arith.constant 1 : i32
    %362 = arith.index_cast %c1_i32_101 : i32 to index
    %c0_102 = arith.constant 0 : index
    %c0_103 = arith.constant 0 : index
    %363 = vector.load %arg15[%362, %c0_102, %c0_103] : memref<8x8x384xf32, #tpu.memory_space<vmem>>, vector<1x8x384xf32>
    %364 = vector.shape_cast %363 : vector<1x8x384xf32> to vector<8x384xf32>
    %365 = arith.truncf %361 : vector<8x128xf32> to vector<8x128xbf16>
    %cst_104 = arith.constant dense<0.000000e+00> : vector<8x384xf32>
    %366 = tpu.matmul %365, %326, %cst_104 {dimension_numbers = #tpu.dot_dimension_numbers<[1], [0], [0], [1], [0, 0, 1, 1], [], []>} : vector<8x128xbf16>, vector<128x384xbf16>, vector<8x384xf32> -> vector<8x384xf32>
    %367 = vector.extract_strided_slice %364 {offsets = [0, 0], sizes = [8, 128], strides = [1, 1]} : vector<8x384xf32> to vector<8x128xf32>
    %368 = vector.extract_strided_slice %366 {offsets = [0, 0], sizes = [8, 128], strides = [1, 1]} : vector<8x384xf32> to vector<8x128xf32>
    %369 = arith.addf %367, %368 : vector<8x128xf32>
    %370 = arith.negf %369 : vector<8x128xf32>
    %371 = math.exp %370 : vector<8x128xf32>
    %cst_105 = arith.constant 1.000000e+00 : f32
    %372 = vector.broadcast %cst_105 : f32 to vector<8x128xf32>
    %373 = arith.addf %372, %371 : vector<8x128xf32>
    %374 = arith.divf %372, %373 : vector<8x128xf32>
    %375 = vector.extract_strided_slice %364 {offsets = [0, 128], sizes = [8, 128], strides = [1, 1]} : vector<8x384xf32> to vector<8x128xf32>
    %376 = vector.extract_strided_slice %366 {offsets = [0, 128], sizes = [8, 128], strides = [1, 1]} : vector<8x384xf32> to vector<8x128xf32>
    %377 = arith.addf %375, %376 : vector<8x128xf32>
    %378 = arith.negf %377 : vector<8x128xf32>
    %379 = math.exp %378 : vector<8x128xf32>
    %cst_106 = arith.constant 1.000000e+00 : f32
    %380 = vector.broadcast %cst_106 : f32 to vector<8x128xf32>
    %381 = arith.addf %380, %379 : vector<8x128xf32>
    %382 = arith.divf %380, %381 : vector<8x128xf32>
    %383 = vector.extract_strided_slice %364 {offsets = [0, 256], sizes = [8, 128], strides = [1, 1]} : vector<8x384xf32> to vector<8x128xf32>
    %384 = vector.extract_strided_slice %366 {offsets = [0, 256], sizes = [8, 128], strides = [1, 1]} : vector<8x384xf32> to vector<8x128xf32>
    %385 = vector.broadcast %327 : vector<1x128xf32> to vector<8x128xf32>
    %386 = arith.addf %384, %385 : vector<8x128xf32>
    %387 = arith.mulf %374, %386 : vector<8x128xf32>
    %388 = arith.addf %383, %387 : vector<8x128xf32>
    %389 = math.tanh %388 : vector<8x128xf32>
    %cst_107 = arith.constant 1.000000e+00 : f32
    %390 = vector.broadcast %cst_107 : f32 to vector<8x128xf32>
    %391 = arith.subf %390, %382 : vector<8x128xf32>
    %392 = arith.mulf %391, %389 : vector<8x128xf32>
    %393 = arith.mulf %382, %361 : vector<8x128xf32>
    %394 = arith.addf %392, %393 : vector<8x128xf32>
    %c2_i32_108 = arith.constant 2 : i32
    %395 = arith.index_cast %c2_i32_108 : i32 to index
    %c0_109 = arith.constant 0 : index
    %c0_110 = arith.constant 0 : index
    %396 = vector.load %arg15[%395, %c0_109, %c0_110] : memref<8x8x384xf32, #tpu.memory_space<vmem>>, vector<1x8x384xf32>
    %397 = vector.shape_cast %396 : vector<1x8x384xf32> to vector<8x384xf32>
    %398 = arith.truncf %394 : vector<8x128xf32> to vector<8x128xbf16>
    %cst_111 = arith.constant dense<0.000000e+00> : vector<8x384xf32>
    %399 = tpu.matmul %398, %326, %cst_111 {dimension_numbers = #tpu.dot_dimension_numbers<[1], [0], [0], [1], [0, 0, 1, 1], [], []>} : vector<8x128xbf16>, vector<128x384xbf16>, vector<8x384xf32> -> vector<8x384xf32>
    %400 = vector.extract_strided_slice %397 {offsets = [0, 0], sizes = [8, 128], strides = [1, 1]} : vector<8x384xf32> to vector<8x128xf32>
    %401 = vector.extract_strided_slice %399 {offsets = [0, 0], sizes = [8, 128], strides = [1, 1]} : vector<8x384xf32> to vector<8x128xf32>
    %402 = arith.addf %400, %401 : vector<8x128xf32>
    %403 = arith.negf %402 : vector<8x128xf32>
    %404 = math.exp %403 : vector<8x128xf32>
    %cst_112 = arith.constant 1.000000e+00 : f32
    %405 = vector.broadcast %cst_112 : f32 to vector<8x128xf32>
    %406 = arith.addf %405, %404 : vector<8x128xf32>
    %407 = arith.divf %405, %406 : vector<8x128xf32>
    %408 = vector.extract_strided_slice %397 {offsets = [0, 128], sizes = [8, 128], strides = [1, 1]} : vector<8x384xf32> to vector<8x128xf32>
    %409 = vector.extract_strided_slice %399 {offsets = [0, 128], sizes = [8, 128], strides = [1, 1]} : vector<8x384xf32> to vector<8x128xf32>
    %410 = arith.addf %408, %409 : vector<8x128xf32>
    %411 = arith.negf %410 : vector<8x128xf32>
    %412 = math.exp %411 : vector<8x128xf32>
    %cst_113 = arith.constant 1.000000e+00 : f32
    %413 = vector.broadcast %cst_113 : f32 to vector<8x128xf32>
    %414 = arith.addf %413, %412 : vector<8x128xf32>
    %415 = arith.divf %413, %414 : vector<8x128xf32>
    %416 = vector.extract_strided_slice %397 {offsets = [0, 256], sizes = [8, 128], strides = [1, 1]} : vector<8x384xf32> to vector<8x128xf32>
    %417 = vector.extract_strided_slice %399 {offsets = [0, 256], sizes = [8, 128], strides = [1, 1]} : vector<8x384xf32> to vector<8x128xf32>
    %418 = vector.broadcast %327 : vector<1x128xf32> to vector<8x128xf32>
    %419 = arith.addf %417, %418 : vector<8x128xf32>
    %420 = arith.mulf %407, %419 : vector<8x128xf32>
    %421 = arith.addf %416, %420 : vector<8x128xf32>
    %422 = math.tanh %421 : vector<8x128xf32>
    %cst_114 = arith.constant 1.000000e+00 : f32
    %423 = vector.broadcast %cst_114 : f32 to vector<8x128xf32>
    %424 = arith.subf %423, %415 : vector<8x128xf32>
    %425 = arith.mulf %424, %422 : vector<8x128xf32>
    %426 = arith.mulf %415, %394 : vector<8x128xf32>
    %427 = arith.addf %425, %426 : vector<8x128xf32>
    %c3_i32_115 = arith.constant 3 : i32
    %428 = arith.index_cast %c3_i32_115 : i32 to index
    %c0_116 = arith.constant 0 : index
    %c0_117 = arith.constant 0 : index
    %429 = vector.load %arg15[%428, %c0_116, %c0_117] : memref<8x8x384xf32, #tpu.memory_space<vmem>>, vector<1x8x384xf32>
    %430 = vector.shape_cast %429 : vector<1x8x384xf32> to vector<8x384xf32>
    %431 = arith.truncf %427 : vector<8x128xf32> to vector<8x128xbf16>
    %cst_118 = arith.constant dense<0.000000e+00> : vector<8x384xf32>
    %432 = tpu.matmul %431, %326, %cst_118 {dimension_numbers = #tpu.dot_dimension_numbers<[1], [0], [0], [1], [0, 0, 1, 1], [], []>} : vector<8x128xbf16>, vector<128x384xbf16>, vector<8x384xf32> -> vector<8x384xf32>
    %433 = vector.extract_strided_slice %430 {offsets = [0, 0], sizes = [8, 128], strides = [1, 1]} : vector<8x384xf32> to vector<8x128xf32>
    %434 = vector.extract_strided_slice %432 {offsets = [0, 0], sizes = [8, 128], strides = [1, 1]} : vector<8x384xf32> to vector<8x128xf32>
    %435 = arith.addf %433, %434 : vector<8x128xf32>
    %436 = arith.negf %435 : vector<8x128xf32>
    %437 = math.exp %436 : vector<8x128xf32>
    %cst_119 = arith.constant 1.000000e+00 : f32
    %438 = vector.broadcast %cst_119 : f32 to vector<8x128xf32>
    %439 = arith.addf %438, %437 : vector<8x128xf32>
    %440 = arith.divf %438, %439 : vector<8x128xf32>
    %441 = vector.extract_strided_slice %430 {offsets = [0, 128], sizes = [8, 128], strides = [1, 1]} : vector<8x384xf32> to vector<8x128xf32>
    %442 = vector.extract_strided_slice %432 {offsets = [0, 128], sizes = [8, 128], strides = [1, 1]} : vector<8x384xf32> to vector<8x128xf32>
    %443 = arith.addf %441, %442 : vector<8x128xf32>
    %444 = arith.negf %443 : vector<8x128xf32>
    %445 = math.exp %444 : vector<8x128xf32>
    %cst_120 = arith.constant 1.000000e+00 : f32
    %446 = vector.broadcast %cst_120 : f32 to vector<8x128xf32>
    %447 = arith.addf %446, %445 : vector<8x128xf32>
    %448 = arith.divf %446, %447 : vector<8x128xf32>
    %449 = vector.extract_strided_slice %430 {offsets = [0, 256], sizes = [8, 128], strides = [1, 1]} : vector<8x384xf32> to vector<8x128xf32>
    %450 = vector.extract_strided_slice %432 {offsets = [0, 256], sizes = [8, 128], strides = [1, 1]} : vector<8x384xf32> to vector<8x128xf32>
    %451 = vector.broadcast %327 : vector<1x128xf32> to vector<8x128xf32>
    %452 = arith.addf %450, %451 : vector<8x128xf32>
    %453 = arith.mulf %440, %452 : vector<8x128xf32>
    %454 = arith.addf %449, %453 : vector<8x128xf32>
    %455 = math.tanh %454 : vector<8x128xf32>
    %cst_121 = arith.constant 1.000000e+00 : f32
    %456 = vector.broadcast %cst_121 : f32 to vector<8x128xf32>
    %457 = arith.subf %456, %448 : vector<8x128xf32>
    %458 = arith.mulf %457, %455 : vector<8x128xf32>
    %459 = arith.mulf %448, %427 : vector<8x128xf32>
    %460 = arith.addf %458, %459 : vector<8x128xf32>
    %c4_i32_122 = arith.constant 4 : i32
    %461 = arith.index_cast %c4_i32_122 : i32 to index
    %c0_123 = arith.constant 0 : index
    %c0_124 = arith.constant 0 : index
    %462 = vector.load %arg15[%461, %c0_123, %c0_124] : memref<8x8x384xf32, #tpu.memory_space<vmem>>, vector<1x8x384xf32>
    %463 = vector.shape_cast %462 : vector<1x8x384xf32> to vector<8x384xf32>
    %464 = arith.truncf %460 : vector<8x128xf32> to vector<8x128xbf16>
    %cst_125 = arith.constant dense<0.000000e+00> : vector<8x384xf32>
    %465 = tpu.matmul %464, %326, %cst_125 {dimension_numbers = #tpu.dot_dimension_numbers<[1], [0], [0], [1], [0, 0, 1, 1], [], []>} : vector<8x128xbf16>, vector<128x384xbf16>, vector<8x384xf32> -> vector<8x384xf32>
    %466 = vector.extract_strided_slice %463 {offsets = [0, 0], sizes = [8, 128], strides = [1, 1]} : vector<8x384xf32> to vector<8x128xf32>
    %467 = vector.extract_strided_slice %465 {offsets = [0, 0], sizes = [8, 128], strides = [1, 1]} : vector<8x384xf32> to vector<8x128xf32>
    %468 = arith.addf %466, %467 : vector<8x128xf32>
    %469 = arith.negf %468 : vector<8x128xf32>
    %470 = math.exp %469 : vector<8x128xf32>
    %cst_126 = arith.constant 1.000000e+00 : f32
    %471 = vector.broadcast %cst_126 : f32 to vector<8x128xf32>
    %472 = arith.addf %471, %470 : vector<8x128xf32>
    %473 = arith.divf %471, %472 : vector<8x128xf32>
    %474 = vector.extract_strided_slice %463 {offsets = [0, 128], sizes = [8, 128], strides = [1, 1]} : vector<8x384xf32> to vector<8x128xf32>
    %475 = vector.extract_strided_slice %465 {offsets = [0, 128], sizes = [8, 128], strides = [1, 1]} : vector<8x384xf32> to vector<8x128xf32>
    %476 = arith.addf %474, %475 : vector<8x128xf32>
    %477 = arith.negf %476 : vector<8x128xf32>
    %478 = math.exp %477 : vector<8x128xf32>
    %cst_127 = arith.constant 1.000000e+00 : f32
    %479 = vector.broadcast %cst_127 : f32 to vector<8x128xf32>
    %480 = arith.addf %479, %478 : vector<8x128xf32>
    %481 = arith.divf %479, %480 : vector<8x128xf32>
    %482 = vector.extract_strided_slice %463 {offsets = [0, 256], sizes = [8, 128], strides = [1, 1]} : vector<8x384xf32> to vector<8x128xf32>
    %483 = vector.extract_strided_slice %465 {offsets = [0, 256], sizes = [8, 128], strides = [1, 1]} : vector<8x384xf32> to vector<8x128xf32>
    %484 = vector.broadcast %327 : vector<1x128xf32> to vector<8x128xf32>
    %485 = arith.addf %483, %484 : vector<8x128xf32>
    %486 = arith.mulf %473, %485 : vector<8x128xf32>
    %487 = arith.addf %482, %486 : vector<8x128xf32>
    %488 = math.tanh %487 : vector<8x128xf32>
    %cst_128 = arith.constant 1.000000e+00 : f32
    %489 = vector.broadcast %cst_128 : f32 to vector<8x128xf32>
    %490 = arith.subf %489, %481 : vector<8x128xf32>
    %491 = arith.mulf %490, %488 : vector<8x128xf32>
    %492 = arith.mulf %481, %460 : vector<8x128xf32>
    %493 = arith.addf %491, %492 : vector<8x128xf32>
    %c5_i32_129 = arith.constant 5 : i32
    %494 = arith.index_cast %c5_i32_129 : i32 to index
    %c0_130 = arith.constant 0 : index
    %c0_131 = arith.constant 0 : index
    %495 = vector.load %arg15[%494, %c0_130, %c0_131] : memref<8x8x384xf32, #tpu.memory_space<vmem>>, vector<1x8x384xf32>
    %496 = vector.shape_cast %495 : vector<1x8x384xf32> to vector<8x384xf32>
    %497 = arith.truncf %493 : vector<8x128xf32> to vector<8x128xbf16>
    %cst_132 = arith.constant dense<0.000000e+00> : vector<8x384xf32>
    %498 = tpu.matmul %497, %326, %cst_132 {dimension_numbers = #tpu.dot_dimension_numbers<[1], [0], [0], [1], [0, 0, 1, 1], [], []>} : vector<8x128xbf16>, vector<128x384xbf16>, vector<8x384xf32> -> vector<8x384xf32>
    %499 = vector.extract_strided_slice %496 {offsets = [0, 0], sizes = [8, 128], strides = [1, 1]} : vector<8x384xf32> to vector<8x128xf32>
    %500 = vector.extract_strided_slice %498 {offsets = [0, 0], sizes = [8, 128], strides = [1, 1]} : vector<8x384xf32> to vector<8x128xf32>
    %501 = arith.addf %499, %500 : vector<8x128xf32>
    %502 = arith.negf %501 : vector<8x128xf32>
    %503 = math.exp %502 : vector<8x128xf32>
    %cst_133 = arith.constant 1.000000e+00 : f32
    %504 = vector.broadcast %cst_133 : f32 to vector<8x128xf32>
    %505 = arith.addf %504, %503 : vector<8x128xf32>
    %506 = arith.divf %504, %505 : vector<8x128xf32>
    %507 = vector.extract_strided_slice %496 {offsets = [0, 128], sizes = [8, 128], strides = [1, 1]} : vector<8x384xf32> to vector<8x128xf32>
    %508 = vector.extract_strided_slice %498 {offsets = [0, 128], sizes = [8, 128], strides = [1, 1]} : vector<8x384xf32> to vector<8x128xf32>
    %509 = arith.addf %507, %508 : vector<8x128xf32>
    %510 = arith.negf %509 : vector<8x128xf32>
    %511 = math.exp %510 : vector<8x128xf32>
    %cst_134 = arith.constant 1.000000e+00 : f32
    %512 = vector.broadcast %cst_134 : f32 to vector<8x128xf32>
    %513 = arith.addf %512, %511 : vector<8x128xf32>
    %514 = arith.divf %512, %513 : vector<8x128xf32>
    %515 = vector.extract_strided_slice %496 {offsets = [0, 256], sizes = [8, 128], strides = [1, 1]} : vector<8x384xf32> to vector<8x128xf32>
    %516 = vector.extract_strided_slice %498 {offsets = [0, 256], sizes = [8, 128], strides = [1, 1]} : vector<8x384xf32> to vector<8x128xf32>
    %517 = vector.broadcast %327 : vector<1x128xf32> to vector<8x128xf32>
    %518 = arith.addf %516, %517 : vector<8x128xf32>
    %519 = arith.mulf %506, %518 : vector<8x128xf32>
    %520 = arith.addf %515, %519 : vector<8x128xf32>
    %521 = math.tanh %520 : vector<8x128xf32>
    %cst_135 = arith.constant 1.000000e+00 : f32
    %522 = vector.broadcast %cst_135 : f32 to vector<8x128xf32>
    %523 = arith.subf %522, %514 : vector<8x128xf32>
    %524 = arith.mulf %523, %521 : vector<8x128xf32>
    %525 = arith.mulf %514, %493 : vector<8x128xf32>
    %526 = arith.addf %524, %525 : vector<8x128xf32>
    %c6_i32_136 = arith.constant 6 : i32
    %527 = arith.index_cast %c6_i32_136 : i32 to index
    %c0_137 = arith.constant 0 : index
    %c0_138 = arith.constant 0 : index
    %528 = vector.load %arg15[%527, %c0_137, %c0_138] : memref<8x8x384xf32, #tpu.memory_space<vmem>>, vector<1x8x384xf32>
    %529 = vector.shape_cast %528 : vector<1x8x384xf32> to vector<8x384xf32>
    %530 = arith.truncf %526 : vector<8x128xf32> to vector<8x128xbf16>
    %cst_139 = arith.constant dense<0.000000e+00> : vector<8x384xf32>
    %531 = tpu.matmul %530, %326, %cst_139 {dimension_numbers = #tpu.dot_dimension_numbers<[1], [0], [0], [1], [0, 0, 1, 1], [], []>} : vector<8x128xbf16>, vector<128x384xbf16>, vector<8x384xf32> -> vector<8x384xf32>
    %532 = vector.extract_strided_slice %529 {offsets = [0, 0], sizes = [8, 128], strides = [1, 1]} : vector<8x384xf32> to vector<8x128xf32>
    %533 = vector.extract_strided_slice %531 {offsets = [0, 0], sizes = [8, 128], strides = [1, 1]} : vector<8x384xf32> to vector<8x128xf32>
    %534 = arith.addf %532, %533 : vector<8x128xf32>
    %535 = arith.negf %534 : vector<8x128xf32>
    %536 = math.exp %535 : vector<8x128xf32>
    %cst_140 = arith.constant 1.000000e+00 : f32
    %537 = vector.broadcast %cst_140 : f32 to vector<8x128xf32>
    %538 = arith.addf %537, %536 : vector<8x128xf32>
    %539 = arith.divf %537, %538 : vector<8x128xf32>
    %540 = vector.extract_strided_slice %529 {offsets = [0, 128], sizes = [8, 128], strides = [1, 1]} : vector<8x384xf32> to vector<8x128xf32>
    %541 = vector.extract_strided_slice %531 {offsets = [0, 128], sizes = [8, 128], strides = [1, 1]} : vector<8x384xf32> to vector<8x128xf32>
    %542 = arith.addf %540, %541 : vector<8x128xf32>
    %543 = arith.negf %542 : vector<8x128xf32>
    %544 = math.exp %543 : vector<8x128xf32>
    %cst_141 = arith.constant 1.000000e+00 : f32
    %545 = vector.broadcast %cst_141 : f32 to vector<8x128xf32>
    %546 = arith.addf %545, %544 : vector<8x128xf32>
    %547 = arith.divf %545, %546 : vector<8x128xf32>
    %548 = vector.extract_strided_slice %529 {offsets = [0, 256], sizes = [8, 128], strides = [1, 1]} : vector<8x384xf32> to vector<8x128xf32>
    %549 = vector.extract_strided_slice %531 {offsets = [0, 256], sizes = [8, 128], strides = [1, 1]} : vector<8x384xf32> to vector<8x128xf32>
    %550 = vector.broadcast %327 : vector<1x128xf32> to vector<8x128xf32>
    %551 = arith.addf %549, %550 : vector<8x128xf32>
    %552 = arith.mulf %539, %551 : vector<8x128xf32>
    %553 = arith.addf %548, %552 : vector<8x128xf32>
    %554 = math.tanh %553 : vector<8x128xf32>
    %cst_142 = arith.constant 1.000000e+00 : f32
    %555 = vector.broadcast %cst_142 : f32 to vector<8x128xf32>
    %556 = arith.subf %555, %547 : vector<8x128xf32>
    %557 = arith.mulf %556, %554 : vector<8x128xf32>
    %558 = arith.mulf %547, %526 : vector<8x128xf32>
    %559 = arith.addf %557, %558 : vector<8x128xf32>
    %c7_i32_143 = arith.constant 7 : i32
    %560 = arith.index_cast %c7_i32_143 : i32 to index
    %c0_144 = arith.constant 0 : index
    %c0_145 = arith.constant 0 : index
    %561 = vector.load %arg15[%560, %c0_144, %c0_145] : memref<8x8x384xf32, #tpu.memory_space<vmem>>, vector<1x8x384xf32>
    %562 = vector.shape_cast %561 : vector<1x8x384xf32> to vector<8x384xf32>
    %563 = arith.truncf %559 : vector<8x128xf32> to vector<8x128xbf16>
    %cst_146 = arith.constant dense<0.000000e+00> : vector<8x384xf32>
    %564 = tpu.matmul %563, %326, %cst_146 {dimension_numbers = #tpu.dot_dimension_numbers<[1], [0], [0], [1], [0, 0, 1, 1], [], []>} : vector<8x128xbf16>, vector<128x384xbf16>, vector<8x384xf32> -> vector<8x384xf32>
    %565 = vector.extract_strided_slice %562 {offsets = [0, 0], sizes = [8, 128], strides = [1, 1]} : vector<8x384xf32> to vector<8x128xf32>
    %566 = vector.extract_strided_slice %564 {offsets = [0, 0], sizes = [8, 128], strides = [1, 1]} : vector<8x384xf32> to vector<8x128xf32>
    %567 = arith.addf %565, %566 : vector<8x128xf32>
    %568 = arith.negf %567 : vector<8x128xf32>
    %569 = math.exp %568 : vector<8x128xf32>
    %cst_147 = arith.constant 1.000000e+00 : f32
    %570 = vector.broadcast %cst_147 : f32 to vector<8x128xf32>
    %571 = arith.addf %570, %569 : vector<8x128xf32>
    %572 = arith.divf %570, %571 : vector<8x128xf32>
    %573 = vector.extract_strided_slice %562 {offsets = [0, 128], sizes = [8, 128], strides = [1, 1]} : vector<8x384xf32> to vector<8x128xf32>
    %574 = vector.extract_strided_slice %564 {offsets = [0, 128], sizes = [8, 128], strides = [1, 1]} : vector<8x384xf32> to vector<8x128xf32>
    %575 = arith.addf %573, %574 : vector<8x128xf32>
    %576 = arith.negf %575 : vector<8x128xf32>
    %577 = math.exp %576 : vector<8x128xf32>
    %cst_148 = arith.constant 1.000000e+00 : f32
    %578 = vector.broadcast %cst_148 : f32 to vector<8x128xf32>
    %579 = arith.addf %578, %577 : vector<8x128xf32>
    %580 = arith.divf %578, %579 : vector<8x128xf32>
    %581 = vector.extract_strided_slice %562 {offsets = [0, 256], sizes = [8, 128], strides = [1, 1]} : vector<8x384xf32> to vector<8x128xf32>
    %582 = vector.extract_strided_slice %564 {offsets = [0, 256], sizes = [8, 128], strides = [1, 1]} : vector<8x384xf32> to vector<8x128xf32>
    %583 = vector.broadcast %327 : vector<1x128xf32> to vector<8x128xf32>
    %584 = arith.addf %582, %583 : vector<8x128xf32>
    %585 = arith.mulf %572, %584 : vector<8x128xf32>
    %586 = arith.addf %581, %585 : vector<8x128xf32>
    %587 = math.tanh %586 : vector<8x128xf32>
    %cst_149 = arith.constant 1.000000e+00 : f32
    %588 = vector.broadcast %cst_149 : f32 to vector<8x128xf32>
    %589 = arith.subf %588, %580 : vector<8x128xf32>
    %590 = arith.mulf %589, %587 : vector<8x128xf32>
    %591 = arith.mulf %580, %559 : vector<8x128xf32>
    %592 = arith.addf %590, %591 : vector<8x128xf32>
    %c8_i32_150 = arith.constant 8 : i32
    %593 = arith.truncf %592 : vector<8x128xf32> to vector<8x128xbf16>
    %c0_151 = arith.constant 0 : index
    %c0_152 = arith.constant 0 : index
    %594 = vector.load %arg10[%c0_151, %c0_152] : memref<128x128xbf16, #tpu.memory_space<vmem>>, vector<128x128xbf16>
    %cst_153 = arith.constant dense<0.000000e+00> : vector<8x128xf32>
    %595 = tpu.matmul %593, %594, %cst_153 {dimension_numbers = #tpu.dot_dimension_numbers<[1], [0], [0], [1], [0, 0, 1, 1], [], []>} : vector<8x128xbf16>, vector<128x128xbf16>, vector<8x128xf32> -> vector<8x128xf32>
    %c0_154 = arith.constant 0 : index
    %c0_155 = arith.constant 0 : index
    %596 = vector.load %arg11[%c0_154, %c0_155] : memref<1x128xf32, #tpu.memory_space<vmem>>, vector<1x128xf32>
    %597 = vector.broadcast %596 : vector<1x128xf32> to vector<8x128xf32>
    %598 = arith.addf %595, %597 : vector<8x128xf32>
    %cst_156 = arith.constant 0.000000e+00 : f32
    %599 = vector.broadcast %cst_156 : f32 to vector<8x128xf32>
    %600 = arith.maximumf %598, %599 : vector<8x128xf32>
    %601 = arith.truncf %600 : vector<8x128xf32> to vector<8x128xbf16>
    %c0_157 = arith.constant 0 : index
    %c0_158 = arith.constant 0 : index
    %602 = vector.load %arg12[%c0_157, %c0_158] : memref<128x128xbf16, #tpu.memory_space<vmem>>, vector<128x128xbf16>
    %cst_159 = arith.constant dense<0.000000e+00> : vector<8x128xf32>
    %603 = tpu.matmul %601, %602, %cst_159 {dimension_numbers = #tpu.dot_dimension_numbers<[1], [0], [0], [1], [0, 0, 1, 1], [], []>} : vector<8x128xbf16>, vector<128x128xbf16>, vector<8x128xf32> -> vector<8x128xf32>
    %c0_160 = arith.constant 0 : index
    %c0_161 = arith.constant 0 : index
    %604 = vector.load %arg13[%c0_160, %c0_161] : memref<1x128xf32, #tpu.memory_space<vmem>>, vector<1x128xf32>
    %605 = vector.broadcast %604 : vector<1x128xf32> to vector<8x128xf32>
    %606 = arith.addf %603, %605 : vector<8x128xf32>
    %c0_162 = arith.constant 0 : index
    %c0_163 = arith.constant 0 : index
    %607 = vector.load %arg14[%c0_162, %c0_163] : memref<8x128xf32, #tpu.memory_space<vmem>>, vector<8x128xf32>
    tpu.vector_store %arg14[%c0_162, %c0_163], %606 {strides = array<i32>} : memref<8x128xf32, #tpu.memory_space<vmem>>, vector<8x128xf32>,
    return
  }
  func.func @transform_0(%arg0: i32) -> (i32, i32, i32) {
    %c0_i32 = arith.constant 0 : i32
    %c0_i32_0 = arith.constant 0 : i32
    %c0_i32_1 = arith.constant 0 : i32
    return %c0_i32, %arg0, %c0_i32_0 : i32, i32, i32
  }
  func.func @transform_1(%arg0: i32) -> (i32, i32) {
    %c0_i32 = arith.constant 0 : i32
    %c0_i32_0 = arith.constant 0 : i32
    %c0_i32_1 = arith.constant 0 : i32
    return %c0_i32, %c0_i32_0 : i32, i32
  }
  func.func @transform_2(%arg0: i32) -> (i32, i32) {
    %c0_i32 = arith.constant 0 : i32
    %c0_i32_0 = arith.constant 0 : i32
    %c0_i32_1 = arith.constant 0 : i32
    return %c0_i32, %c0_i32_0 : i32, i32
  }
  func.func @transform_3(%arg0: i32) -> (i32, i32) {
    %c0_i32 = arith.constant 0 : i32
    %c0_i32_0 = arith.constant 0 : i32
    %c0_i32_1 = arith.constant 0 : i32
    return %c0_i32, %c0_i32_0 : i32, i32
  }
  func.func @transform_4(%arg0: i32) -> (i32, i32) {
    %c0_i32 = arith.constant 0 : i32
    %c0_i32_0 = arith.constant 0 : i32
    %c0_i32_1 = arith.constant 0 : i32
    return %c0_i32, %c0_i32_0 : i32, i32
  }
  func.func @transform_5(%arg0: i32) -> (i32, i32) {
    %c0_i32 = arith.constant 0 : i32
    %c0_i32_0 = arith.constant 0 : i32
    %c0_i32_1 = arith.constant 0 : i32
    return %c0_i32, %c0_i32_0 : i32, i32
  }
  func.func @transform_6(%arg0: i32) -> (i32, i32) {
    %c0_i32 = arith.constant 0 : i32
    %c0_i32_0 = arith.constant 0 : i32
    %c0_i32_1 = arith.constant 0 : i32
    return %c0_i32, %c0_i32_0 : i32, i32
  }
  func.func @transform_7(%arg0: i32) -> (i32, i32) {
    %c0_i32 = arith.constant 0 : i32
    %c0_i32_0 = arith.constant 0 : i32
    %c0_i32_1 = arith.constant 0 : i32
    return %c0_i32, %c0_i32_0 : i32, i32
  }
  func.func @transform_8(%arg0: i32) -> (i32, i32) {
    %c0_i32 = arith.constant 0 : i32
    %c0_i32_0 = arith.constant 0 : i32
    %c0_i32_1 = arith.constant 0 : i32
    return %c0_i32, %c0_i32_0 : i32, i32
  }
  func.func @transform_9(%arg0: i32) -> (i32, i32) {
    %c0_i32 = arith.constant 0 : i32
    %c0_i32_0 = arith.constant 0 : i32
    %c0_i32_1 = arith.constant 0 : i32
    return %c0_i32, %c0_i32_0 : i32, i32
  }
  func.func @transform_10(%arg0: i32) -> (i32, i32) {
    %c0_i32 = arith.constant 0 : i32
    %c0_i32_0 = arith.constant 0 : i32
    %c0_i32_1 = arith.constant 0 : i32
    return %c0_i32, %c0_i32_0 : i32, i32
  }
  func.func @transform_11(%arg0: i32) -> (i32, i32) {
    %c0_i32 = arith.constant 0 : i32
    %c0_i32_0 = arith.constant 0 : i32
    %c0_i32_1 = arith.constant 0 : i32
    return %c0_i32, %c0_i32_0 : i32, i32
  }
  func.func @transform_12(%arg0: i32) -> (i32, i32) {
    %c0_i32 = arith.constant 0 : i32
    %c0_i32_0 = arith.constant 0 : i32
    %c0_i32_1 = arith.constant 0 : i32
    return %c0_i32, %c0_i32_0 : i32, i32
  }
  func.func @transform_13(%arg0: i32) -> (i32, i32) {
    %c0_i32 = arith.constant 0 : i32
    %c0_i32_0 = arith.constant 0 : i32
    return %arg0, %c0_i32 : i32, i32
  }
}

</mosaic_0001>

<llo_original>
// kernel: _gru_model_forward_padded.1
$region0: #{_gru_model_forward_padded.1}
  #allocation0 [shape = 'u32[]', space=smem, size = 0x4, offset = 0x4, fixed_abs, tag = 'smem constant byte address 0x4 - core index']
  #allocation1 [shape = 'u32[144,128]{1,0:T(1,128)}', space=vmem, size = 0x12000, scoped, tag = 'internal scratch']
  #allocation2 [shape = 'f32[8,8,384]{2,1,0:T(8,128)}', space=vmem, size = 0x18000, scoped, tag = 'scratch operand']
  #allocation3 [shape = 'bf16[8,8,128]{2,1,0:T(8,128)(2,1)}', space=vmem, size = 0x4000, scoped, tag = 'scratch operand']
  %s0 = inlined_call_operand.vmem [shape: f32[8,8,128], index: 0, kind: input, shape index: {}]
  %s1 = inlined_call_operand.hbm [shape: bf16[128,384], index: 1, kind: input, shape index: {}]
  %s2 = inlined_call_operand.hbm [shape: bf16[128,384], index: 2, kind: input, shape index: {}]
  %s3 = inlined_call_operand.vmem [shape: f32[1,384], index: 3, kind: input, shape index: {}]
  %s4 = inlined_call_operand.vmem [shape: f32[1,128], index: 4, kind: input, shape index: {}]
  %s5 = inlined_call_operand.hbm [shape: bf16[128,384], index: 5, kind: input, shape index: {}]
  %s6 = inlined_call_operand.hbm [shape: bf16[128,384], index: 6, kind: input, shape index: {}]
  %s7 = inlined_call_operand.vmem [shape: f32[1,384], index: 7, kind: input, shape index: {}]
  %s8 = inlined_call_operand.vmem [shape: f32[1,128], index: 8, kind: input, shape index: {}]
  %s9 = inlined_call_operand.vmem [shape: bf16[128,128], index: 9, kind: input, shape index: {}]
  %s10 = inlined_call_operand.vmem [shape: f32[1,128], index: 10, kind: input, shape index: {}]
  %s11 = inlined_call_operand.hbm [shape: bf16[128,128], index: 11, kind: input, shape index: {}]
  %s12 = inlined_call_operand.vmem [shape: f32[1,128], index: 12, kind: input, shape index: {}]
  %s13 = inlined_call_operand.hbm [shape: f32[8,128], index: 13, kind: output, shape index: {}]
  %s14 = sld [smem:[#allocation0]]
  $region82: #{_gru_model_forward_padded.1} parent=0
    _
  %s16 = ssub.s32 1, %s14
  %s17 = scalar_select 0, %s16, %s14
  $region1: #{_gru_model_forward_padded.1} parent=0
    #allocation4 [shape = 'u8[98304]{0}', space=vmem, size = 0x18000, scoped, tag = 'input window, operand 1, single buffered']
    #allocation5 [shape = 's32[1]{0}', space=sflag, size = 0x4, scoped, tag = 'scoped memory for _gru_model_forward_padded.1']
    #allocation6 [shape = 's32[1]{0}', space=sflag, size = 0x4, scoped, tag = 'scoped memory for _gru_model_forward_padded.1']
    #allocation7 [shape = 'u8[98304]{0}', space=vmem, size = 0x18000, scoped, tag = 'input window, operand 2, single buffered']
    #allocation8 [shape = 's32[1]{0}', space=sflag, size = 0x4, scoped, tag = 'scoped memory for _gru_model_forward_padded.1']
    #allocation9 [shape = 'u8[98304]{0}', space=vmem, size = 0x18000, scoped, tag = 'input window, operand 5, single buffered']
    #allocation10 [shape = 'u8[98304]{0}', space=vmem, size = 0x18000, scoped, tag = 'input window, operand 6, single buffered']
    #allocation11 [shape = 's32[1]{0}', space=sflag, size = 0x4, scoped, tag = 'scoped memory for _gru_model_forward_padded.1']
    #allocation12 [shape = 'u8[32768]{0}', space=vmem, size = 0x8000, scoped, tag = 'input window, operand 11, single buffered']
    #allocation13 [shape = 'u8[4096]{0}', space=vmem, size = 0x1000, scoped, tag = 'output window, operand 0, single buffered']
    %18 = vsyncpa [#allocation5], 0
    %19 = vsyncpa [#allocation8], 0
    %20 = vsyncpa [#allocation11], 0
    %21 = vsyncpa [#allocation6], 0
    // Predicated region
    $region2: #{_gru_model_forward_padded.1} parent=1 // pred_check
      _
    $region3: #{_gru_model_forward_padded.1} parent=1 // pred_check_branch
      %23 = sbr.rel (0) target = $region5
    $region4: #{_gru_model_forward_padded.1} parent=1 // pred_region
      _
    $region5: #{_gru_model_forward_padded.1} parent=1 // pred_fallthru
      _
    // Predicated region
    $region6: #{_gru_model_forward_padded.1} parent=1 // pred_check
      _
    $region7: #{_gru_model_forward_padded.1} parent=1 // pred_check_branch
      %25 = sbr.rel (0) target = $region9
    $region8: #{_gru_model_forward_padded.1} parent=1 // pred_region
      %s27 = ssub.s32 3072, 3072
      %28 = vsyncadd [#allocation5], %s27
      %s29 = sshll.u32 [#allocation4], 4
      %s30 = int_to_ptr.vmem [resolvable:$true] %s29
      %35 = dma.hbm_to_vmem [thread:$0]  %s1, 3072, %s30, [#allocation5], 192, 192, 12
    $region9: #{_gru_model_forward_padded.1} parent=1 // pred_fallthru
      _
    // Predicated region
    $region10: #{_gru_model_forward_padded.1} parent=1 // pred_check
      _
    $region11: #{_gru_model_forward_padded.1} parent=1 // pred_check_branch
      %37 = sbr.rel (0) target = $region13
    $region12: #{_gru_model_forward_padded.1} parent=1 // pred_region
      %s39 = ssub.s32 3072, 3072
      %40 = vsyncadd [#allocation8], %s39
      %s41 = sshll.u32 [#allocation7], 4
      %s42 = int_to_ptr.vmem [resolvable:$true] %s41
      %47 = dma.hbm_to_vmem [thread:$0]  %s2, 3072, %s42, [#allocation8], 192, 192, 12
    $region13: #{_gru_model_forward_padded.1} parent=1 // pred_fallthru
      _
    // Predicated region
    $region14: #{_gru_model_forward_padded.1} parent=1 // pred_check
      _
    $region15: #{_gru_model_forward_padded.1} parent=1 // pred_check_branch
      %49 = sbr.rel (0) target = $region17
    $region16: #{_gru_model_forward_padded.1} parent=1 // pred_region
      _
    $region17: #{_gru_model_forward_padded.1} parent=1 // pred_fallthru
      _
    // Predicated region
    $region18: #{_gru_model_forward_padded.1} parent=1 // pred_check
      _
    $region19: #{_gru_model_forward_padded.1} parent=1 // pred_check_branch
      %51 = sbr.rel (0) target = $region21
    $region20: #{_gru_model_forward_padded.1} parent=1 // pred_region
      _
    $region21: #{_gru_model_forward_padded.1} parent=1 // pred_fallthru
      _
    // Predicated region
    $region22: #{_gru_model_forward_padded.1} parent=1 // pred_check
      _
    $region23: #{_gru_model_forward_padded.1} parent=1 // pred_check_branch
      %53 = sbr.rel (0) target = $region25
    $region24: #{_gru_model_forward_padded.1} parent=1 // pred_region
      %s55 = ssub.s32 3072, 3072
      %56 = vsyncadd [#allocation8], %s55
      %s57 = sshll.u32 [#allocation9], 4
      %s58 = int_to_ptr.vmem [resolvable:$true] %s57
      %63 = dma.hbm_to_vmem [thread:$0]  %s5, 3072, %s58, [#allocation8], 192, 192, 12
    $region25: #{_gru_model_forward_padded.1} parent=1 // pred_fallthru
      _
    // Predicated region
    $region26: #{_gru_model_forward_padded.1} parent=1 // pred_check
      _
    $region27: #{_gru_model_forward_padded.1} parent=1 // pred_check_branch
      %65 = sbr.rel (0) target = $region29
    $region28: #{_gru_model_forward_padded.1} parent=1 // pred_region
      %s67 = ssub.s32 3072, 3072
      %68 = vsyncadd [#allocation11], %s67
      %s69 = sshll.u32 [#allocation10], 4
      %s70 = int_to_ptr.vmem [resolvable:$true] %s69
      %75 = dma.hbm_to_vmem [thread:$0]  %s6, 3072, %s70, [#allocation11], 192, 192, 12
    $region29: #{_gru_model_forward_padded.1} parent=1 // pred_fallthru
      _
    // Predicated region
    $region30: #{_gru_model_forward_padded.1} parent=1 // pred_check
      _
    $region31: #{_gru_model_forward_padded.1} parent=1 // pred_check_branch
      %77 = sbr.rel (0) target = $region33
    $region32: #{_gru_model_forward_padded.1} parent=1 // pred_region
      _
    $region33: #{_gru_model_forward_padded.1} parent=1 // pred_fallthru
      _
    // Predicated region
    $region34: #{_gru_model_forward_padded.1} parent=1 // pred_check
      _
    $region35: #{_gru_model_forward_padded.1} parent=1 // pred_check_branch
      %79 = sbr.rel (0) target = $region37
    $region36: #{_gru_model_forward_padded.1} parent=1 // pred_region
      _
    $region37: #{_gru_model_forward_padded.1} parent=1 // pred_fallthru
      _
    // Predicated region
    $region38: #{_gru_model_forward_padded.1} parent=1 // pred_check
      _
    $region39: #{_gru_model_forward_padded.1} parent=1 // pred_check_branch
      %81 = sbr.rel (0) target = $region41
    $region40: #{_gru_model_forward_padded.1} parent=1 // pred_region
      _
    $region41: #{_gru_model_forward_padded.1} parent=1 // pred_fallthru
      _
    // Predicated region
    $region42: #{_gru_model_forward_padded.1} parent=1 // pred_check
      _
    $region43: #{_gru_model_forward_padded.1} parent=1 // pred_check_branch
      %83 = sbr.rel (0) target = $region45
    $region44: #{_gru_model_forward_padded.1} parent=1 // pred_region
      _
    $region45: #{_gru_model_forward_padded.1} parent=1 // pred_fallthru
      _
    // Predicated region
    $region46: #{_gru_model_forward_padded.1} parent=1 // pred_check
      _
    $region47: #{_gru_model_forward_padded.1} parent=1 // pred_check_branch
      %85 = sbr.rel (0) target = $region49
    $region48: #{_gru_model_forward_padded.1} parent=1 // pred_region
      %s87 = ssub.s32 1024, 1024
      %88 = vsyncadd [#allocation11], %s87
      %s89 = sshll.u32 [#allocation12], 4
      %s90 = int_to_ptr.vmem [resolvable:$true] %s89
      %95 = dma.hbm_to_vmem [thread:$0]  %s11, 1024, %s90, [#allocation11], 64, 64, 4
    $region49: #{_gru_model_forward_padded.1} parent=1 // pred_fallthru
      _
    // Predicated region
    $region50: #{_gru_model_forward_padded.1} parent=1 // pred_check
      _
    $region51: #{_gru_model_forward_padded.1} parent=1 // pred_check_branch
      %97 = sbr.rel (0) target = $region53
    $region52: #{_gru_model_forward_padded.1} parent=1 // pred_region
      _
    $region53: #{_gru_model_forward_padded.1} parent=1 // pred_fallthru
      _
    // Predicated region
    $region54: #{_gru_model_forward_padded.1} parent=1 // pred_check
      _
    $region55: #{_gru_model_forward_padded.1} parent=1 // pred_check_branch
      %99 = sbr.rel (0) target = $region57
    $region56: #{_gru_model_forward_padded.1} parent=1 // pred_region
      %100 = dma.done [#allocation5], 3072
    $region57: #{_gru_model_forward_padded.1} parent=1 // pred_fallthru
      _
    // Predicated region
    $region58: #{_gru_model_forward_padded.1} parent=1 // pred_check
      _
    $region59: #{_gru_model_forward_padded.1} parent=1 // pred_check_branch
      %102 = sbr.rel (0) target = $region61
    $region60: #{_gru_model_forward_padded.1} parent=1 // pred_region
      %103 = dma.done [#allocation8], 3072
    $region61: #{_gru_model_forward_padded.1} parent=1 // pred_fallthru
      _
    // Predicated region
    $region62: #{_gru_model_forward_padded.1} parent=1 // pred_check
      _
    $region63: #{_gru_model_forward_padded.1} parent=1 // pred_check_branch
      %105 = sbr.rel (0) target = $region65
    $region64: #{_gru_model_forward_padded.1} parent=1 // pred_region
      %106 = dma.done [#allocation8], 3072
    $region65: #{_gru_model_forward_padded.1} parent=1 // pred_fallthru
      _
    // Predicated region
    $region66: #{_gru_model_forward_padded.1} parent=1 // pred_check
      _
    $region67: #{_gru_model_forward_padded.1} parent=1 // pred_check_branch
      %108 = sbr.rel (0) target = $region69
    $region68: #{_gru_model_forward_padded.1} parent=1 // pred_region
      %109 = dma.done [#allocation11], 3072
    $region69: #{_gru_model_forward_padded.1} parent=1 // pred_fallthru
      _
    // Predicated region
    $region70: #{_gru_model_forward_padded.1} parent=1 // pred_check
      _
    $region71: #{_gru_model_forward_padded.1} parent=1 // pred_check_branch
      %111 = sbr.rel (0) target = $region73
    $region72: #{_gru_model_forward_padded.1} parent=1 // pred_region
      %112 = dma.done [#allocation11], 1024
    $region73: #{_gru_model_forward_padded.1} parent=1 // pred_fallthru
      _
    %v114 = vld [vmem:[%s0] sm:$0xff]
    %v115 = vld [vmem:[%s0 + $0x8] sm:$0xff]
    %v116 = vld [vmem:[%s0 + $0x10] sm:$0xff]
    %v117 = vld [vmem:[%s0 + $0x18] sm:$0xff]
    %v118 = vld [vmem:[%s0 + $0x20] sm:$0xff]
    %v119 = vld [vmem:[%s0 + $0x28] sm:$0xff]
    %v120 = vld [vmem:[%s0 + $0x30] sm:$0xff]
    %v121 = vld [vmem:[%s0 + $0x38] sm:$0xff]
    %v122 = vpack.c.bf16 %v114, %v114
    %v123 = vpack.c.bf16 %v115, %v115
    %v124 = vpack.c.bf16 %v116, %v116
    %v125 = vpack.c.bf16 %v117, %v117
    %v126 = vpack.c.bf16 %v118, %v118
    %v127 = vpack.c.bf16 %v119, %v119
    %v128 = vpack.c.bf16 %v120, %v120
    %v129 = vpack.c.bf16 %v121, %v121
    %v130 = vld [vmem:[#allocation4] sm:$0xff]
    %v131 = vld [vmem:[#allocation4 + $0x8] sm:$0xf]
    %v132 = vld [vmem:[#allocation4 + $0xc] sm:$0xff]
    %v133 = vld [vmem:[#allocation4 + $0x14] sm:$0xf]
    %v134 = vld [vmem:[#allocation4 + $0x18] sm:$0xff]
    %v135 = vld [vmem:[#allocation4 + $0x20] sm:$0xf]
    %v136 = vld [vmem:[#allocation4 + $0x24] sm:$0xff]
    %v137 = vld [vmem:[#allocation4 + $0x2c] sm:$0xf]
    %v138 = vld [vmem:[#allocation4 + $0x30] sm:$0xff]
    %v139 = vld [vmem:[#allocation4 + $0x38] sm:$0xf]
    %v140 = vld [vmem:[#allocation4 + $0x3c] sm:$0xff]
    %v141 = vld [vmem:[#allocation4 + $0x44] sm:$0xf]
    %v142 = vld [vmem:[#allocation4 + $0x48] sm:$0xff]
    %v143 = vld [vmem:[#allocation4 + $0x50] sm:$0xf]
    %v144 = vld [vmem:[#allocation4 + $0x54] sm:$0xff]
    %v145 = vld [vmem:[#allocation4 + $0x5c] sm:$0xf]
    %v146 = vld [vmem:[#allocation4 + $0x60] sm:$0xff]
    %v147 = vld [vmem:[#allocation4 + $0x68] sm:$0xf]
    %v148 = vld [vmem:[#allocation4 + $0x6c] sm:$0xff]
    %v149 = vld [vmem:[#allocation4 + $0x74] sm:$0xf]
    %v150 = vld [vmem:[#allocation4 + $0x78] sm:$0xff]
    %v151 = vld [vmem:[#allocation4 + $0x80] sm:$0xf]
    %v152 = vld [vmem:[#allocation4 + $0x84] sm:$0xff]
    %v153 = vld [vmem:[#allocation4 + $0x8c] sm:$0xf]
    %v154 = vld [vmem:[#allocation4 + $0x90] sm:$0xff]
    %v155 = vld [vmem:[#allocation4 + $0x98] sm:$0xf]
    %v156 = vld [vmem:[#allocation4 + $0x9c] sm:$0xff]
    %v157 = vld [vmem:[#allocation4 + $0xa4] sm:$0xf]
    %v158 = vld [vmem:[#allocation4 + $0xa8] sm:$0xff]
    %v159 = vld [vmem:[#allocation4 + $0xb0] sm:$0xf]
    %v160 = vld [vmem:[#allocation4 + $0xb4] sm:$0xff]
    %v161 = vld [vmem:[#allocation4 + $0xbc] sm:$0xf]
    %v162 = vld [vmem:[%s3] sm:$0x7]
    %v164 = vlaneseq
    %v165 = vshrl.u32 %v164, 7
    %v166 = vsub.s32 0, %v165
    %v167 = vrot.slane %v162, %v166
    %v168 = vlaneseq
    %v169 = vshrl.u32 %v168, 7
    %v170 = vsub.s32 1, %v169
    %v171 = vrot.slane %v162, %v170
    %v172 = vlaneseq
    %v173 = vshrl.u32 %v172, 7
    %v174 = vsub.s32 2, %v173
    %v175 = vrot.slane %v162, %v174
    %v187 = vunpack.c.l.b16 %v122
    %v188 = vunpack.c.l.b16 %v123
    %v189 = vunpack.c.l.b16 %v124
    %v190 = vunpack.c.l.b16 %v125
    %v191 = vunpack.c.l.b16 %v126
    %v192 = vunpack.c.l.b16 %v127
    %v193 = vunpack.c.l.b16 %v128
    %v194 = vunpack.c.l.b16 %v129
    %v195 = vpack.c.b16 %v188, %v187
    %v196 = vpack.c.b16 %v190, %v189
    %v197 = vpack.c.b16 %v192, %v191
    %v198 = vpack.c.b16 %v194, %v193
    %v235 = vunpack.c.l.b16 %v130
    %v236 = vunpack.c.h.b16 %v130
    %v237 = vunpack.c.l.b16 %v131
    %v238 = vunpack.c.l.b16 %v132
    %v239 = vunpack.c.h.b16 %v132
    %v240 = vunpack.c.l.b16 %v133
    %v241 = vunpack.c.l.b16 %v134
    %v242 = vunpack.c.h.b16 %v134
    %v243 = vunpack.c.l.b16 %v135
    %v244 = vunpack.c.l.b16 %v136
    %v245 = vunpack.c.h.b16 %v136
    %v246 = vunpack.c.l.b16 %v137
    %v247 = vunpack.c.l.b16 %v138
    %v248 = vunpack.c.h.b16 %v138
    %v249 = vunpack.c.l.b16 %v139
    %v250 = vunpack.c.l.b16 %v140
    %v251 = vunpack.c.h.b16 %v140
    %v252 = vunpack.c.l.b16 %v141
    %v253 = vunpack.c.l.b16 %v142
    %v254 = vunpack.c.h.b16 %v142
    %v255 = vunpack.c.l.b16 %v143
    %v256 = vunpack.c.l.b16 %v144
    %v257 = vunpack.c.h.b16 %v144
    %v258 = vunpack.c.l.b16 %v145
    %v259 = vunpack.c.l.b16 %v146
    %v260 = vunpack.c.h.b16 %v146
    %v261 = vunpack.c.l.b16 %v147
    %v262 = vunpack.c.l.b16 %v148
    %v263 = vunpack.c.h.b16 %v148
    %v264 = vunpack.c.l.b16 %v149
    %v265 = vunpack.c.l.b16 %v150
    %v266 = vunpack.c.h.b16 %v150
    %v267 = vunpack.c.l.b16 %v151
    %v268 = vunpack.c.l.b16 %v152
    %v269 = vunpack.c.h.b16 %v152
    %v270 = vunpack.c.l.b16 %v153
    %v271 = vunpack.c.l.b16 %v154
    %v272 = vunpack.c.h.b16 %v154
    %v273 = vunpack.c.l.b16 %v155
    %v274 = vunpack.c.l.b16 %v156
    %v275 = vunpack.c.h.b16 %v156
    %v276 = vunpack.c.l.b16 %v157
    %v277 = vunpack.c.l.b16 %v158
    %v278 = vunpack.c.h.b16 %v158
    %v279 = vunpack.c.l.b16 %v159
    %v280 = vunpack.c.l.b16 %v160
    %v281 = vunpack.c.h.b16 %v160
    %v282 = vunpack.c.l.b16 %v161
    %v283 = vpack.c.b16 %v238, %v235
    %v284 = vpack.c.b16 %v239, %v236
    %v285 = vpack.c.b16 %v240, %v237
    %v286 = vpack.c.b16 %v244, %v241
    %v287 = vpack.c.b16 %v245, %v242
    %v288 = vpack.c.b16 %v246, %v243
    %v289 = vpack.c.b16 %v250, %v247
    %v290 = vpack.c.b16 %v251, %v248
    %v291 = vpack.c.b16 %v252, %v249
    %v292 = vpack.c.b16 %v256, %v253
    %v293 = vpack.c.b16 %v257, %v254
    %v294 = vpack.c.b16 %v258, %v255
    %v295 = vpack.c.b16 %v262, %v259
    %v296 = vpack.c.b16 %v263, %v260
    %v297 = vpack.c.b16 %v264, %v261
    %v298 = vpack.c.b16 %v268, %v265
    %v299 = vpack.c.b16 %v269, %v266
    %v300 = vpack.c.b16 %v270, %v267
    %v301 = vpack.c.b16 %v274, %v271
    %v302 = vpack.c.b16 %v275, %v272
    %v303 = vpack.c.b16 %v276, %v273
    %v304 = vpack.c.b16 %v280, %v277
    %v305 = vpack.c.b16 %v281, %v278
    %v306 = vpack.c.b16 %v282, %v279
    %331 = vmatprep.subr.bf16.mxu0 %v284
    %332 = vmatpush1.bf16.msra.mxu0 %v283
    %333 = vmatprep.subr.bf16.mxu0 %v287
    %334 = vmatpush1.bf16.msra.mxu0 %v286
    %335 = vmatprep.subr.bf16.mxu0 %v290
    %336 = vmatpush1.bf16.msra.mxu0 %v289
    %337 = vmatprep.subr.bf16.mxu0 %v293
    %338 = vmatpush1.bf16.msra.mxu0 %v292
    %339 = vmatprep.subr.bf16.mxu0 %v296
    %340 = vmatpush1.bf16.msra.mxu0 %v295
    %341 = vmatprep.subr.bf16.mxu0 %v299
    %342 = vmatpush1.bf16.msra.mxu0 %v298
    %343 = vmatprep.subr.bf16.mxu0 %v302
    %344 = vmatpush1.bf16.msra.mxu0 %v301
    %345 = vmatprep.subr.bf16.mxu0 %v305
    %346 = vmatpush1.bf16.msra.mxu0 %v304
    %347 = vmatprep.subr.bf16.mxu0 0
    %348 = vmatpush1.bf16.msra.mxu0 0
    %349 = vmatprep.subr.bf16.mxu0 0
    %350 = vmatpush1.bf16.msra.mxu0 0
    %351 = vmatprep.subr.bf16.mxu0 0
    %352 = vmatpush1.bf16.msra.mxu0 0
    %353 = vmatprep.subr.bf16.mxu0 0
    %354 = vmatpush1.bf16.msra.mxu0 0
    %355 = vmatprep.subr.bf16.mxu0 0
    %356 = vmatpush1.bf16.msra.mxu0 0
    %357 = vmatprep.subr.bf16.mxu0 0
    %358 = vmatpush1.bf16.msra.mxu0 0
    %359 = vmatprep.subr.bf16.mxu0 0
    %360 = vmatpush1.bf16.msra.mxu0 0
    %361 = vmatprep.subr.bf16.mxu0 0
    %362 = vmatpush1.bf16.msra.mxu0 0
    %363 = vmatprep.mubr.bf16.mxu0 0
    %364 = vmatmul.mubr.bf16.gmra.mrb[0].mxu0 %v195
    %v365 = vpop.f32.mrb[0].mxu0
    %v366 = vadd.f32 %v167, %v365
    %v367 = vpop.f32.mrb[0].mxu0
    %v368 = vadd.f32 %v171, %v367
    %v369 = vpop.f32.mrb[0].mxu0
    %v370 = vadd.f32 %v167, %v369
    %v371 = vpop.f32.mrb[0].mxu0
    %v372 = vadd.f32 %v171, %v371
    %373 = vmatprep.mubr.bf16.mxu0 0
    %374 = vmatmul.mubr.bf16.gmra.mrb[0].mxu0 %v196
    %v375 = vpop.f32.mrb[0].mxu0
    %v376 = vadd.f32 %v167, %v375
    %v377 = vpop.f32.mrb[0].mxu0
    %v378 = vadd.f32 %v171, %v377
    %v379 = vpop.f32.mrb[0].mxu0
    %v380 = vadd.f32 %v167, %v379
    %v381 = vpop.f32.mrb[0].mxu0
    %v382 = vadd.f32 %v171, %v381
    %383 = vmatprep.mubr.bf16.mxu0 0
    %384 = vmatmul.mubr.bf16.gmra.mrb[0].mxu0 %v197
    %v385 = vpop.f32.mrb[0].mxu0
    %v386 = vadd.f32 %v167, %v385
    %v387 = vpop.f32.mrb[0].mxu0
    %v388 = vadd.f32 %v171, %v387
    %v389 = vpop.f32.mrb[0].mxu0
    %v390 = vadd.f32 %v167, %v389
    %v391 = vpop.f32.mrb[0].mxu0
    %v392 = vadd.f32 %v171, %v391
    %393 = vmatprep.mubr.bf16.mxu0 0
    %394 = vmatmul.mubr.bf16.gmra.mrb[0].mxu0 %v198
    %v395 = vpop.f32.mrb[0].mxu0
    %v396 = vadd.f32 %v167, %v395
    %v397 = vpop.f32.mrb[0].mxu0
    %v398 = vadd.f32 %v171, %v397
    %v399 = vpop.f32.mrb[0].mxu0
    %v400 = vadd.f32 %v167, %v399
    %v401 = vpop.f32.mrb[0].mxu0
    %v402 = vadd.f32 %v171, %v401
    %403 = vdwg.mxu0
    %404 = vmatprep.subr.bf16.mxu0 0
    %405 = vmatpush1.bf16.msra.mxu0 %v285
    %406 = vmatprep.subr.bf16.mxu0 0
    %407 = vmatpush1.bf16.msra.mxu0 %v288
    %408 = vmatprep.subr.bf16.mxu0 0
    %409 = vmatpush1.bf16.msra.mxu0 %v291
    %410 = vmatprep.subr.bf16.mxu0 0
    %411 = vmatpush1.bf16.msra.mxu0 %v294
    %412 = vmatprep.subr.bf16.mxu0 0
    %413 = vmatpush1.bf16.msra.mxu0 %v297
    %414 = vmatprep.subr.bf16.mxu0 0
    %415 = vmatpush1.bf16.msra.mxu0 %v300
    %416 = vmatprep.subr.bf16.mxu0 0
    %417 = vmatpush1.bf16.msra.mxu0 %v303
    %418 = vmatprep.subr.bf16.mxu0 0
    %419 = vmatpush1.bf16.msra.mxu0 %v306
    %420 = vmatprep.subr.bf16.mxu0 0
    %421 = vmatpush1.bf16.msra.mxu0 0
    %422 = vmatprep.subr.bf16.mxu0 0
    %423 = vmatpush1.bf16.msra.mxu0 0
    %424 = vmatprep.subr.bf16.mxu0 0
    %425 = vmatpush1.bf16.msra.mxu0 0
    %426 = vmatprep.subr.bf16.mxu0 0
    %427 = vmatpush1.bf16.msra.mxu0 0
    %428 = vmatprep.subr.bf16.mxu0 0
    %429 = vmatpush1.bf16.msra.mxu0 0
    %430 = vmatprep.subr.bf16.mxu0 0
    %431 = vmatpush1.bf16.msra.mxu0 0
    %432 = vmatprep.subr.bf16.mxu0 0
    %433 = vmatpush1.bf16.msra.mxu0 0
    %434 = vmatprep.subr.bf16.mxu0 0
    %435 = vmatpush1.bf16.msra.mxu0 0
    %436 = vmatprep.mubr.bf16.mxu0 0
    %437 = vmatmul.mubr.bf16.gmra.mrb[0].mxu0 %v195
    %v438 = vpop.f32.mrb[0].mxu0
    %v439 = vadd.f32 %v175, %v438
    %v440 = vpop.f32.mrb[0].mxu0
    %v441 = vpop.f32.mrb[0].mxu0
    %v442 = vadd.f32 %v175, %v441
    %v443 = vpop.f32.mrb[0].mxu0
    %444 = vmatprep.mubr.bf16.mxu0 0
    %445 = vmatmul.mubr.bf16.gmra.mrb[0].mxu0 %v196
    %v446 = vpop.f32.mrb[0].mxu0
    %v447 = vadd.f32 %v175, %v446
    %v448 = vpop.f32.mrb[0].mxu0
    %v449 = vpop.f32.mrb[0].mxu0
    %v450 = vadd.f32 %v175, %v449
    %v451 = vpop.f32.mrb[0].mxu0
    %452 = vmatprep.mubr.bf16.mxu0 0
    %453 = vmatmul.mubr.bf16.gmra.mrb[0].mxu0 %v197
    %v454 = vpop.f32.mrb[0].mxu0
    %v455 = vadd.f32 %v175, %v454
    %v456 = vpop.f32.mrb[0].mxu0
    %v457 = vpop.f32.mrb[0].mxu0
    %v458 = vadd.f32 %v175, %v457
    %v459 = vpop.f32.mrb[0].mxu0
    %460 = vmatprep.mubr.bf16.mxu0 0
    %461 = vmatmul.mubr.bf16.gmra.mrb[0].mxu0 %v198
    %v462 = vpop.f32.mrb[0].mxu0
    %v463 = vadd.f32 %v175, %v462
    %v464 = vpop.f32.mrb[0].mxu0
    %v465 = vpop.f32.mrb[0].mxu0
    %v466 = vadd.f32 %v175, %v465
    %v467 = vpop.f32.mrb[0].mxu0
    %468 = vdwg.mxu0
    %469 = vst [vmem:[#allocation2] sm:$0xff] %v366
    %470 = vst [vmem:[#allocation2 + $0x8] sm:$0xff] %v368
    %471 = vst [vmem:[#allocation2 + $0x10] sm:$0xff] %v439
    %472 = vst [vmem:[#allocation2 + $0x18] sm:$0xff] %v370
    %473 = vst [vmem:[#allocation2 + $0x20] sm:$0xff] %v372
    %474 = vst [vmem:[#allocation2 + $0x28] sm:$0xff] %v442
    %475 = vst [vmem:[#allocation2 + $0x30] sm:$0xff] %v376
    %476 = vst [vmem:[#allocation2 + $0x38] sm:$0xff] %v378
    %477 = vst [vmem:[#allocation2 + $0x40] sm:$0xff] %v447
    %478 = vst [vmem:[#allocation2 + $0x48] sm:$0xff] %v380
    %479 = vst [vmem:[#allocation2 + $0x50] sm:$0xff] %v382
    %480 = vst [vmem:[#allocation2 + $0x58] sm:$0xff] %v450
    %481 = vst [vmem:[#allocation2 + $0x60] sm:$0xff] %v386
    %482 = vst [vmem:[#allocation2 + $0x68] sm:$0xff] %v388
    %483 = vst [vmem:[#allocation2 + $0x70] sm:$0xff] %v455
    %484 = vst [vmem:[#allocation2 + $0x78] sm:$0xff] %v390
    %485 = vst [vmem:[#allocation2 + $0x80] sm:$0xff] %v392
    %486 = vst [vmem:[#allocation2 + $0x88] sm:$0xff] %v458
    %487 = vst [vmem:[#allocation2 + $0x90] sm:$0xff] %v396
    %488 = vst [vmem:[#allocation2 + $0x98] sm:$0xff] %v398
    %489 = vst [vmem:[#allocation2 + $0xa0] sm:$0xff] %v463
    %490 = vst [vmem:[#allocation2 + $0xa8] sm:$0xff] %v400
    %491 = vst [vmem:[#allocation2 + $0xb0] sm:$0xff] %v402
    %492 = vst [vmem:[#allocation2 + $0xb8] sm:$0xff] %v466
    %v493 = vld [vmem:[#allocation7] sm:$0xff]
    %v494 = vld [vmem:[#allocation7 + $0x8] sm:$0xf]
    %v495 = vld [vmem:[#allocation7 + $0xc] sm:$0xff]
    %v496 = vld [vmem:[#allocation7 + $0x14] sm:$0xf]
    %v497 = vld [vmem:[#allocation7 + $0x18] sm:$0xff]
    %v498 = vld [vmem:[#allocation7 + $0x20] sm:$0xf]
    %v499 = vld [vmem:[#allocation7 + $0x24] sm:$0xff]
    %v500 = vld [vmem:[#allocation7 + $0x2c] sm:$0xf]
    %v501 = vld [vmem:[#allocation7 + $0x30] sm:$0xff]
    %v502 = vld [vmem:[#allocation7 + $0x38] sm:$0xf]
    %v503 = vld [vmem:[#allocation7 + $0x3c] sm:$0xff]
    %v504 = vld [vmem:[#allocation7 + $0x44] sm:$0xf]
    %v505 = vld [vmem:[#allocation7 + $0x48] sm:$0xff]
    %v506 = vld [vmem:[#allocation7 + $0x50] sm:$0xf]
    %v507 = vld [vmem:[#allocation7 + $0x54] sm:$0xff]
    %v508 = vld [vmem:[#allocation7 + $0x5c] sm:$0xf]
    %v509 = vld [vmem:[#allocation7 + $0x60] sm:$0xff]
    %v510 = vld [vmem:[#allocation7 + $0x68] sm:$0xf]
    %v511 = vld [vmem:[#allocation7 + $0x6c] sm:$0xff]
    %v512 = vld [vmem:[#allocation7 + $0x74] sm:$0xf]
    %v513 = vld [vmem:[#allocation7 + $0x78] sm:$0xff]
    %v514 = vld [vmem:[#allocation7 + $0x80] sm:$0xf]
    %v515 = vld [vmem:[#allocation7 + $0x84] sm:$0xff]
    %v516 = vld [vmem:[#allocation7 + $0x8c] sm:$0xf]
    %v517 = vld [vmem:[#allocation7 + $0x90] sm:$0xff]
    %v518 = vld [vmem:[#allocation7 + $0x98] sm:$0xf]
    %v519 = vld [vmem:[#allocation7 + $0x9c] sm:$0xff]
    %v520 = vld [vmem:[#allocation7 + $0xa4] sm:$0xf]
    %v521 = vld [vmem:[#allocation7 + $0xa8] sm:$0xff]
    %v522 = vld [vmem:[#allocation7 + $0xb0] sm:$0xf]
    %v523 = vld [vmem:[#allocation7 + $0xb4] sm:$0xff]
    %v524 = vld [vmem:[#allocation7 + $0xbc] sm:$0xf]
    %v525 = vld [vmem:[%s4] sm:$0x1]
    %v526 = vld [vmem:[#allocation2] sm:$0xff]
    %v527 = vld [vmem:[#allocation2 + $0x8] sm:$0xff]
    %v528 = vld [vmem:[#allocation2 + $0x10] sm:$0xff]
    %v561 = vunpack.c.l.b16 %v493
    %v562 = vunpack.c.h.b16 %v493
    %v563 = vunpack.c.l.b16 %v494
    %v564 = vunpack.c.l.b16 %v495
    %v565 = vunpack.c.h.b16 %v495
    %v566 = vunpack.c.l.b16 %v496
    %v567 = vunpack.c.l.b16 %v497
    %v568 = vunpack.c.h.b16 %v497
    %v569 = vunpack.c.l.b16 %v498
    %v570 = vunpack.c.l.b16 %v499
    %v571 = vunpack.c.h.b16 %v499
    %v572 = vunpack.c.l.b16 %v500
    %v573 = vunpack.c.l.b16 %v501
    %v574 = vunpack.c.h.b16 %v501
    %v575 = vunpack.c.l.b16 %v502
    %v576 = vunpack.c.l.b16 %v503
    %v577 = vunpack.c.h.b16 %v503
    %v578 = vunpack.c.l.b16 %v504
    %v579 = vunpack.c.l.b16 %v505
    %v580 = vunpack.c.h.b16 %v505
    %v581 = vunpack.c.l.b16 %v506
    %v582 = vunpack.c.l.b16 %v507
    %v583 = vunpack.c.h.b16 %v507
    %v584 = vunpack.c.l.b16 %v508
    %v585 = vunpack.c.l.b16 %v509
    %v586 = vunpack.c.h.b16 %v509
    %v587 = vunpack.c.l.b16 %v510
    %v588 = vunpack.c.l.b16 %v511
    %v589 = vunpack.c.h.b16 %v511
    %v590 = vunpack.c.l.b16 %v512
    %v591 = vunpack.c.l.b16 %v513
    %v592 = vunpack.c.h.b16 %v513
    %v593 = vunpack.c.l.b16 %v514
    %v594 = vunpack.c.l.b16 %v515
    %v595 = vunpack.c.h.b16 %v515
    %v596 = vunpack.c.l.b16 %v516
    %v597 = vunpack.c.l.b16 %v517
    %v598 = vunpack.c.h.b16 %v517
    %v599 = vunpack.c.l.b16 %v518
    %v600 = vunpack.c.l.b16 %v519
    %v601 = vunpack.c.h.b16 %v519
    %v602 = vunpack.c.l.b16 %v520
    %v603 = vunpack.c.l.b16 %v521
    %v604 = vunpack.c.h.b16 %v521
    %v605 = vunpack.c.l.b16 %v522
    %v606 = vunpack.c.l.b16 %v523
    %v607 = vunpack.c.h.b16 %v523
    %v608 = vunpack.c.l.b16 %v524
    %v609 = vpack.c.b16 %v564, %v561
    %v610 = vpack.c.b16 %v565, %v562
    %v611 = vpack.c.b16 %v566, %v563
    %v612 = vpack.c.b16 %v570, %v567
    %v613 = vpack.c.b16 %v571, %v568
    %v614 = vpack.c.b16 %v572, %v569
    %v615 = vpack.c.b16 %v576, %v573
    %v616 = vpack.c.b16 %v577, %v574
    %v617 = vpack.c.b16 %v578, %v575
    %v618 = vpack.c.b16 %v582, %v579
    %v619 = vpack.c.b16 %v583, %v580
    %v620 = vpack.c.b16 %v584, %v581
    %v621 = vpack.c.b16 %v588, %v585
    %v622 = vpack.c.b16 %v589, %v586
    %v623 = vpack.c.b16 %v590, %v587
    %v624 = vpack.c.b16 %v594, %v591
    %v625 = vpack.c.b16 %v595, %v592
    %v626 = vpack.c.b16 %v596, %v593
    %v627 = vpack.c.b16 %v600, %v597
    %v628 = vpack.c.b16 %v601, %v598
    %v629 = vpack.c.b16 %v602, %v599
    %v630 = vpack.c.b16 %v606, %v603
    %v631 = vpack.c.b16 %v607, %v604
    %v632 = vpack.c.b16 %v608, %v605
    %657 = vmatprep.subr.bf16.mxu0 %v610
    %658 = vmatpush1.bf16.msra.mxu0 %v609
    %659 = vmatprep.subr.bf16.mxu0 %v613
    %660 = vmatpush1.bf16.msra.mxu0 %v612
    %661 = vmatprep.subr.bf16.mxu0 %v616
    %662 = vmatpush1.bf16.msra.mxu0 %v615
    %663 = vmatprep.subr.bf16.mxu0 %v619
    %664 = vmatpush1.bf16.msra.mxu0 %v618
    %665 = vmatprep.subr.bf16.mxu0 %v622
    %666 = vmatpush1.bf16.msra.mxu0 %v621
    %667 = vmatprep.subr.bf16.mxu0 %v625
    %668 = vmatpush1.bf16.msra.mxu0 %v624
    %669 = vmatprep.subr.bf16.mxu0 %v628
    %670 = vmatpush1.bf16.msra.mxu0 %v627
    %671 = vmatprep.subr.bf16.mxu0 %v631
    %672 = vmatpush1.bf16.msra.mxu0 %v630
    %673 = vmatprep.subr.bf16.mxu0 0
    %674 = vmatpush1.bf16.msra.mxu0 0
    %675 = vmatprep.subr.bf16.mxu0 0
    %676 = vmatpush1.bf16.msra.mxu0 0
    %677 = vmatprep.subr.bf16.mxu0 0
    %678 = vmatpush1.bf16.msra.mxu0 0
    %679 = vmatprep.subr.bf16.mxu0 0
    %680 = vmatpush1.bf16.msra.mxu0 0
    %681 = vmatprep.subr.bf16.mxu0 0
    %682 = vmatpush1.bf16.msra.mxu0 0
    %683 = vmatprep.subr.bf16.mxu0 0
    %684 = vmatpush1.bf16.msra.mxu0 0
    %685 = vmatprep.subr.bf16.mxu0 0
    %686 = vmatpush1.bf16.msra.mxu0 0
    %687 = vmatprep.subr.bf16.mxu0 0
    %688 = vmatpush1.bf16.msra.mxu0 0
    %689 = vmatprep.mubr.bf16.mxu0 0
    %690 = vmatmul.mubr.bf16.gmra.mrb[0].mxu0 0
    %v691 = vpop.f32.mrb[0].mxu0
    %v692 = vadd.f32 0.0, %v691
    %v693 = vpop.f32.mrb[0].mxu0
    %v694 = vadd.f32 0.0, %v693
    %v695 = vpop.f32.mrb[0].mxu0
    %v696 = vpop.f32.mrb[0].mxu0
    %697 = vdwg.mxu0
    %698 = vmatprep.subr.bf16.mxu0 0
    %699 = vmatpush1.bf16.msra.mxu0 %v611
    %700 = vmatprep.subr.bf16.mxu0 0
    %701 = vmatpush1.bf16.msra.mxu0 %v614
    %702 = vmatprep.subr.bf16.mxu0 0
    %703 = vmatpush1.bf16.msra.mxu0 %v617
    %704 = vmatprep.subr.bf16.mxu0 0
    %705 = vmatpush1.bf16.msra.mxu0 %v620
    %706 = vmatprep.subr.bf16.mxu0 0
    %707 = vmatpush1.bf16.msra.mxu0 %v623
    %708 = vmatprep.subr.bf16.mxu0 0
    %709 = vmatpush1.bf16.msra.mxu0 %v626
    %710 = vmatprep.subr.bf16.mxu0 0
    %711 = vmatpush1.bf16.msra.mxu0 %v629
    %712 = vmatprep.subr.bf16.mxu0 0
    %713 = vmatpush1.bf16.msra.mxu0 %v632
    %714 = vmatprep.subr.bf16.mxu0 0
    %715 = vmatpush1.bf16.msra.mxu0 0
    %716 = vmatprep.subr.bf16.mxu0 0
    %717 = vmatpush1.bf16.msra.mxu0 0
    %718 = vmatprep.subr.bf16.mxu0 0
    %719 = vmatpush1.bf16.msra.mxu0 0
    %720 = vmatprep.subr.bf16.mxu0 0
    %721 = vmatpush1.bf16.msra.mxu0 0
    %722 = vmatprep.subr.bf16.mxu0 0
    %723 = vmatpush1.bf16.msra.mxu0 0
    %724 = vmatprep.subr.bf16.mxu0 0
    %725 = vmatpush1.bf16.msra.mxu0 0
    %726 = vmatprep.subr.bf16.mxu0 0
    %727 = vmatpush1.bf16.msra.mxu0 0
    %728 = vmatprep.subr.bf16.mxu0 0
    %729 = vmatpush1.bf16.msra.mxu0 0
    %730 = vmatprep.mubr.bf16.mxu0 0
    %731 = vmatmul.mubr.bf16.gmra.mrb[0].mxu0 0
    %v732 = vpop.f32.mrb[0].mxu0
    %v733 = vadd.f32 0.0, %v732
    %v734 = vpop.f32.mrb[0].mxu0
    %v735 = vpop.f32.mrb[0].mxu0
    %v736 = vpop.f32.mrb[0].mxu0
    %737 = vdwg.mxu0
    %v738 = vadd.f32 %v526, %v692
    %v739 = vxor.u32 %v738, 2147483648
    %v740 = vmul.f32 %v739, 1.442695
    %v741 = vpow.pop %v740
    %v742 = vadd.f32 %v741, 1.0
    %v743 = vrcp.pop %v742
    %v744 = vmul.f32 1.0, %v743
    %v745 = vadd.f32 %v527, %v694
    %v746 = vxor.u32 %v745, 2147483648
    %v747 = vmul.f32 %v746, 1.442695
    %v748 = vpow.pop %v747
    %v749 = vadd.f32 %v748, 1.0
    %v750 = vrcp.pop %v749
    %v751 = vmul.f32 1.0, %v750
    %v753 = vlaneseq
    %v754 = vshrl.u32 %v753, 7
    %v755 = vsub.s32 0, %v754
    %v756 = vrot.slane %v525, %v755
    %v758 = vadd.f32 %v733, %v756
    %v759 = vmul.f32 %v744, %v758
    %v760 = vadd.f32 %v528, %v759
    %v761 = vtanh.pop %v760
    %v762 = vsub.f32 1.0, %v751
    %v763 = vmul.f32 %v762, %v761
    %v764 = vmul.f32 %v751, 0.0
    %v765 = vadd.f32 %v763, %v764
    %v766 = vpack.c.bf16 %v765, %v765
    %767 = vst [vmem:[#allocation3] sm:$0xf] %v766
    %s768 = scalar_lea.vmem [#allocation2], 24
    %v769 = vld [vmem:[%s768] sm:$0xff]
    %v770 = vld [vmem:[%s768 + $0x8] sm:$0xff]
    %v771 = vld [vmem:[%s768 + $0x10] sm:$0xff]
    %772 = vmatprep.subr.bf16.mxu0 %v610
    %773 = vmatpush1.bf16.msra.mxu0 %v609
    %774 = vmatprep.subr.bf16.mxu0 %v613
    %775 = vmatpush1.bf16.msra.mxu0 %v612
    %776 = vmatprep.subr.bf16.mxu0 %v616
    %777 = vmatpush1.bf16.msra.mxu0 %v615
    %778 = vmatprep.subr.bf16.mxu0 %v619
    %779 = vmatpush1.bf16.msra.mxu0 %v618
    %780 = vmatprep.subr.bf16.mxu0 %v622
    %781 = vmatpush1.bf16.msra.mxu0 %v621
    %782 = vmatprep.subr.bf16.mxu0 %v625
    %783 = vmatpush1.bf16.msra.mxu0 %v624
    %784 = vmatprep.subr.bf16.mxu0 %v628
    %785 = vmatpush1.bf16.msra.mxu0 %v627
    %786 = vmatprep.subr.bf16.mxu0 %v631
    %787 = vmatpush1.bf16.msra.mxu0 %v630
    %788 = vmatprep.subr.bf16.mxu0 0
    %789 = vmatpush1.bf16.msra.mxu0 0
    %790 = vmatprep.subr.bf16.mxu0 0
    %791 = vmatpush1.bf16.msra.mxu0 0
    %792 = vmatprep.subr.bf16.mxu0 0
    %793 = vmatpush1.bf16.msra.mxu0 0
    %794 = vmatprep.subr.bf16.mxu0 0
    %795 = vmatpush1.bf16.msra.mxu0 0
    %796 = vmatprep.subr.bf16.mxu0 0
    %797 = vmatpush1.bf16.msra.mxu0 0
    %798 = vmatprep.subr.bf16.mxu0 0
    %799 = vmatpush1.bf16.msra.mxu0 0
    %800 = vmatprep.subr.bf16.mxu0 0
    %801 = vmatpush1.bf16.msra.mxu0 0
    %802 = vmatprep.subr.bf16.mxu0 0
    %803 = vmatpush1.bf16.msra.mxu0 0
    %804 = vmatprep.mubr.bf16.mxu0 0
    %805 = vmatmul.mubr.bf16.gmra.mrb[0].mxu0 %v766
    %v806 = vpop.f32.mrb[0].mxu0
    %v807 = vadd.f32 0.0, %v806
    %v808 = vpop.f32.mrb[0].mxu0
    %v809 = vadd.f32 0.0, %v808
    %v810 = vpop.f32.mrb[0].mxu0
    %v811 = vpop.f32.mrb[0].mxu0
    %812 = vdwg.mxu0
    %813 = vmatprep.subr.bf16.mxu0 0
    %814 = vmatpush1.bf16.msra.mxu0 %v611
    %815 = vmatprep.subr.bf16.mxu0 0
    %816 = vmatpush1.bf16.msra.mxu0 %v614
    %817 = vmatprep.subr.bf16.mxu0 0
    %818 = vmatpush1.bf16.msra.mxu0 %v617
    %819 = vmatprep.subr.bf16.mxu0 0
    %820 = vmatpush1.bf16.msra.mxu0 %v620
    %821 = vmatprep.subr.bf16.mxu0 0
    %822 = vmatpush1.bf16.msra.mxu0 %v623
    %823 = vmatprep.subr.bf16.mxu0 0
    %824 = vmatpush1.bf16.msra.mxu0 %v626
    %825 = vmatprep.subr.bf16.mxu0 0
    %826 = vmatpush1.bf16.msra.mxu0 %v629
    %827 = vmatprep.subr.bf16.mxu0 0
    %828 = vmatpush1.bf16.msra.mxu0 %v632
    %829 = vmatprep.subr.bf16.mxu0 0
    %830 = vmatpush1.bf16.msra.mxu0 0
    %831 = vmatprep.subr.bf16.mxu0 0
    %832 = vmatpush1.bf16.msra.mxu0 0
    %833 = vmatprep.subr.bf16.mxu0 0
    %834 = vmatpush1.bf16.msra.mxu0 0
    %835 = vmatprep.subr.bf16.mxu0 0
    %836 = vmatpush1.bf16.msra.mxu0 0
    %837 = vmatprep.subr.bf16.mxu0 0
    %838 = vmatpush1.bf16.msra.mxu0 0
    %839 = vmatprep.subr.bf16.mxu0 0
    %840 = vmatpush1.bf16.msra.mxu0 0
    %841 = vmatprep.subr.bf16.mxu0 0
    %842 = vmatpush1.bf16.msra.mxu0 0
    %843 = vmatprep.subr.bf16.mxu0 0
    %844 = vmatpush1.bf16.msra.mxu0 0
    %845 = vmatprep.mubr.bf16.mxu0 0
    %846 = vmatmul.mubr.bf16.gmra.mrb[0].mxu0 %v766
    %v847 = vpop.f32.mrb[0].mxu0
    %v848 = vadd.f32 0.0, %v847
    %v849 = vpop.f32.mrb[0].mxu0
    %v850 = vpop.f32.mrb[0].mxu0
    %v851 = vpop.f32.mrb[0].mxu0
    %852 = vdwg.mxu0
    %v853 = vadd.f32 %v769, %v807
    %v854 = vxor.u32 %v853, 2147483648
    %v855 = vmul.f32 %v854, 1.442695
    %v856 = vpow.pop %v855
    %v857 = vadd.f32 %v856, 1.0
    %v858 = vrcp.pop %v857
    %v859 = vmul.f32 1.0, %v858
    %v860 = vadd.f32 %v770, %v809
    %v861 = vxor.u32 %v860, 2147483648
    %v862 = vmul.f32 %v861, 1.442695
    %v863 = vpow.pop %v862
    %v864 = vadd.f32 %v863, 1.0
    %v865 = vrcp.pop %v864
    %v866 = vmul.f32 1.0, %v865
    %v867 = vadd.f32 %v848, %v756
    %v868 = vmul.f32 %v859, %v867
    %v869 = vadd.f32 %v771, %v868
    %v870 = vtanh.pop %v869
    %v871 = vsub.f32 1.0, %v866
    %v872 = vmul.f32 %v871, %v870
    %v873 = vmul.f32 %v866, %v765
    %v874 = vadd.f32 %v872, %v873
    %v875 = vpack.c.bf16 %v874, %v874
    %s876 = scalar_lea.vmem [#allocation3], 4
    %877 = vst [vmem:[%s876] sm:$0xf] %v875
    %s878 = scalar_lea.vmem [#allocation2], 48
    %v879 = vld [vmem:[%s878] sm:$0xff]
    %v880 = vld [vmem:[%s878 + $0x8] sm:$0xff]
    %v881 = vld [vmem:[%s878 + $0x10] sm:$0xff]
    %882 = vmatprep.subr.bf16.mxu0 %v610
    %883 = vmatpush1.bf16.msra.mxu0 %v609
    %884 = vmatprep.subr.bf16.mxu0 %v613
    %885 = vmatpush1.bf16.msra.mxu0 %v612
    %886 = vmatprep.subr.bf16.mxu0 %v616
    %887 = vmatpush1.bf16.msra.mxu0 %v615
    %888 = vmatprep.subr.bf16.mxu0 %v619
    %889 = vmatpush1.bf16.msra.mxu0 %v618
    %890 = vmatprep.subr.bf16.mxu0 %v622
    %891 = vmatpush1.bf16.msra.mxu0 %v621
    %892 = vmatprep.subr.bf16.mxu0 %v625
    %893 = vmatpush1.bf16.msra.mxu0 %v624
    %894 = vmatprep.subr.bf16.mxu0 %v628
    %895 = vmatpush1.bf16.msra.mxu0 %v627
    %896 = vmatprep.subr.bf16.mxu0 %v631
    %897 = vmatpush1.bf16.msra.mxu0 %v630
    %898 = vmatprep.subr.bf16.mxu0 0
    %899 = vmatpush1.bf16.msra.mxu0 0
    %900 = vmatprep.subr.bf16.mxu0 0
    %901 = vmatpush1.bf16.msra.mxu0 0
    %902 = vmatprep.subr.bf16.mxu0 0
    %903 = vmatpush1.bf16.msra.mxu0 0
    %904 = vmatprep.subr.bf16.mxu0 0
    %905 = vmatpush1.bf16.msra.mxu0 0
    %906 = vmatprep.subr.bf16.mxu0 0
    %907 = vmatpush1.bf16.msra.mxu0 0
    %908 = vmatprep.subr.bf16.mxu0 0
    %909 = vmatpush1.bf16.msra.mxu0 0
    %910 = vmatprep.subr.bf16.mxu0 0
    %911 = vmatpush1.bf16.msra.mxu0 0
    %912 = vmatprep.subr.bf16.mxu0 0
    %913 = vmatpush1.bf16.msra.mxu0 0
    %914 = vmatprep.mubr.bf16.mxu0 0
    %915 = vmatmul.mubr.bf16.gmra.mrb[0].mxu0 %v875
    %v916 = vpop.f32.mrb[0].mxu0
    %v917 = vadd.f32 0.0, %v916
    %v918 = vpop.f32.mrb[0].mxu0
    %v919 = vadd.f32 0.0, %v918
    %v920 = vpop.f32.mrb[0].mxu0
    %v921 = vpop.f32.mrb[0].mxu0
    %922 = vdwg.mxu0
    %923 = vmatprep.subr.bf16.mxu0 0
    %924 = vmatpush1.bf16.msra.mxu0 %v611
    %925 = vmatprep.subr.bf16.mxu0 0
    %926 = vmatpush1.bf16.msra.mxu0 %v614
    %927 = vmatprep.subr.bf16.mxu0 0
    %928 = vmatpush1.bf16.msra.mxu0 %v617
    %929 = vmatprep.subr.bf16.mxu0 0
    %930 = vmatpush1.bf16.msra.mxu0 %v620
    %931 = vmatprep.subr.bf16.mxu0 0
    %932 = vmatpush1.bf16.msra.mxu0 %v623
    %933 = vmatprep.subr.bf16.mxu0 0
    %934 = vmatpush1.bf16.msra.mxu0 %v626
    %935 = vmatprep.subr.bf16.mxu0 0
    %936 = vmatpush1.bf16.msra.mxu0 %v629
    %937 = vmatprep.subr.bf16.mxu0 0
    %938 = vmatpush1.bf16.msra.mxu0 %v632
    %939 = vmatprep.subr.bf16.mxu0 0
    %940 = vmatpush1.bf16.msra.mxu0 0
    %941 = vmatprep.subr.bf16.mxu0 0
    %942 = vmatpush1.bf16.msra.mxu0 0
    %943 = vmatprep.subr.bf16.mxu0 0
    %944 = vmatpush1.bf16.msra.mxu0 0
    %945 = vmatprep.subr.bf16.mxu0 0
    %946 = vmatpush1.bf16.msra.mxu0 0
    %947 = vmatprep.subr.bf16.mxu0 0
    %948 = vmatpush1.bf16.msra.mxu0 0
    %949 = vmatprep.subr.bf16.mxu0 0
    %950 = vmatpush1.bf16.msra.mxu0 0
    %951 = vmatprep.subr.bf16.mxu0 0
    %952 = vmatpush1.bf16.msra.mxu0 0
    %953 = vmatprep.subr.bf16.mxu0 0
    %954 = vmatpush1.bf16.msra.mxu0 0
    %955 = vmatprep.mubr.bf16.mxu0 0
    %956 = vmatmul.mubr.bf16.gmra.mrb[0].mxu0 %v875
    %v957 = vpop.f32.mrb[0].mxu0
    %v958 = vadd.f32 0.0, %v957
    %v959 = vpop.f32.mrb[0].mxu0
    %v960 = vpop.f32.mrb[0].mxu0
    %v961 = vpop.f32.mrb[0].mxu0
    %962 = vdwg.mxu0
    %v963 = vadd.f32 %v879, %v917
    %v964 = vxor.u32 %v963, 2147483648
    %v965 = vmul.f32 %v964, 1.442695
    %v966 = vpow.pop %v965
    %v967 = vadd.f32 %v966, 1.0
    %v968 = vrcp.pop %v967
    %v969 = vmul.f32 1.0, %v968
    %v970 = vadd.f32 %v880, %v919
    %v971 = vxor.u32 %v970, 2147483648
    %v972 = vmul.f32 %v971, 1.442695
    %v973 = vpow.pop %v972
    %v974 = vadd.f32 %v973, 1.0
    %v975 = vrcp.pop %v974
    %v976 = vmul.f32 1.0, %v975
    %v977 = vadd.f32 %v958, %v756
    %v978 = vmul.f32 %v969, %v977
    %v979 = vadd.f32 %v881, %v978
    %v980 = vtanh.pop %v979
    %v981 = vsub.f32 1.0, %v976
    %v982 = vmul.f32 %v981, %v980
    %v983 = vmul.f32 %v976, %v874
    %v984 = vadd.f32 %v982, %v983
    %v985 = vpack.c.bf16 %v984, %v984
    %s986 = scalar_lea.vmem [#allocation3], 8
    %987 = vst [vmem:[%s986] sm:$0xf] %v985
    %s988 = scalar_lea.vmem [#allocation2], 72
    %v989 = vld [vmem:[%s988] sm:$0xff]
    %v990 = vld [vmem:[%s988 + $0x8] sm:$0xff]
    %v991 = vld [vmem:[%s988 + $0x10] sm:$0xff]
    %992 = vmatprep.subr.bf16.mxu0 %v610
    %993 = vmatpush1.bf16.msra.mxu0 %v609
    %994 = vmatprep.subr.bf16.mxu0 %v613
    %995 = vmatpush1.bf16.msra.mxu0 %v612
    %996 = vmatprep.subr.bf16.mxu0 %v616
    %997 = vmatpush1.bf16.msra.mxu0 %v615
    %998 = vmatprep.subr.bf16.mxu0 %v619
    %999 = vmatpush1.bf16.msra.mxu0 %v618
    %1000 = vmatprep.subr.bf16.mxu0 %v622
    %1001 = vmatpush1.bf16.msra.mxu0 %v621
    %1002 = vmatprep.subr.bf16.mxu0 %v625
    %1003 = vmatpush1.bf16.msra.mxu0 %v624
    %1004 = vmatprep.subr.bf16.mxu0 %v628
    %1005 = vmatpush1.bf16.msra.mxu0 %v627
    %1006 = vmatprep.subr.bf16.mxu0 %v631
    %1007 = vmatpush1.bf16.msra.mxu0 %v630
    %1008 = vmatprep.subr.bf16.mxu0 0
    %1009 = vmatpush1.bf16.msra.mxu0 0
    %1010 = vmatprep.subr.bf16.mxu0 0
    %1011 = vmatpush1.bf16.msra.mxu0 0
    %1012 = vmatprep.subr.bf16.mxu0 0
    %1013 = vmatpush1.bf16.msra.mxu0 0
    %1014 = vmatprep.subr.bf16.mxu0 0
    %1015 = vmatpush1.bf16.msra.mxu0 0
    %1016 = vmatprep.subr.bf16.mxu0 0
    %1017 = vmatpush1.bf16.msra.mxu0 0
    %1018 = vmatprep.subr.bf16.mxu0 0
    %1019 = vmatpush1.bf16.msra.mxu0 0
    %1020 = vmatprep.subr.bf16.mxu0 0
    %1021 = vmatpush1.bf16.msra.mxu0 0
    %1022 = vmatprep.subr.bf16.mxu0 0
    %1023 = vmatpush1.bf16.msra.mxu0 0
    %1024 = vmatprep.mubr.bf16.mxu0 0
    %1025 = vmatmul.mubr.bf16.gmra.mrb[0].mxu0 %v985
    %v1026 = vpop.f32.mrb[0].mxu0
    %v1027 = vadd.f32 0.0, %v1026
    %v1028 = vpop.f32.mrb[0].mxu0
    %v1029 = vadd.f32 0.0, %v1028
    %v1030 = vpop.f32.mrb[0].mxu0
    %v1031 = vpop.f32.mrb[0].mxu0
    %1032 = vdwg.mxu0
    %1033 = vmatprep.subr.bf16.mxu0 0
    %1034 = vmatpush1.bf16.msra.mxu0 %v611
    %1035 = vmatprep.subr.bf16.mxu0 0
    %1036 = vmatpush1.bf16.msra.mxu0 %v614
    %1037 = vmatprep.subr.bf16.mxu0 0
    %1038 = vmatpush1.bf16.msra.mxu0 %v617
    %1039 = vmatprep.subr.bf16.mxu0 0
    %1040 = vmatpush1.bf16.msra.mxu0 %v620
    %1041 = vmatprep.subr.bf16.mxu0 0
    %1042 = vmatpush1.bf16.msra.mxu0 %v623
    %1043 = vmatprep.subr.bf16.mxu0 0
    %1044 = vmatpush1.bf16.msra.mxu0 %v626
    %1045 = vmatprep.subr.bf16.mxu0 0
    %1046 = vmatpush1.bf16.msra.mxu0 %v629
    %1047 = vmatprep.subr.bf16.mxu0 0
    %1048 = vmatpush1.bf16.msra.mxu0 %v632
    %1049 = vmatprep.subr.bf16.mxu0 0
    %1050 = vmatpush1.bf16.msra.mxu0 0
    %1051 = vmatprep.subr.bf16.mxu0 0
    %1052 = vmatpush1.bf16.msra.mxu0 0
    %1053 = vmatprep.subr.bf16.mxu0 0
    %1054 = vmatpush1.bf16.msra.mxu0 0
    %1055 = vmatprep.subr.bf16.mxu0 0
    %1056 = vmatpush1.bf16.msra.mxu0 0
    %1057 = vmatprep.subr.bf16.mxu0 0
    %1058 = vmatpush1.bf16.msra.mxu0 0
    %1059 = vmatprep.subr.bf16.mxu0 0
    %1060 = vmatpush1.bf16.msra.mxu0 0
    %1061 = vmatprep.subr.bf16.mxu0 0
    %1062 = vmatpush1.bf16.msra.mxu0 0
    %1063 = vmatprep.subr.bf16.mxu0 0
    %1064 = vmatpush1.bf16.msra.mxu0 0
    %1065 = vmatprep.mubr.bf16.mxu0 0
    %1066 = vmatmul.mubr.bf16.gmra.mrb[0].mxu0 %v985
    %v1067 = vpop.f32.mrb[0].mxu0
    %v1068 = vadd.f32 0.0, %v1067
    %v1069 = vpop.f32.mrb[0].mxu0
    %v1070 = vpop.f32.mrb[0].mxu0
    %v1071 = vpop.f32.mrb[0].mxu0
    %1072 = vdwg.mxu0
    %v1073 = vadd.f32 %v989, %v1027
    %v1074 = vxor.u32 %v1073, 2147483648
    %v1075 = vmul.f32 %v1074, 1.442695
    %v1076 = vpow.pop %v1075
    %v1077 = vadd.f32 %v1076, 1.0
    %v1078 = vrcp.pop %v1077
    %v1079 = vmul.f32 1.0, %v1078
    %v1080 = vadd.f32 %v990, %v1029
    %v1081 = vxor.u32 %v1080, 2147483648
    %v1082 = vmul.f32 %v1081, 1.442695
    %v1083 = vpow.pop %v1082
    %v1084 = vadd.f32 %v1083, 1.0
    %v1085 = vrcp.pop %v1084
    %v1086 = vmul.f32 1.0, %v1085
    %v1087 = vadd.f32 %v1068, %v756
    %v1088 = vmul.f32 %v1079, %v1087
    %v1089 = vadd.f32 %v991, %v1088
    %v1090 = vtanh.pop %v1089
    %v1091 = vsub.f32 1.0, %v1086
    %v1092 = vmul.f32 %v1091, %v1090
    %v1093 = vmul.f32 %v1086, %v984
    %v1094 = vadd.f32 %v1092, %v1093
    %v1095 = vpack.c.bf16 %v1094, %v1094
    %s1096 = scalar_lea.vmem [#allocation3], 12
    %1097 = vst [vmem:[%s1096] sm:$0xf] %v1095
    %s1098 = scalar_lea.vmem [#allocation2], 96
    %v1099 = vld [vmem:[%s1098] sm:$0xff]
    %v1100 = vld [vmem:[%s1098 + $0x8] sm:$0xff]
    %v1101 = vld [vmem:[%s1098 + $0x10] sm:$0xff]
    %1102 = vmatprep.subr.bf16.mxu0 %v610
    %1103 = vmatpush1.bf16.msra.mxu0 %v609
    %1104 = vmatprep.subr.bf16.mxu0 %v613
    %1105 = vmatpush1.bf16.msra.mxu0 %v612
    %1106 = vmatprep.subr.bf16.mxu0 %v616
    %1107 = vmatpush1.bf16.msra.mxu0 %v615
    %1108 = vmatprep.subr.bf16.mxu0 %v619
    %1109 = vmatpush1.bf16.msra.mxu0 %v618
    %1110 = vmatprep.subr.bf16.mxu0 %v622
    %1111 = vmatpush1.bf16.msra.mxu0 %v621
    %1112 = vmatprep.subr.bf16.mxu0 %v625
    %1113 = vmatpush1.bf16.msra.mxu0 %v624
    %1114 = vmatprep.subr.bf16.mxu0 %v628
    %1115 = vmatpush1.bf16.msra.mxu0 %v627
    %1116 = vmatprep.subr.bf16.mxu0 %v631
    %1117 = vmatpush1.bf16.msra.mxu0 %v630
    %1118 = vmatprep.subr.bf16.mxu0 0
    %1119 = vmatpush1.bf16.msra.mxu0 0
    %1120 = vmatprep.subr.bf16.mxu0 0
    %1121 = vmatpush1.bf16.msra.mxu0 0
    %1122 = vmatprep.subr.bf16.mxu0 0
    %1123 = vmatpush1.bf16.msra.mxu0 0
    %1124 = vmatprep.subr.bf16.mxu0 0
    %1125 = vmatpush1.bf16.msra.mxu0 0
    %1126 = vmatprep.subr.bf16.mxu0 0
    %1127 = vmatpush1.bf16.msra.mxu0 0
    %1128 = vmatprep.subr.bf16.mxu0 0
    %1129 = vmatpush1.bf16.msra.mxu0 0
    %1130 = vmatprep.subr.bf16.mxu0 0
    %1131 = vmatpush1.bf16.msra.mxu0 0
    %1132 = vmatprep.subr.bf16.mxu0 0
    %1133 = vmatpush1.bf16.msra.mxu0 0
    %1134 = vmatprep.mubr.bf16.mxu0 0
    %1135 = vmatmul.mubr.bf16.gmra.mrb[0].mxu0 %v1095
    %v1136 = vpop.f32.mrb[0].mxu0
    %v1137 = vadd.f32 0.0, %v1136
    %v1138 = vpop.f32.mrb[0].mxu0
    %v1139 = vadd.f32 0.0, %v1138
    %v1140 = vpop.f32.mrb[0].mxu0
    %v1141 = vpop.f32.mrb[0].mxu0
    %1142 = vdwg.mxu0
    %1143 = vmatprep.subr.bf16.mxu0 0
    %1144 = vmatpush1.bf16.msra.mxu0 %v611
    %1145 = vmatprep.subr.bf16.mxu0 0
    %1146 = vmatpush1.bf16.msra.mxu0 %v614
    %1147 = vmatprep.subr.bf16.mxu0 0
    %1148 = vmatpush1.bf16.msra.mxu0 %v617
    %1149 = vmatprep.subr.bf16.mxu0 0
    %1150 = vmatpush1.bf16.msra.mxu0 %v620
    %1151 = vmatprep.subr.bf16.mxu0 0
    %1152 = vmatpush1.bf16.msra.mxu0 %v623
    %1153 = vmatprep.subr.bf16.mxu0 0
    %1154 = vmatpush1.bf16.msra.mxu0 %v626
    %1155 = vmatprep.subr.bf16.mxu0 0
    %1156 = vmatpush1.bf16.msra.mxu0 %v629
    %1157 = vmatprep.subr.bf16.mxu0 0
    %1158 = vmatpush1.bf16.msra.mxu0 %v632
    %1159 = vmatprep.subr.bf16.mxu0 0
    %1160 = vmatpush1.bf16.msra.mxu0 0
    %1161 = vmatprep.subr.bf16.mxu0 0
    %1162 = vmatpush1.bf16.msra.mxu0 0
    %1163 = vmatprep.subr.bf16.mxu0 0
    %1164 = vmatpush1.bf16.msra.mxu0 0
    %1165 = vmatprep.subr.bf16.mxu0 0
    %1166 = vmatpush1.bf16.msra.mxu0 0
    %1167 = vmatprep.subr.bf16.mxu0 0
    %1168 = vmatpush1.bf16.msra.mxu0 0
    %1169 = vmatprep.subr.bf16.mxu0 0
    %1170 = vmatpush1.bf16.msra.mxu0 0
    %1171 = vmatprep.subr.bf16.mxu0 0
    %1172 = vmatpush1.bf16.msra.mxu0 0
    %1173 = vmatprep.subr.bf16.mxu0 0
    %1174 = vmatpush1.bf16.msra.mxu0 0
    %1175 = vmatprep.mubr.bf16.mxu0 0
    %1176 = vmatmul.mubr.bf16.gmra.mrb[0].mxu0 %v1095
    %v1177 = vpop.f32.mrb[0].mxu0
    %v1178 = vadd.f32 0.0, %v1177
    %v1179 = vpop.f32.mrb[0].mxu0
    %v1180 = vpop.f32.mrb[0].mxu0
    %v1181 = vpop.f32.mrb[0].mxu0
    %1182 = vdwg.mxu0
    %v1183 = vadd.f32 %v1099, %v1137
    %v1184 = vxor.u32 %v1183, 2147483648
    %v1185 = vmul.f32 %v1184, 1.442695
    %v1186 = vpow.pop %v1185
    %v1187 = vadd.f32 %v1186, 1.0
    %v1188 = vrcp.pop %v1187
    %v1189 = vmul.f32 1.0, %v1188
    %v1190 = vadd.f32 %v1100, %v1139
    %v1191 = vxor.u32 %v1190, 2147483648
    %v1192 = vmul.f32 %v1191, 1.442695
    %v1193 = vpow.pop %v1192
    %v1194 = vadd.f32 %v1193, 1.0
    %v1195 = vrcp.pop %v1194
    %v1196 = vmul.f32 1.0, %v1195
    %v1197 = vadd.f32 %v1178, %v756
    %v1198 = vmul.f32 %v1189, %v1197
    %v1199 = vadd.f32 %v1101, %v1198
    %v1200 = vtanh.pop %v1199
    %v1201 = vsub.f32 1.0, %v1196
    %v1202 = vmul.f32 %v1201, %v1200
    %v1203 = vmul.f32 %v1196, %v1094
    %v1204 = vadd.f32 %v1202, %v1203
    %v1205 = vpack.c.bf16 %v1204, %v1204
    %s1206 = scalar_lea.vmem [#allocation3], 16
    %1207 = vst [vmem:[%s1206] sm:$0xf] %v1205
    %s1208 = scalar_lea.vmem [#allocation2], 120
    %v1209 = vld [vmem:[%s1208] sm:$0xff]
    %v1210 = vld [vmem:[%s1208 + $0x8] sm:$0xff]
    %v1211 = vld [vmem:[%s1208 + $0x10] sm:$0xff]
    %1212 = vmatprep.subr.bf16.mxu0 %v610
    %1213 = vmatpush1.bf16.msra.mxu0 %v609
    %1214 = vmatprep.subr.bf16.mxu0 %v613
    %1215 = vmatpush1.bf16.msra.mxu0 %v612
    %1216 = vmatprep.subr.bf16.mxu0 %v616
    %1217 = vmatpush1.bf16.msra.mxu0 %v615
    %1218 = vmatprep.subr.bf16.mxu0 %v619
    %1219 = vmatpush1.bf16.msra.mxu0 %v618
    %1220 = vmatprep.subr.bf16.mxu0 %v622
    %1221 = vmatpush1.bf16.msra.mxu0 %v621
    %1222 = vmatprep.subr.bf16.mxu0 %v625
    %1223 = vmatpush1.bf16.msra.mxu0 %v624
    %1224 = vmatprep.subr.bf16.mxu0 %v628
    %1225 = vmatpush1.bf16.msra.mxu0 %v627
    %1226 = vmatprep.subr.bf16.mxu0 %v631
    %1227 = vmatpush1.bf16.msra.mxu0 %v630
    %1228 = vmatprep.subr.bf16.mxu0 0
    %1229 = vmatpush1.bf16.msra.mxu0 0
    %1230 = vmatprep.subr.bf16.mxu0 0
    %1231 = vmatpush1.bf16.msra.mxu0 0
    %1232 = vmatprep.subr.bf16.mxu0 0
    %1233 = vmatpush1.bf16.msra.mxu0 0
    %1234 = vmatprep.subr.bf16.mxu0 0
    %1235 = vmatpush1.bf16.msra.mxu0 0
    %1236 = vmatprep.subr.bf16.mxu0 0
    %1237 = vmatpush1.bf16.msra.mxu0 0
    %1238 = vmatprep.subr.bf16.mxu0 0
    %1239 = vmatpush1.bf16.msra.mxu0 0
    %1240 = vmatprep.subr.bf16.mxu0 0
    %1241 = vmatpush1.bf16.msra.mxu0 0
    %1242 = vmatprep.subr.bf16.mxu0 0
    %1243 = vmatpush1.bf16.msra.mxu0 0
    %1244 = vmatprep.mubr.bf16.mxu0 0
    %1245 = vmatmul.mubr.bf16.gmra.mrb[0].mxu0 %v1205
    %v1246 = vpop.f32.mrb[0].mxu0
    %v1247 = vadd.f32 0.0, %v1246
    %v1248 = vpop.f32.mrb[0].mxu0
    %v1249 = vadd.f32 0.0, %v1248
    %v1250 = vpop.f32.mrb[0].mxu0
    %v1251 = vpop.f32.mrb[0].mxu0
    %1252 = vdwg.mxu0
    %1253 = vmatprep.subr.bf16.mxu0 0
    %1254 = vmatpush1.bf16.msra.mxu0 %v611
    %1255 = vmatprep.subr.bf16.mxu0 0
    %1256 = vmatpush1.bf16.msra.mxu0 %v614
    %1257 = vmatprep.subr.bf16.mxu0 0
    %1258 = vmatpush1.bf16.msra.mxu0 %v617
    %1259 = vmatprep.subr.bf16.mxu0 0
    %1260 = vmatpush1.bf16.msra.mxu0 %v620
    %1261 = vmatprep.subr.bf16.mxu0 0
    %1262 = vmatpush1.bf16.msra.mxu0 %v623
    %1263 = vmatprep.subr.bf16.mxu0 0
    %1264 = vmatpush1.bf16.msra.mxu0 %v626
    %1265 = vmatprep.subr.bf16.mxu0 0
    %1266 = vmatpush1.bf16.msra.mxu0 %v629
    %1267 = vmatprep.subr.bf16.mxu0 0
    %1268 = vmatpush1.bf16.msra.mxu0 %v632
    %1269 = vmatprep.subr.bf16.mxu0 0
    %1270 = vmatpush1.bf16.msra.mxu0 0
    %1271 = vmatprep.subr.bf16.mxu0 0
    %1272 = vmatpush1.bf16.msra.mxu0 0
    %1273 = vmatprep.subr.bf16.mxu0 0
    %1274 = vmatpush1.bf16.msra.mxu0 0
    %1275 = vmatprep.subr.bf16.mxu0 0
    %1276 = vmatpush1.bf16.msra.mxu0 0
    %1277 = vmatprep.subr.bf16.mxu0 0
    %1278 = vmatpush1.bf16.msra.mxu0 0
    %1279 = vmatprep.subr.bf16.mxu0 0
    %1280 = vmatpush1.bf16.msra.mxu0 0
    %1281 = vmatprep.subr.bf16.mxu0 0
    %1282 = vmatpush1.bf16.msra.mxu0 0
    %1283 = vmatprep.subr.bf16.mxu0 0
    %1284 = vmatpush1.bf16.msra.mxu0 0
    %1285 = vmatprep.mubr.bf16.mxu0 0
    %1286 = vmatmul.mubr.bf16.gmra.mrb[0].mxu0 %v1205
    %v1287 = vpop.f32.mrb[0].mxu0
    %v1288 = vadd.f32 0.0, %v1287
    %v1289 = vpop.f32.mrb[0].mxu0
    %v1290 = vpop.f32.mrb[0].mxu0
    %v1291 = vpop.f32.mrb[0].mxu0
    %1292 = vdwg.mxu0
    %v1293 = vadd.f32 %v1209, %v1247
    %v1294 = vxor.u32 %v1293, 2147483648
    %v1295 = vmul.f32 %v1294, 1.442695
    %v1296 = vpow.pop %v1295
    %v1297 = vadd.f32 %v1296, 1.0
    %v1298 = vrcp.pop %v1297
    %v1299 = vmul.f32 1.0, %v1298
    %v1300 = vadd.f32 %v1210, %v1249
    %v1301 = vxor.u32 %v1300, 2147483648
    %v1302 = vmul.f32 %v1301, 1.442695
    %v1303 = vpow.pop %v1302
    %v1304 = vadd.f32 %v1303, 1.0
    %v1305 = vrcp.pop %v1304
    %v1306 = vmul.f32 1.0, %v1305
    %v1307 = vadd.f32 %v1288, %v756
    %v1308 = vmul.f32 %v1299, %v1307
    %v1309 = vadd.f32 %v1211, %v1308
    %v1310 = vtanh.pop %v1309
    %v1311 = vsub.f32 1.0, %v1306
    %v1312 = vmul.f32 %v1311, %v1310
    %v1313 = vmul.f32 %v1306, %v1204
    %v1314 = vadd.f32 %v1312, %v1313
    %v1315 = vpack.c.bf16 %v1314, %v1314
    %s1316 = scalar_lea.vmem [#allocation3], 20
    %1317 = vst [vmem:[%s1316] sm:$0xf] %v1315
    %s1318 = scalar_lea.vmem [#allocation2], 144
    %v1319 = vld [vmem:[%s1318] sm:$0xff]
    %v1320 = vld [vmem:[%s1318 + $0x8] sm:$0xff]
    %v1321 = vld [vmem:[%s1318 + $0x10] sm:$0xff]
    %1322 = vmatprep.subr.bf16.mxu0 %v610
    %1323 = vmatpush1.bf16.msra.mxu0 %v609
    %1324 = vmatprep.subr.bf16.mxu0 %v613
    %1325 = vmatpush1.bf16.msra.mxu0 %v612
    %1326 = vmatprep.subr.bf16.mxu0 %v616
    %1327 = vmatpush1.bf16.msra.mxu0 %v615
    %1328 = vmatprep.subr.bf16.mxu0 %v619
    %1329 = vmatpush1.bf16.msra.mxu0 %v618
    %1330 = vmatprep.subr.bf16.mxu0 %v622
    %1331 = vmatpush1.bf16.msra.mxu0 %v621
    %1332 = vmatprep.subr.bf16.mxu0 %v625
    %1333 = vmatpush1.bf16.msra.mxu0 %v624
    %1334 = vmatprep.subr.bf16.mxu0 %v628
    %1335 = vmatpush1.bf16.msra.mxu0 %v627
    %1336 = vmatprep.subr.bf16.mxu0 %v631
    %1337 = vmatpush1.bf16.msra.mxu0 %v630
    %1338 = vmatprep.subr.bf16.mxu0 0
    %1339 = vmatpush1.bf16.msra.mxu0 0
    %1340 = vmatprep.subr.bf16.mxu0 0
    %1341 = vmatpush1.bf16.msra.mxu0 0
    %1342 = vmatprep.subr.bf16.mxu0 0
    %1343 = vmatpush1.bf16.msra.mxu0 0
    %1344 = vmatprep.subr.bf16.mxu0 0
    %1345 = vmatpush1.bf16.msra.mxu0 0
    %1346 = vmatprep.subr.bf16.mxu0 0
    %1347 = vmatpush1.bf16.msra.mxu0 0
    %1348 = vmatprep.subr.bf16.mxu0 0
    %1349 = vmatpush1.bf16.msra.mxu0 0
    %1350 = vmatprep.subr.bf16.mxu0 0
    %1351 = vmatpush1.bf16.msra.mxu0 0
    %1352 = vmatprep.subr.bf16.mxu0 0
    %1353 = vmatpush1.bf16.msra.mxu0 0
    %1354 = vmatprep.mubr.bf16.mxu0 0
    %1355 = vmatmul.mubr.bf16.gmra.mrb[0].mxu0 %v1315
    %v1356 = vpop.f32.mrb[0].mxu0
    %v1357 = vadd.f32 0.0, %v1356
    %v1358 = vpop.f32.mrb[0].mxu0
    %v1359 = vadd.f32 0.0, %v1358
    %v1360 = vpop.f32.mrb[0].mxu0
    %v1361 = vpop.f32.mrb[0].mxu0
    %1362 = vdwg.mxu0
    %1363 = vmatprep.subr.bf16.mxu0 0
    %1364 = vmatpush1.bf16.msra.mxu0 %v611
    %1365 = vmatprep.subr.bf16.mxu0 0
    %1366 = vmatpush1.bf16.msra.mxu0 %v614
    %1367 = vmatprep.subr.bf16.mxu0 0
    %1368 = vmatpush1.bf16.msra.mxu0 %v617
    %1369 = vmatprep.subr.bf16.mxu0 0
    %1370 = vmatpush1.bf16.msra.mxu0 %v620
    %1371 = vmatprep.subr.bf16.mxu0 0
    %1372 = vmatpush1.bf16.msra.mxu0 %v623
    %1373 = vmatprep.subr.bf16.mxu0 0
    %1374 = vmatpush1.bf16.msra.mxu0 %v626
    %1375 = vmatprep.subr.bf16.mxu0 0
    %1376 = vmatpush1.bf16.msra.mxu0 %v629
    %1377 = vmatprep.subr.bf16.mxu0 0
    %1378 = vmatpush1.bf16.msra.mxu0 %v632
    %1379 = vmatprep.subr.bf16.mxu0 0
    %1380 = vmatpush1.bf16.msra.mxu0 0
    %1381 = vmatprep.subr.bf16.mxu0 0
    %1382 = vmatpush1.bf16.msra.mxu0 0
    %1383 = vmatprep.subr.bf16.mxu0 0
    %1384 = vmatpush1.bf16.msra.mxu0 0
    %1385 = vmatprep.subr.bf16.mxu0 0
    %1386 = vmatpush1.bf16.msra.mxu0 0
    %1387 = vmatprep.subr.bf16.mxu0 0
    %1388 = vmatpush1.bf16.msra.mxu0 0
    %1389 = vmatprep.subr.bf16.mxu0 0
    %1390 = vmatpush1.bf16.msra.mxu0 0
    %1391 = vmatprep.subr.bf16.mxu0 0
    %1392 = vmatpush1.bf16.msra.mxu0 0
    %1393 = vmatprep.subr.bf16.mxu0 0
    %1394 = vmatpush1.bf16.msra.mxu0 0
    %1395 = vmatprep.mubr.bf16.mxu0 0
    %1396 = vmatmul.mubr.bf16.gmra.mrb[0].mxu0 %v1315
    %v1397 = vpop.f32.mrb[0].mxu0
    %v1398 = vadd.f32 0.0, %v1397
    %v1399 = vpop.f32.mrb[0].mxu0
    %v1400 = vpop.f32.mrb[0].mxu0
    %v1401 = vpop.f32.mrb[0].mxu0
    %1402 = vdwg.mxu0
    %v1403 = vadd.f32 %v1319, %v1357
    %v1404 = vxor.u32 %v1403, 2147483648
    %v1405 = vmul.f32 %v1404, 1.442695
    %v1406 = vpow.pop %v1405
    %v1407 = vadd.f32 %v1406, 1.0
    %v1408 = vrcp.pop %v1407
    %v1409 = vmul.f32 1.0, %v1408
    %v1410 = vadd.f32 %v1320, %v1359
    %v1411 = vxor.u32 %v1410, 2147483648
    %v1412 = vmul.f32 %v1411, 1.442695
    %v1413 = vpow.pop %v1412
    %v1414 = vadd.f32 %v1413, 1.0
    %v1415 = vrcp.pop %v1414
    %v1416 = vmul.f32 1.0, %v1415
    %v1417 = vadd.f32 %v1398, %v756
    %v1418 = vmul.f32 %v1409, %v1417
    %v1419 = vadd.f32 %v1321, %v1418
    %v1420 = vtanh.pop %v1419
    %v1421 = vsub.f32 1.0, %v1416
    %v1422 = vmul.f32 %v1421, %v1420
    %v1423 = vmul.f32 %v1416, %v1314
    %v1424 = vadd.f32 %v1422, %v1423
    %v1425 = vpack.c.bf16 %v1424, %v1424
    %s1426 = scalar_lea.vmem [#allocation3], 24
    %1427 = vst [vmem:[%s1426] sm:$0xf] %v1425
    %s1428 = scalar_lea.vmem [#allocation2], 168
    %v1429 = vld [vmem:[%s1428] sm:$0xff]
    %v1430 = vld [vmem:[%s1428 + $0x8] sm:$0xff]
    %v1431 = vld [vmem:[%s1428 + $0x10] sm:$0xff]
    %1432 = vmatprep.subr.bf16.mxu0 %v610
    %1433 = vmatpush1.bf16.msra.mxu0 %v609
    %1434 = vmatprep.subr.bf16.mxu0 %v613
    %1435 = vmatpush1.bf16.msra.mxu0 %v612
    %1436 = vmatprep.subr.bf16.mxu0 %v616
    %1437 = vmatpush1.bf16.msra.mxu0 %v615
    %1438 = vmatprep.subr.bf16.mxu0 %v619
    %1439 = vmatpush1.bf16.msra.mxu0 %v618
    %1440 = vmatprep.subr.bf16.mxu0 %v622
    %1441 = vmatpush1.bf16.msra.mxu0 %v621
    %1442 = vmatprep.subr.bf16.mxu0 %v625
    %1443 = vmatpush1.bf16.msra.mxu0 %v624
    %1444 = vmatprep.subr.bf16.mxu0 %v628
    %1445 = vmatpush1.bf16.msra.mxu0 %v627
    %1446 = vmatprep.subr.bf16.mxu0 %v631
    %1447 = vmatpush1.bf16.msra.mxu0 %v630
    %1448 = vmatprep.subr.bf16.mxu0 0
    %1449 = vmatpush1.bf16.msra.mxu0 0
    %1450 = vmatprep.subr.bf16.mxu0 0
    %1451 = vmatpush1.bf16.msra.mxu0 0
    %1452 = vmatprep.subr.bf16.mxu0 0
    %1453 = vmatpush1.bf16.msra.mxu0 0
    %1454 = vmatprep.subr.bf16.mxu0 0
    %1455 = vmatpush1.bf16.msra.mxu0 0
    %1456 = vmatprep.subr.bf16.mxu0 0
    %1457 = vmatpush1.bf16.msra.mxu0 0
    %1458 = vmatprep.subr.bf16.mxu0 0
    %1459 = vmatpush1.bf16.msra.mxu0 0
    %1460 = vmatprep.subr.bf16.mxu0 0
    %1461 = vmatpush1.bf16.msra.mxu0 0
    %1462 = vmatprep.subr.bf16.mxu0 0
    %1463 = vmatpush1.bf16.msra.mxu0 0
    %1464 = vmatprep.mubr.bf16.mxu0 0
    %1465 = vmatmul.mubr.bf16.gmra.mrb[0].mxu0 %v1425
    %v1466 = vpop.f32.mrb[0].mxu0
    %v1467 = vadd.f32 0.0, %v1466
    %v1468 = vpop.f32.mrb[0].mxu0
    %v1469 = vadd.f32 0.0, %v1468
    %v1470 = vpop.f32.mrb[0].mxu0
    %v1471 = vpop.f32.mrb[0].mxu0
    %1472 = vdwg.mxu0
    %1473 = vmatprep.subr.bf16.mxu0 0
    %1474 = vmatpush1.bf16.msra.mxu0 %v611
    %1475 = vmatprep.subr.bf16.mxu0 0
    %1476 = vmatpush1.bf16.msra.mxu0 %v614
    %1477 = vmatprep.subr.bf16.mxu0 0
    %1478 = vmatpush1.bf16.msra.mxu0 %v617
    %1479 = vmatprep.subr.bf16.mxu0 0
    %1480 = vmatpush1.bf16.msra.mxu0 %v620
    %1481 = vmatprep.subr.bf16.mxu0 0
    %1482 = vmatpush1.bf16.msra.mxu0 %v623
    %1483 = vmatprep.subr.bf16.mxu0 0
    %1484 = vmatpush1.bf16.msra.mxu0 %v626
    %1485 = vmatprep.subr.bf16.mxu0 0
    %1486 = vmatpush1.bf16.msra.mxu0 %v629
    %1487 = vmatprep.subr.bf16.mxu0 0
    %1488 = vmatpush1.bf16.msra.mxu0 %v632
    %1489 = vmatprep.subr.bf16.mxu0 0
    %1490 = vmatpush1.bf16.msra.mxu0 0
    %1491 = vmatprep.subr.bf16.mxu0 0
    %1492 = vmatpush1.bf16.msra.mxu0 0
    %1493 = vmatprep.subr.bf16.mxu0 0
    %1494 = vmatpush1.bf16.msra.mxu0 0
    %1495 = vmatprep.subr.bf16.mxu0 0
    %1496 = vmatpush1.bf16.msra.mxu0 0
    %1497 = vmatprep.subr.bf16.mxu0 0
    %1498 = vmatpush1.bf16.msra.mxu0 0
    %1499 = vmatprep.subr.bf16.mxu0 0
    %1500 = vmatpush1.bf16.msra.mxu0 0
    %1501 = vmatprep.subr.bf16.mxu0 0
    %1502 = vmatpush1.bf16.msra.mxu0 0
    %1503 = vmatprep.subr.bf16.mxu0 0
    %1504 = vmatpush1.bf16.msra.mxu0 0
    %1505 = vmatprep.mubr.bf16.mxu0 0
    %1506 = vmatmul.mubr.bf16.gmra.mrb[0].mxu0 %v1425
    %v1507 = vpop.f32.mrb[0].mxu0
    %v1508 = vadd.f32 0.0, %v1507
    %v1509 = vpop.f32.mrb[0].mxu0
    %v1510 = vpop.f32.mrb[0].mxu0
    %v1511 = vpop.f32.mrb[0].mxu0
    %1512 = vdwg.mxu0
    %v1513 = vadd.f32 %v1429, %v1467
    %v1514 = vxor.u32 %v1513, 2147483648
    %v1515 = vmul.f32 %v1514, 1.442695
    %v1516 = vpow.pop %v1515
    %v1517 = vadd.f32 %v1516, 1.0
    %v1518 = vrcp.pop %v1517
    %v1519 = vmul.f32 1.0, %v1518
    %v1520 = vadd.f32 %v1430, %v1469
    %v1521 = vxor.u32 %v1520, 2147483648
    %v1522 = vmul.f32 %v1521, 1.442695
    %v1523 = vpow.pop %v1522
    %v1524 = vadd.f32 %v1523, 1.0
    %v1525 = vrcp.pop %v1524
    %v1526 = vmul.f32 1.0, %v1525
    %v1527 = vadd.f32 %v1508, %v756
    %v1528 = vmul.f32 %v1519, %v1527
    %v1529 = vadd.f32 %v1431, %v1528
    %v1530 = vtanh.pop %v1529
    %v1531 = vsub.f32 1.0, %v1526
    %v1532 = vmul.f32 %v1531, %v1530
    %v1533 = vmul.f32 %v1526, %v1424
    %v1534 = vadd.f32 %v1532, %v1533
    %v1535 = vpack.c.bf16 %v1534, %v1534
    %s1536 = scalar_lea.vmem [#allocation3], 28
    %1537 = vst [vmem:[%s1536] sm:$0xf] %v1535
    %v1538 = vld [vmem:[#allocation3] sm:$0xf]
    %v1539 = vld [vmem:[#allocation3 + $0x4] sm:$0xf]
    %v1540 = vld [vmem:[#allocation3 + $0x8] sm:$0xf]
    %v1541 = vld [vmem:[#allocation3 + $0xc] sm:$0xf]
    %v1542 = vld [vmem:[#allocation3 + $0x10] sm:$0xf]
    %v1543 = vld [vmem:[#allocation3 + $0x14] sm:$0xf]
    %v1544 = vld [vmem:[#allocation3 + $0x18] sm:$0xf]
    %v1545 = vld [vmem:[#allocation3 + $0x1c] sm:$0xf]
    %v1546 = vld [vmem:[#allocation9] sm:$0xff]
    %v1547 = vld [vmem:[#allocation9 + $0x8] sm:$0xf]
    %v1548 = vld [vmem:[#allocation9 + $0xc] sm:$0xff]
    %v1549 = vld [vmem:[#allocation9 + $0x14] sm:$0xf]
    %v1550 = vld [vmem:[#allocation9 + $0x18] sm:$0xff]
    %v1551 = vld [vmem:[#allocation9 + $0x20] sm:$0xf]
    %v1552 = vld [vmem:[#allocation9 + $0x24] sm:$0xff]
    %v1553 = vld [vmem:[#allocation9 + $0x2c] sm:$0xf]
    %v1554 = vld [vmem:[#allocation9 + $0x30] sm:$0xff]
    %v1555 = vld [vmem:[#allocation9 + $0x38] sm:$0xf]
    %v1556 = vld [vmem:[#allocation9 + $0x3c] sm:$0xff]
    %v1557 = vld [vmem:[#allocation9 + $0x44] sm:$0xf]
    %v1558 = vld [vmem:[#allocation9 + $0x48] sm:$0xff]
    %v1559 = vld [vmem:[#allocation9 + $0x50] sm:$0xf]
    %v1560 = vld [vmem:[#allocation9 + $0x54] sm:$0xff]
    %v1561 = vld [vmem:[#allocation9 + $0x5c] sm:$0xf]
    %v1562 = vld [vmem:[#allocation9 + $0x60] sm:$0xff]
    %v1563 = vld [vmem:[#allocation9 + $0x68] sm:$0xf]
    %v1564 = vld [vmem:[#allocation9 + $0x6c] sm:$0xff]
    %v1565 = vld [vmem:[#allocation9 + $0x74] sm:$0xf]
    %v1566 = vld [vmem:[#allocation9 + $0x78] sm:$0xff]
    %v1567 = vld [vmem:[#allocation9 + $0x80] sm:$0xf]
    %v1568 = vld [vmem:[#allocation9 + $0x84] sm:$0xff]
    %v1569 = vld [vmem:[#allocation9 + $0x8c] sm:$0xf]
    %v1570 = vld [vmem:[#allocation9 + $0x90] sm:$0xff]
    %v1571 = vld [vmem:[#allocation9 + $0x98] sm:$0xf]
    %v1572 = vld [vmem:[#allocation9 + $0x9c] sm:$0xff]
    %v1573 = vld [vmem:[#allocation9 + $0xa4] sm:$0xf]
    %v1574 = vld [vmem:[#allocation9 + $0xa8] sm:$0xff]
    %v1575 = vld [vmem:[#allocation9 + $0xb0] sm:$0xf]
    %v1576 = vld [vmem:[#allocation9 + $0xb4] sm:$0xff]
    %v1577 = vld [vmem:[#allocation9 + $0xbc] sm:$0xf]
    %v1578 = vld [vmem:[%s7] sm:$0x7]
    %v1580 = vlaneseq
    %v1581 = vshrl.u32 %v1580, 7
    %v1582 = vsub.s32 0, %v1581
    %v1583 = vrot.slane %v1578, %v1582
    %v1584 = vlaneseq
    %v1585 = vshrl.u32 %v1584, 7
    %v1586 = vsub.s32 1, %v1585
    %v1587 = vrot.slane %v1578, %v1586
    %v1588 = vlaneseq
    %v1589 = vshrl.u32 %v1588, 7
    %v1590 = vsub.s32 2, %v1589
    %v1591 = vrot.slane %v1578, %v1590
    %v1603 = vunpack.c.l.b16 %v1538
    %v1604 = vunpack.c.l.b16 %v1539
    %v1605 = vunpack.c.l.b16 %v1540
    %v1606 = vunpack.c.l.b16 %v1541
    %v1607 = vunpack.c.l.b16 %v1542
    %v1608 = vunpack.c.l.b16 %v1543
    %v1609 = vunpack.c.l.b16 %v1544
    %v1610 = vunpack.c.l.b16 %v1545
    %v1611 = vpack.c.b16 %v1604, %v1603
    %v1612 = vpack.c.b16 %v1606, %v1605
    %v1613 = vpack.c.b16 %v1608, %v1607
    %v1614 = vpack.c.b16 %v1610, %v1609
    %v1651 = vunpack.c.l.b16 %v1546
    %v1652 = vunpack.c.h.b16 %v1546
    %v1653 = vunpack.c.l.b16 %v1547
    %v1654 = vunpack.c.l.b16 %v1548
    %v1655 = vunpack.c.h.b16 %v1548
    %v1656 = vunpack.c.l.b16 %v1549
    %v1657 = vunpack.c.l.b16 %v1550
    %v1658 = vunpack.c.h.b16 %v1550
    %v1659 = vunpack.c.l.b16 %v1551
    %v1660 = vunpack.c.l.b16 %v1552
    %v1661 = vunpack.c.h.b16 %v1552
    %v1662 = vunpack.c.l.b16 %v1553
    %v1663 = vunpack.c.l.b16 %v1554
    %v1664 = vunpack.c.h.b16 %v1554
    %v1665 = vunpack.c.l.b16 %v1555
    %v1666 = vunpack.c.l.b16 %v1556
    %v1667 = vunpack.c.h.b16 %v1556
    %v1668 = vunpack.c.l.b16 %v1557
    %v1669 = vunpack.c.l.b16 %v1558
    %v1670 = vunpack.c.h.b16 %v1558
    %v1671 = vunpack.c.l.b16 %v1559
    %v1672 = vunpack.c.l.b16 %v1560
    %v1673 = vunpack.c.h.b16 %v1560
    %v1674 = vunpack.c.l.b16 %v1561
    %v1675 = vunpack.c.l.b16 %v1562
    %v1676 = vunpack.c.h.b16 %v1562
    %v1677 = vunpack.c.l.b16 %v1563
    %v1678 = vunpack.c.l.b16 %v1564
    %v1679 = vunpack.c.h.b16 %v1564
    %v1680 = vunpack.c.l.b16 %v1565
    %v1681 = vunpack.c.l.b16 %v1566
    %v1682 = vunpack.c.h.b16 %v1566
    %v1683 = vunpack.c.l.b16 %v1567
    %v1684 = vunpack.c.l.b16 %v1568
    %v1685 = vunpack.c.h.b16 %v1568
    %v1686 = vunpack.c.l.b16 %v1569
    %v1687 = vunpack.c.l.b16 %v1570
    %v1688 = vunpack.c.h.b16 %v1570
    %v1689 = vunpack.c.l.b16 %v1571
    %v1690 = vunpack.c.l.b16 %v1572
    %v1691 = vunpack.c.h.b16 %v1572
    %v1692 = vunpack.c.l.b16 %v1573
    %v1693 = vunpack.c.l.b16 %v1574
    %v1694 = vunpack.c.h.b16 %v1574
    %v1695 = vunpack.c.l.b16 %v1575
    %v1696 = vunpack.c.l.b16 %v1576
    %v1697 = vunpack.c.h.b16 %v1576
    %v1698 = vunpack.c.l.b16 %v1577
    %v1699 = vpack.c.b16 %v1654, %v1651
    %v1700 = vpack.c.b16 %v1655, %v1652
    %v1701 = vpack.c.b16 %v1656, %v1653
    %v1702 = vpack.c.b16 %v1660, %v1657
    %v1703 = vpack.c.b16 %v1661, %v1658
    %v1704 = vpack.c.b16 %v1662, %v1659
    %v1705 = vpack.c.b16 %v1666, %v1663
    %v1706 = vpack.c.b16 %v1667, %v1664
    %v1707 = vpack.c.b16 %v1668, %v1665
    %v1708 = vpack.c.b16 %v1672, %v1669
    %v1709 = vpack.c.b16 %v1673, %v1670
    %v1710 = vpack.c.b16 %v1674, %v1671
    %v1711 = vpack.c.b16 %v1678, %v1675
    %v1712 = vpack.c.b16 %v1679, %v1676
    %v1713 = vpack.c.b16 %v1680, %v1677
    %v1714 = vpack.c.b16 %v1684, %v1681
    %v1715 = vpack.c.b16 %v1685, %v1682
    %v1716 = vpack.c.b16 %v1686, %v1683
    %v1717 = vpack.c.b16 %v1690, %v1687
    %v1718 = vpack.c.b16 %v1691, %v1688
    %v1719 = vpack.c.b16 %v1692, %v1689
    %v1720 = vpack.c.b16 %v1696, %v1693
    %v1721 = vpack.c.b16 %v1697, %v1694
    %v1722 = vpack.c.b16 %v1698, %v1695
    %1747 = vmatprep.subr.bf16.mxu0 %v1700
    %1748 = vmatpush1.bf16.msra.mxu0 %v1699
    %1749 = vmatprep.subr.bf16.mxu0 %v1703
    %1750 = vmatpush1.bf16.msra.mxu0 %v1702
    %1751 = vmatprep.subr.bf16.mxu0 %v1706
    %1752 = vmatpush1.bf16.msra.mxu0 %v1705
    %1753 = vmatprep.subr.bf16.mxu0 %v1709
    %1754 = vmatpush1.bf16.msra.mxu0 %v1708
    %1755 = vmatprep.subr.bf16.mxu0 %v1712
    %1756 = vmatpush1.bf16.msra.mxu0 %v1711
    %1757 = vmatprep.subr.bf16.mxu0 %v1715
    %1758 = vmatpush1.bf16.msra.mxu0 %v1714
    %1759 = vmatprep.subr.bf16.mxu0 %v1718
    %1760 = vmatpush1.bf16.msra.mxu0 %v1717
    %1761 = vmatprep.subr.bf16.mxu0 %v1721
    %1762 = vmatpush1.bf16.msra.mxu0 %v1720
    %1763 = vmatprep.subr.bf16.mxu0 0
    %1764 = vmatpush1.bf16.msra.mxu0 0
    %1765 = vmatprep.subr.bf16.mxu0 0
    %1766 = vmatpush1.bf16.msra.mxu0 0
    %1767 = vmatprep.subr.bf16.mxu0 0
    %1768 = vmatpush1.bf16.msra.mxu0 0
    %1769 = vmatprep.subr.bf16.mxu0 0
    %1770 = vmatpush1.bf16.msra.mxu0 0
    %1771 = vmatprep.subr.bf16.mxu0 0
    %1772 = vmatpush1.bf16.msra.mxu0 0
    %1773 = vmatprep.subr.bf16.mxu0 0
    %1774 = vmatpush1.bf16.msra.mxu0 0
    %1775 = vmatprep.subr.bf16.mxu0 0
    %1776 = vmatpush1.bf16.msra.mxu0 0
    %1777 = vmatprep.subr.bf16.mxu0 0
    %1778 = vmatpush1.bf16.msra.mxu0 0
    %1779 = vmatprep.mubr.bf16.mxu0 0
    %1780 = vmatmul.mubr.bf16.gmra.mrb[0].mxu0 %v1611
    %v1781 = vpop.f32.mrb[0].mxu0
    %v1782 = vadd.f32 %v1583, %v1781
    %v1783 = vpop.f32.mrb[0].mxu0
    %v1784 = vadd.f32 %v1587, %v1783
    %v1785 = vpop.f32.mrb[0].mxu0
    %v1786 = vadd.f32 %v1583, %v1785
    %v1787 = vpop.f32.mrb[0].mxu0
    %v1788 = vadd.f32 %v1587, %v1787
    %1789 = vmatprep.mubr.bf16.mxu0 0
    %1790 = vmatmul.mubr.bf16.gmra.mrb[0].mxu0 %v1612
    %v1791 = vpop.f32.mrb[0].mxu0
    %v1792 = vadd.f32 %v1583, %v1791
    %v1793 = vpop.f32.mrb[0].mxu0
    %v1794 = vadd.f32 %v1587, %v1793
    %v1795 = vpop.f32.mrb[0].mxu0
    %v1796 = vadd.f32 %v1583, %v1795
    %v1797 = vpop.f32.mrb[0].mxu0
    %v1798 = vadd.f32 %v1587, %v1797
    %1799 = vmatprep.mubr.bf16.mxu0 0
    %1800 = vmatmul.mubr.bf16.gmra.mrb[0].mxu0 %v1613
    %v1801 = vpop.f32.mrb[0].mxu0
    %v1802 = vadd.f32 %v1583, %v1801
    %v1803 = vpop.f32.mrb[0].mxu0
    %v1804 = vadd.f32 %v1587, %v1803
    %v1805 = vpop.f32.mrb[0].mxu0
    %v1806 = vadd.f32 %v1583, %v1805
    %v1807 = vpop.f32.mrb[0].mxu0
    %v1808 = vadd.f32 %v1587, %v1807
    %1809 = vmatprep.mubr.bf16.mxu0 0
    %1810 = vmatmul.mubr.bf16.gmra.mrb[0].mxu0 %v1614
    %v1811 = vpop.f32.mrb[0].mxu0
    %v1812 = vadd.f32 %v1583, %v1811
    %v1813 = vpop.f32.mrb[0].mxu0
    %v1814 = vadd.f32 %v1587, %v1813
    %v1815 = vpop.f32.mrb[0].mxu0
    %v1816 = vadd.f32 %v1583, %v1815
    %v1817 = vpop.f32.mrb[0].mxu0
    %v1818 = vadd.f32 %v1587, %v1817
    %1819 = vdwg.mxu0
    %1820 = vmatprep.subr.bf16.mxu0 0
    %1821 = vmatpush1.bf16.msra.mxu0 %v1701
    %1822 = vmatprep.subr.bf16.mxu0 0
    %1823 = vmatpush1.bf16.msra.mxu0 %v1704
    %1824 = vmatprep.subr.bf16.mxu0 0
    %1825 = vmatpush1.bf16.msra.mxu0 %v1707
    %1826 = vmatprep.subr.bf16.mxu0 0
    %1827 = vmatpush1.bf16.msra.mxu0 %v1710
    %1828 = vmatprep.subr.bf16.mxu0 0
    %1829 = vmatpush1.bf16.msra.mxu0 %v1713
    %1830 = vmatprep.subr.bf16.mxu0 0
    %1831 = vmatpush1.bf16.msra.mxu0 %v1716
    %1832 = vmatprep.subr.bf16.mxu0 0
    %1833 = vmatpush1.bf16.msra.mxu0 %v1719
    %1834 = vmatprep.subr.bf16.mxu0 0
    %1835 = vmatpush1.bf16.msra.mxu0 %v1722
    %1836 = vmatprep.subr.bf16.mxu0 0
    %1837 = vmatpush1.bf16.msra.mxu0 0
    %1838 = vmatprep.subr.bf16.mxu0 0
    %1839 = vmatpush1.bf16.msra.mxu0 0
    %1840 = vmatprep.subr.bf16.mxu0 0
    %1841 = vmatpush1.bf16.msra.mxu0 0
    %1842 = vmatprep.subr.bf16.mxu0 0
    %1843 = vmatpush1.bf16.msra.mxu0 0
    %1844 = vmatprep.subr.bf16.mxu0 0
    %1845 = vmatpush1.bf16.msra.mxu0 0
    %1846 = vmatprep.subr.bf16.mxu0 0
    %1847 = vmatpush1.bf16.msra.mxu0 0
    %1848 = vmatprep.subr.bf16.mxu0 0
    %1849 = vmatpush1.bf16.msra.mxu0 0
    %1850 = vmatprep.subr.bf16.mxu0 0
    %1851 = vmatpush1.bf16.msra.mxu0 0
    %1852 = vmatprep.mubr.bf16.mxu0 0
    %1853 = vmatmul.mubr.bf16.gmra.mrb[0].mxu0 %v1611
    %v1854 = vpop.f32.mrb[0].mxu0
    %v1855 = vadd.f32 %v1591, %v1854
    %v1856 = vpop.f32.mrb[0].mxu0
    %v1857 = vpop.f32.mrb[0].mxu0
    %v1858 = vadd.f32 %v1591, %v1857
    %v1859 = vpop.f32.mrb[0].mxu0
    %1860 = vmatprep.mubr.bf16.mxu0 0
    %1861 = vmatmul.mubr.bf16.gmra.mrb[0].mxu0 %v1612
    %v1862 = vpop.f32.mrb[0].mxu0
    %v1863 = vadd.f32 %v1591, %v1862
    %v1864 = vpop.f32.mrb[0].mxu0
    %v1865 = vpop.f32.mrb[0].mxu0
    %v1866 = vadd.f32 %v1591, %v1865
    %v1867 = vpop.f32.mrb[0].mxu0
    %1868 = vmatprep.mubr.bf16.mxu0 0
    %1869 = vmatmul.mubr.bf16.gmra.mrb[0].mxu0 %v1613
    %v1870 = vpop.f32.mrb[0].mxu0
    %v1871 = vadd.f32 %v1591, %v1870
    %v1872 = vpop.f32.mrb[0].mxu0
    %v1873 = vpop.f32.mrb[0].mxu0
    %v1874 = vadd.f32 %v1591, %v1873
    %v1875 = vpop.f32.mrb[0].mxu0
    %1876 = vmatprep.mubr.bf16.mxu0 0
    %1877 = vmatmul.mubr.bf16.gmra.mrb[0].mxu0 %v1614
    %v1878 = vpop.f32.mrb[0].mxu0
    %v1879 = vadd.f32 %v1591, %v1878
    %v1880 = vpop.f32.mrb[0].mxu0
    %v1881 = vpop.f32.mrb[0].mxu0
    %v1882 = vadd.f32 %v1591, %v1881
    %v1883 = vpop.f32.mrb[0].mxu0
    %1884 = vdwg.mxu0
    %1885 = vst [vmem:[#allocation2] sm:$0xff] %v1782
    %1886 = vst [vmem:[#allocation2 + $0x8] sm:$0xff] %v1784
    %1887 = vst [vmem:[#allocation2 + $0x10] sm:$0xff] %v1855
    %1888 = vst [vmem:[#allocation2 + $0x18] sm:$0xff] %v1786
    %1889 = vst [vmem:[#allocation2 + $0x20] sm:$0xff] %v1788
    %1890 = vst [vmem:[#allocation2 + $0x28] sm:$0xff] %v1858
    %1891 = vst [vmem:[#allocation2 + $0x30] sm:$0xff] %v1792
    %1892 = vst [vmem:[#allocation2 + $0x38] sm:$0xff] %v1794
    %1893 = vst [vmem:[#allocation2 + $0x40] sm:$0xff] %v1863
    %1894 = vst [vmem:[#allocation2 + $0x48] sm:$0xff] %v1796
    %1895 = vst [vmem:[#allocation2 + $0x50] sm:$0xff] %v1798
    %1896 = vst [vmem:[#allocation2 + $0x58] sm:$0xff] %v1866
    %1897 = vst [vmem:[#allocation2 + $0x60] sm:$0xff] %v1802
    %1898 = vst [vmem:[#allocation2 + $0x68] sm:$0xff] %v1804
    %1899 = vst [vmem:[#allocation2 + $0x70] sm:$0xff] %v1871
    %1900 = vst [vmem:[#allocation2 + $0x78] sm:$0xff] %v1806
    %1901 = vst [vmem:[#allocation2 + $0x80] sm:$0xff] %v1808
    %1902 = vst [vmem:[#allocation2 + $0x88] sm:$0xff] %v1874
    %1903 = vst [vmem:[#allocation2 + $0x90] sm:$0xff] %v1812
    %1904 = vst [vmem:[#allocation2 + $0x98] sm:$0xff] %v1814
    %1905 = vst [vmem:[#allocation2 + $0xa0] sm:$0xff] %v1879
    %1906 = vst [vmem:[#allocation2 + $0xa8] sm:$0xff] %v1816
    %1907 = vst [vmem:[#allocation2 + $0xb0] sm:$0xff] %v1818
    %1908 = vst [vmem:[#allocation2 + $0xb8] sm:$0xff] %v1882
    %v1909 = vld [vmem:[#allocation10] sm:$0xff]
    %v1910 = vld [vmem:[#allocation10 + $0x8] sm:$0xf]
    %v1911 = vld [vmem:[#allocation10 + $0xc] sm:$0xff]
    %v1912 = vld [vmem:[#allocation10 + $0x14] sm:$0xf]
    %v1913 = vld [vmem:[#allocation10 + $0x18] sm:$0xff]
    %v1914 = vld [vmem:[#allocation10 + $0x20] sm:$0xf]
    %v1915 = vld [vmem:[#allocation10 + $0x24] sm:$0xff]
    %v1916 = vld [vmem:[#allocation10 + $0x2c] sm:$0xf]
    %v1917 = vld [vmem:[#allocation10 + $0x30] sm:$0xff]
    %v1918 = vld [vmem:[#allocation10 + $0x38] sm:$0xf]
    %v1919 = vld [vmem:[#allocation10 + $0x3c] sm:$0xff]
    %v1920 = vld [vmem:[#allocation10 + $0x44] sm:$0xf]
    %v1921 = vld [vmem:[#allocation10 + $0x48] sm:$0xff]
    %v1922 = vld [vmem:[#allocation10 + $0x50] sm:$0xf]
    %v1923 = vld [vmem:[#allocation10 + $0x54] sm:$0xff]
    %v1924 = vld [vmem:[#allocation10 + $0x5c] sm:$0xf]
    %v1925 = vld [vmem:[#allocation10 + $0x60] sm:$0xff]
    %v1926 = vld [vmem:[#allocation10 + $0x68] sm:$0xf]
    %v1927 = vld [vmem:[#allocation10 + $0x6c] sm:$0xff]
    %v1928 = vld [vmem:[#allocation10 + $0x74] sm:$0xf]
    %v1929 = vld [vmem:[#allocation10 + $0x78] sm:$0xff]
    %v1930 = vld [vmem:[#allocation10 + $0x80] sm:$0xf]
    %v1931 = vld [vmem:[#allocation10 + $0x84] sm:$0xff]
    %v1932 = vld [vmem:[#allocation10 + $0x8c] sm:$0xf]
    %v1933 = vld [vmem:[#allocation10 + $0x90] sm:$0xff]
    %v1934 = vld [vmem:[#allocation10 + $0x98] sm:$0xf]
    %v1935 = vld [vmem:[#allocation10 + $0x9c] sm:$0xff]
    %v1936 = vld [vmem:[#allocation10 + $0xa4] sm:$0xf]
    %v1937 = vld [vmem:[#allocation10 + $0xa8] sm:$0xff]
    %v1938 = vld [vmem:[#allocation10 + $0xb0] sm:$0xf]
    %v1939 = vld [vmem:[#allocation10 + $0xb4] sm:$0xff]
    %v1940 = vld [vmem:[#allocation10 + $0xbc] sm:$0xf]
    %v1941 = vld [vmem:[%s8] sm:$0x1]
    %v1942 = vld [vmem:[#allocation2] sm:$0xff]
    %v1943 = vld [vmem:[#allocation2 + $0x8] sm:$0xff]
    %v1944 = vld [vmem:[#allocation2 + $0x10] sm:$0xff]
    %v1977 = vunpack.c.l.b16 %v1909
    %v1978 = vunpack.c.h.b16 %v1909
    %v1979 = vunpack.c.l.b16 %v1910
    %v1980 = vunpack.c.l.b16 %v1911
    %v1981 = vunpack.c.h.b16 %v1911
    %v1982 = vunpack.c.l.b16 %v1912
    %v1983 = vunpack.c.l.b16 %v1913
    %v1984 = vunpack.c.h.b16 %v1913
    %v1985 = vunpack.c.l.b16 %v1914
    %v1986 = vunpack.c.l.b16 %v1915
    %v1987 = vunpack.c.h.b16 %v1915
    %v1988 = vunpack.c.l.b16 %v1916
    %v1989 = vunpack.c.l.b16 %v1917
    %v1990 = vunpack.c.h.b16 %v1917
    %v1991 = vunpack.c.l.b16 %v1918
    %v1992 = vunpack.c.l.b16 %v1919
    %v1993 = vunpack.c.h.b16 %v1919
    %v1994 = vunpack.c.l.b16 %v1920
    %v1995 = vunpack.c.l.b16 %v1921
    %v1996 = vunpack.c.h.b16 %v1921
    %v1997 = vunpack.c.l.b16 %v1922
    %v1998 = vunpack.c.l.b16 %v1923
    %v1999 = vunpack.c.h.b16 %v1923
    %v2000 = vunpack.c.l.b16 %v1924
    %v2001 = vunpack.c.l.b16 %v1925
    %v2002 = vunpack.c.h.b16 %v1925
    %v2003 = vunpack.c.l.b16 %v1926
    %v2004 = vunpack.c.l.b16 %v1927
    %v2005 = vunpack.c.h.b16 %v1927
    %v2006 = vunpack.c.l.b16 %v1928
    %v2007 = vunpack.c.l.b16 %v1929
    %v2008 = vunpack.c.h.b16 %v1929
    %v2009 = vunpack.c.l.b16 %v1930
    %v2010 = vunpack.c.l.b16 %v1931
    %v2011 = vunpack.c.h.b16 %v1931
    %v2012 = vunpack.c.l.b16 %v1932
    %v2013 = vunpack.c.l.b16 %v1933
    %v2014 = vunpack.c.h.b16 %v1933
    %v2015 = vunpack.c.l.b16 %v1934
    %v2016 = vunpack.c.l.b16 %v1935
    %v2017 = vunpack.c.h.b16 %v1935
    %v2018 = vunpack.c.l.b16 %v1936
    %v2019 = vunpack.c.l.b16 %v1937
    %v2020 = vunpack.c.h.b16 %v1937
    %v2021 = vunpack.c.l.b16 %v1938
    %v2022 = vunpack.c.l.b16 %v1939
    %v2023 = vunpack.c.h.b16 %v1939
    %v2024 = vunpack.c.l.b16 %v1940
    %v2025 = vpack.c.b16 %v1980, %v1977
    %v2026 = vpack.c.b16 %v1981, %v1978
    %v2027 = vpack.c.b16 %v1982, %v1979
    %v2028 = vpack.c.b16 %v1986, %v1983
    %v2029 = vpack.c.b16 %v1987, %v1984
    %v2030 = vpack.c.b16 %v1988, %v1985
    %v2031 = vpack.c.b16 %v1992, %v1989
    %v2032 = vpack.c.b16 %v1993, %v1990
    %v2033 = vpack.c.b16 %v1994, %v1991
    %v2034 = vpack.c.b16 %v1998, %v1995
    %v2035 = vpack.c.b16 %v1999, %v1996
    %v2036 = vpack.c.b16 %v2000, %v1997
    %v2037 = vpack.c.b16 %v2004, %v2001
    %v2038 = vpack.c.b16 %v2005, %v2002
    %v2039 = vpack.c.b16 %v2006, %v2003
    %v2040 = vpack.c.b16 %v2010, %v2007
    %v2041 = vpack.c.b16 %v2011, %v2008
    %v2042 = vpack.c.b16 %v2012, %v2009
    %v2043 = vpack.c.b16 %v2016, %v2013
    %v2044 = vpack.c.b16 %v2017, %v2014
    %v2045 = vpack.c.b16 %v2018, %v2015
    %v2046 = vpack.c.b16 %v2022, %v2019
    %v2047 = vpack.c.b16 %v2023, %v2020
    %v2048 = vpack.c.b16 %v2024, %v2021
    %2073 = vmatprep.subr.bf16.mxu0 %v2026
    %2074 = vmatpush1.bf16.msra.mxu0 %v2025
    %2075 = vmatprep.subr.bf16.mxu0 %v2029
    %2076 = vmatpush1.bf16.msra.mxu0 %v2028
    %2077 = vmatprep.subr.bf16.mxu0 %v2032
    %2078 = vmatpush1.bf16.msra.mxu0 %v2031
    %2079 = vmatprep.subr.bf16.mxu0 %v2035
    %2080 = vmatpush1.bf16.msra.mxu0 %v2034
    %2081 = vmatprep.subr.bf16.mxu0 %v2038
    %2082 = vmatpush1.bf16.msra.mxu0 %v2037
    %2083 = vmatprep.subr.bf16.mxu0 %v2041
    %2084 = vmatpush1.bf16.msra.mxu0 %v2040
    %2085 = vmatprep.subr.bf16.mxu0 %v2044
    %2086 = vmatpush1.bf16.msra.mxu0 %v2043
    %2087 = vmatprep.subr.bf16.mxu0 %v2047
    %2088 = vmatpush1.bf16.msra.mxu0 %v2046
    %2089 = vmatprep.subr.bf16.mxu0 0
    %2090 = vmatpush1.bf16.msra.mxu0 0
    %2091 = vmatprep.subr.bf16.mxu0 0
    %2092 = vmatpush1.bf16.msra.mxu0 0
    %2093 = vmatprep.subr.bf16.mxu0 0
    %2094 = vmatpush1.bf16.msra.mxu0 0
    %2095 = vmatprep.subr.bf16.mxu0 0
    %2096 = vmatpush1.bf16.msra.mxu0 0
    %2097 = vmatprep.subr.bf16.mxu0 0
    %2098 = vmatpush1.bf16.msra.mxu0 0
    %2099 = vmatprep.subr.bf16.mxu0 0
    %2100 = vmatpush1.bf16.msra.mxu0 0
    %2101 = vmatprep.subr.bf16.mxu0 0
    %2102 = vmatpush1.bf16.msra.mxu0 0
    %2103 = vmatprep.subr.bf16.mxu0 0
    %2104 = vmatpush1.bf16.msra.mxu0 0
    %2105 = vmatprep.mubr.bf16.mxu0 0
    %2106 = vmatmul.mubr.bf16.gmra.mrb[0].mxu0 0
    %v2107 = vpop.f32.mrb[0].mxu0
    %v2108 = vadd.f32 0.0, %v2107
    %v2109 = vpop.f32.mrb[0].mxu0
    %v2110 = vadd.f32 0.0, %v2109
    %v2111 = vpop.f32.mrb[0].mxu0
    %v2112 = vpop.f32.mrb[0].mxu0
    %2113 = vdwg.mxu0
    %2114 = vmatprep.subr.bf16.mxu0 0
    %2115 = vmatpush1.bf16.msra.mxu0 %v2027
    %2116 = vmatprep.subr.bf16.mxu0 0
    %2117 = vmatpush1.bf16.msra.mxu0 %v2030
    %2118 = vmatprep.subr.bf16.mxu0 0
    %2119 = vmatpush1.bf16.msra.mxu0 %v2033
    %2120 = vmatprep.subr.bf16.mxu0 0
    %2121 = vmatpush1.bf16.msra.mxu0 %v2036
    %2122 = vmatprep.subr.bf16.mxu0 0
    %2123 = vmatpush1.bf16.msra.mxu0 %v2039
    %2124 = vmatprep.subr.bf16.mxu0 0
    %2125 = vmatpush1.bf16.msra.mxu0 %v2042
    %2126 = vmatprep.subr.bf16.mxu0 0
    %2127 = vmatpush1.bf16.msra.mxu0 %v2045
    %2128 = vmatprep.subr.bf16.mxu0 0
    %2129 = vmatpush1.bf16.msra.mxu0 %v2048
    %2130 = vmatprep.subr.bf16.mxu0 0
    %2131 = vmatpush1.bf16.msra.mxu0 0
    %2132 = vmatprep.subr.bf16.mxu0 0
    %2133 = vmatpush1.bf16.msra.mxu0 0
    %2134 = vmatprep.subr.bf16.mxu0 0
    %2135 = vmatpush1.bf16.msra.mxu0 0
    %2136 = vmatprep.subr.bf16.mxu0 0
    %2137 = vmatpush1.bf16.msra.mxu0 0
    %2138 = vmatprep.subr.bf16.mxu0 0
    %2139 = vmatpush1.bf16.msra.mxu0 0
    %2140 = vmatprep.subr.bf16.mxu0 0
    %2141 = vmatpush1.bf16.msra.mxu0 0
    %2142 = vmatprep.subr.bf16.mxu0 0
    %2143 = vmatpush1.bf16.msra.mxu0 0
    %2144 = vmatprep.subr.bf16.mxu0 0
    %2145 = vmatpush1.bf16.msra.mxu0 0
    %2146 = vmatprep.mubr.bf16.mxu0 0
    %2147 = vmatmul.mubr.bf16.gmra.mrb[0].mxu0 0
    %v2148 = vpop.f32.mrb[0].mxu0
    %v2149 = vadd.f32 0.0, %v2148
    %v2150 = vpop.f32.mrb[0].mxu0
    %v2151 = vpop.f32.mrb[0].mxu0
    %v2152 = vpop.f32.mrb[0].mxu0
    %2153 = vdwg.mxu0
    %v2154 = vadd.f32 %v1942, %v2108
    %v2155 = vxor.u32 %v2154, 2147483648
    %v2156 = vmul.f32 %v2155, 1.442695
    %v2157 = vpow.pop %v2156
    %v2158 = vadd.f32 %v2157, 1.0
    %v2159 = vrcp.pop %v2158
    %v2160 = vmul.f32 1.0, %v2159
    %v2161 = vadd.f32 %v1943, %v2110
    %v2162 = vxor.u32 %v2161, 2147483648
    %v2163 = vmul.f32 %v2162, 1.442695
    %v2164 = vpow.pop %v2163
    %v2165 = vadd.f32 %v2164, 1.0
    %v2166 = vrcp.pop %v2165
    %v2167 = vmul.f32 1.0, %v2166
    %v2169 = vlaneseq
    %v2170 = vshrl.u32 %v2169, 7
    %v2171 = vsub.s32 0, %v2170
    %v2172 = vrot.slane %v1941, %v2171
    %v2174 = vadd.f32 %v2149, %v2172
    %v2175 = vmul.f32 %v2160, %v2174
    %v2176 = vadd.f32 %v1944, %v2175
    %v2177 = vtanh.pop %v2176
    %v2178 = vsub.f32 1.0, %v2167
    %v2179 = vmul.f32 %v2178, %v2177
    %v2180 = vmul.f32 %v2167, 0.0
    %v2181 = vadd.f32 %v2179, %v2180
    %v2182 = vld [vmem:[%s768] sm:$0xff]
    %v2183 = vld [vmem:[%s768 + $0x8] sm:$0xff]
    %v2184 = vld [vmem:[%s768 + $0x10] sm:$0xff]
    %v2185 = vpack.c.bf16 %v2181, %v2181
    %2186 = vmatprep.subr.bf16.mxu0 %v2026
    %2187 = vmatpush1.bf16.msra.mxu0 %v2025
    %2188 = vmatprep.subr.bf16.mxu0 %v2029
    %2189 = vmatpush1.bf16.msra.mxu0 %v2028
    %2190 = vmatprep.subr.bf16.mxu0 %v2032
    %2191 = vmatpush1.bf16.msra.mxu0 %v2031
    %2192 = vmatprep.subr.bf16.mxu0 %v2035
    %2193 = vmatpush1.bf16.msra.mxu0 %v2034
    %2194 = vmatprep.subr.bf16.mxu0 %v2038
    %2195 = vmatpush1.bf16.msra.mxu0 %v2037
    %2196 = vmatprep.subr.bf16.mxu0 %v2041
    %2197 = vmatpush1.bf16.msra.mxu0 %v2040
    %2198 = vmatprep.subr.bf16.mxu0 %v2044
    %2199 = vmatpush1.bf16.msra.mxu0 %v2043
    %2200 = vmatprep.subr.bf16.mxu0 %v2047
    %2201 = vmatpush1.bf16.msra.mxu0 %v2046
    %2202 = vmatprep.subr.bf16.mxu0 0
    %2203 = vmatpush1.bf16.msra.mxu0 0
    %2204 = vmatprep.subr.bf16.mxu0 0
    %2205 = vmatpush1.bf16.msra.mxu0 0
    %2206 = vmatprep.subr.bf16.mxu0 0
    %2207 = vmatpush1.bf16.msra.mxu0 0
    %2208 = vmatprep.subr.bf16.mxu0 0
    %2209 = vmatpush1.bf16.msra.mxu0 0
    %2210 = vmatprep.subr.bf16.mxu0 0
    %2211 = vmatpush1.bf16.msra.mxu0 0
    %2212 = vmatprep.subr.bf16.mxu0 0
    %2213 = vmatpush1.bf16.msra.mxu0 0
    %2214 = vmatprep.subr.bf16.mxu0 0
    %2215 = vmatpush1.bf16.msra.mxu0 0
    %2216 = vmatprep.subr.bf16.mxu0 0
    %2217 = vmatpush1.bf16.msra.mxu0 0
    %2218 = vmatprep.mubr.bf16.mxu0 0
    %2219 = vmatmul.mubr.bf16.gmra.mrb[0].mxu0 %v2185
    %v2220 = vpop.f32.mrb[0].mxu0
    %v2221 = vadd.f32 0.0, %v2220
    %v2222 = vpop.f32.mrb[0].mxu0
    %v2223 = vadd.f32 0.0, %v2222
    %v2224 = vpop.f32.mrb[0].mxu0
    %v2225 = vpop.f32.mrb[0].mxu0
    %2226 = vdwg.mxu0
    %2227 = vmatprep.subr.bf16.mxu0 0
    %2228 = vmatpush1.bf16.msra.mxu0 %v2027
    %2229 = vmatprep.subr.bf16.mxu0 0
    %2230 = vmatpush1.bf16.msra.mxu0 %v2030
    %2231 = vmatprep.subr.bf16.mxu0 0
    %2232 = vmatpush1.bf16.msra.mxu0 %v2033
    %2233 = vmatprep.subr.bf16.mxu0 0
    %2234 = vmatpush1.bf16.msra.mxu0 %v2036
    %2235 = vmatprep.subr.bf16.mxu0 0
    %2236 = vmatpush1.bf16.msra.mxu0 %v2039
    %2237 = vmatprep.subr.bf16.mxu0 0
    %2238 = vmatpush1.bf16.msra.mxu0 %v2042
    %2239 = vmatprep.subr.bf16.mxu0 0
    %2240 = vmatpush1.bf16.msra.mxu0 %v2045
    %2241 = vmatprep.subr.bf16.mxu0 0
    %2242 = vmatpush1.bf16.msra.mxu0 %v2048
    %2243 = vmatprep.subr.bf16.mxu0 0
    %2244 = vmatpush1.bf16.msra.mxu0 0
    %2245 = vmatprep.subr.bf16.mxu0 0
    %2246 = vmatpush1.bf16.msra.mxu0 0
    %2247 = vmatprep.subr.bf16.mxu0 0
    %2248 = vmatpush1.bf16.msra.mxu0 0
    %2249 = vmatprep.subr.bf16.mxu0 0
    %2250 = vmatpush1.bf16.msra.mxu0 0
    %2251 = vmatprep.subr.bf16.mxu0 0
    %2252 = vmatpush1.bf16.msra.mxu0 0
    %2253 = vmatprep.subr.bf16.mxu0 0
    %2254 = vmatpush1.bf16.msra.mxu0 0
    %2255 = vmatprep.subr.bf16.mxu0 0
    %2256 = vmatpush1.bf16.msra.mxu0 0
    %2257 = vmatprep.subr.bf16.mxu0 0
    %2258 = vmatpush1.bf16.msra.mxu0 0
    %2259 = vmatprep.mubr.bf16.mxu0 0
    %2260 = vmatmul.mubr.bf16.gmra.mrb[0].mxu0 %v2185
    %v2261 = vpop.f32.mrb[0].mxu0
    %v2262 = vadd.f32 0.0, %v2261
    %v2263 = vpop.f32.mrb[0].mxu0
    %v2264 = vpop.f32.mrb[0].mxu0
    %v2265 = vpop.f32.mrb[0].mxu0
    %2266 = vdwg.mxu0
    %v2267 = vadd.f32 %v2182, %v2221
    %v2268 = vxor.u32 %v2267, 2147483648
    %v2269 = vmul.f32 %v2268, 1.442695
    %v2270 = vpow.pop %v2269
    %v2271 = vadd.f32 %v2270, 1.0
    %v2272 = vrcp.pop %v2271
    %v2273 = vmul.f32 1.0, %v2272
    %v2274 = vadd.f32 %v2183, %v2223
    %v2275 = vxor.u32 %v2274, 2147483648
    %v2276 = vmul.f32 %v2275, 1.442695
    %v2277 = vpow.pop %v2276
    %v2278 = vadd.f32 %v2277, 1.0
    %v2279 = vrcp.pop %v2278
    %v2280 = vmul.f32 1.0, %v2279
    %v2281 = vadd.f32 %v2262, %v2172
    %v2282 = vmul.f32 %v2273, %v2281
    %v2283 = vadd.f32 %v2184, %v2282
    %v2284 = vtanh.pop %v2283
    %v2285 = vsub.f32 1.0, %v2280
    %v2286 = vmul.f32 %v2285, %v2284
    %v2287 = vmul.f32 %v2280, %v2181
    %v2288 = vadd.f32 %v2286, %v2287
    %v2289 = vld [vmem:[%s878] sm:$0xff]
    %v2290 = vld [vmem:[%s878 + $0x8] sm:$0xff]
    %v2291 = vld [vmem:[%s878 + $0x10] sm:$0xff]
    %v2292 = vpack.c.bf16 %v2288, %v2288
    %2293 = vmatprep.subr.bf16.mxu0 %v2026
    %2294 = vmatpush1.bf16.msra.mxu0 %v2025
    %2295 = vmatprep.subr.bf16.mxu0 %v2029
    %2296 = vmatpush1.bf16.msra.mxu0 %v2028
    %2297 = vmatprep.subr.bf16.mxu0 %v2032
    %2298 = vmatpush1.bf16.msra.mxu0 %v2031
    %2299 = vmatprep.subr.bf16.mxu0 %v2035
    %2300 = vmatpush1.bf16.msra.mxu0 %v2034
    %2301 = vmatprep.subr.bf16.mxu0 %v2038
    %2302 = vmatpush1.bf16.msra.mxu0 %v2037
    %2303 = vmatprep.subr.bf16.mxu0 %v2041
    %2304 = vmatpush1.bf16.msra.mxu0 %v2040
    %2305 = vmatprep.subr.bf16.mxu0 %v2044
    %2306 = vmatpush1.bf16.msra.mxu0 %v2043
    %2307 = vmatprep.subr.bf16.mxu0 %v2047
    %2308 = vmatpush1.bf16.msra.mxu0 %v2046
    %2309 = vmatprep.subr.bf16.mxu0 0
    %2310 = vmatpush1.bf16.msra.mxu0 0
    %2311 = vmatprep.subr.bf16.mxu0 0
    %2312 = vmatpush1.bf16.msra.mxu0 0
    %2313 = vmatprep.subr.bf16.mxu0 0
    %2314 = vmatpush1.bf16.msra.mxu0 0
    %2315 = vmatprep.subr.bf16.mxu0 0
    %2316 = vmatpush1.bf16.msra.mxu0 0
    %2317 = vmatprep.subr.bf16.mxu0 0
    %2318 = vmatpush1.bf16.msra.mxu0 0
    %2319 = vmatprep.subr.bf16.mxu0 0
    %2320 = vmatpush1.bf16.msra.mxu0 0
    %2321 = vmatprep.subr.bf16.mxu0 0
    %2322 = vmatpush1.bf16.msra.mxu0 0
    %2323 = vmatprep.subr.bf16.mxu0 0
    %2324 = vmatpush1.bf16.msra.mxu0 0
    %2325 = vmatprep.mubr.bf16.mxu0 0
    %2326 = vmatmul.mubr.bf16.gmra.mrb[0].mxu0 %v2292
    %v2327 = vpop.f32.mrb[0].mxu0
    %v2328 = vadd.f32 0.0, %v2327
    %v2329 = vpop.f32.mrb[0].mxu0
    %v2330 = vadd.f32 0.0, %v2329
    %v2331 = vpop.f32.mrb[0].mxu0
    %v2332 = vpop.f32.mrb[0].mxu0
    %2333 = vdwg.mxu0
    %2334 = vmatprep.subr.bf16.mxu0 0
    %2335 = vmatpush1.bf16.msra.mxu0 %v2027
    %2336 = vmatprep.subr.bf16.mxu0 0
    %2337 = vmatpush1.bf16.msra.mxu0 %v2030
    %2338 = vmatprep.subr.bf16.mxu0 0
    %2339 = vmatpush1.bf16.msra.mxu0 %v2033
    %2340 = vmatprep.subr.bf16.mxu0 0
    %2341 = vmatpush1.bf16.msra.mxu0 %v2036
    %2342 = vmatprep.subr.bf16.mxu0 0
    %2343 = vmatpush1.bf16.msra.mxu0 %v2039
    %2344 = vmatprep.subr.bf16.mxu0 0
    %2345 = vmatpush1.bf16.msra.mxu0 %v2042
    %2346 = vmatprep.subr.bf16.mxu0 0
    %2347 = vmatpush1.bf16.msra.mxu0 %v2045
    %2348 = vmatprep.subr.bf16.mxu0 0
    %2349 = vmatpush1.bf16.msra.mxu0 %v2048
    %2350 = vmatprep.subr.bf16.mxu0 0
    %2351 = vmatpush1.bf16.msra.mxu0 0
    %2352 = vmatprep.subr.bf16.mxu0 0
    %2353 = vmatpush1.bf16.msra.mxu0 0
    %2354 = vmatprep.subr.bf16.mxu0 0
    %2355 = vmatpush1.bf16.msra.mxu0 0
    %2356 = vmatprep.subr.bf16.mxu0 0
    %2357 = vmatpush1.bf16.msra.mxu0 0
    %2358 = vmatprep.subr.bf16.mxu0 0
    %2359 = vmatpush1.bf16.msra.mxu0 0
    %2360 = vmatprep.subr.bf16.mxu0 0
    %2361 = vmatpush1.bf16.msra.mxu0 0
    %2362 = vmatprep.subr.bf16.mxu0 0
    %2363 = vmatpush1.bf16.msra.mxu0 0
    %2364 = vmatprep.subr.bf16.mxu0 0
    %2365 = vmatpush1.bf16.msra.mxu0 0
    %2366 = vmatprep.mubr.bf16.mxu0 0
    %2367 = vmatmul.mubr.bf16.gmra.mrb[0].mxu0 %v2292
    %v2368 = vpop.f32.mrb[0].mxu0
    %v2369 = vadd.f32 0.0, %v2368
    %v2370 = vpop.f32.mrb[0].mxu0
    %v2371 = vpop.f32.mrb[0].mxu0
    %v2372 = vpop.f32.mrb[0].mxu0
    %2373 = vdwg.mxu0
    %v2374 = vadd.f32 %v2289, %v2328
    %v2375 = vxor.u32 %v2374, 2147483648
    %v2376 = vmul.f32 %v2375, 1.442695
    %v2377 = vpow.pop %v2376
    %v2378 = vadd.f32 %v2377, 1.0
    %v2379 = vrcp.pop %v2378
    %v2380 = vmul.f32 1.0, %v2379
    %v2381 = vadd.f32 %v2290, %v2330
    %v2382 = vxor.u32 %v2381, 2147483648
    %v2383 = vmul.f32 %v2382, 1.442695
    %v2384 = vpow.pop %v2383
    %v2385 = vadd.f32 %v2384, 1.0
    %v2386 = vrcp.pop %v2385
    %v2387 = vmul.f32 1.0, %v2386
    %v2388 = vadd.f32 %v2369, %v2172
    %v2389 = vmul.f32 %v2380, %v2388
    %v2390 = vadd.f32 %v2291, %v2389
    %v2391 = vtanh.pop %v2390
    %v2392 = vsub.f32 1.0, %v2387
    %v2393 = vmul.f32 %v2392, %v2391
    %v2394 = vmul.f32 %v2387, %v2288
    %v2395 = vadd.f32 %v2393, %v2394
    %v2396 = vld [vmem:[%s988] sm:$0xff]
    %v2397 = vld [vmem:[%s988 + $0x8] sm:$0xff]
    %v2398 = vld [vmem:[%s988 + $0x10] sm:$0xff]
    %v2399 = vpack.c.bf16 %v2395, %v2395
    %2400 = vmatprep.subr.bf16.mxu0 %v2026
    %2401 = vmatpush1.bf16.msra.mxu0 %v2025
    %2402 = vmatprep.subr.bf16.mxu0 %v2029
    %2403 = vmatpush1.bf16.msra.mxu0 %v2028
    %2404 = vmatprep.subr.bf16.mxu0 %v2032
    %2405 = vmatpush1.bf16.msra.mxu0 %v2031
    %2406 = vmatprep.subr.bf16.mxu0 %v2035
    %2407 = vmatpush1.bf16.msra.mxu0 %v2034
    %2408 = vmatprep.subr.bf16.mxu0 %v2038
    %2409 = vmatpush1.bf16.msra.mxu0 %v2037
    %2410 = vmatprep.subr.bf16.mxu0 %v2041
    %2411 = vmatpush1.bf16.msra.mxu0 %v2040
    %2412 = vmatprep.subr.bf16.mxu0 %v2044
    %2413 = vmatpush1.bf16.msra.mxu0 %v2043
    %2414 = vmatprep.subr.bf16.mxu0 %v2047
    %2415 = vmatpush1.bf16.msra.mxu0 %v2046
    %2416 = vmatprep.subr.bf16.mxu0 0
    %2417 = vmatpush1.bf16.msra.mxu0 0
    %2418 = vmatprep.subr.bf16.mxu0 0
    %2419 = vmatpush1.bf16.msra.mxu0 0
    %2420 = vmatprep.subr.bf16.mxu0 0
    %2421 = vmatpush1.bf16.msra.mxu0 0
    %2422 = vmatprep.subr.bf16.mxu0 0
    %2423 = vmatpush1.bf16.msra.mxu0 0
    %2424 = vmatprep.subr.bf16.mxu0 0
    %2425 = vmatpush1.bf16.msra.mxu0 0
    %2426 = vmatprep.subr.bf16.mxu0 0
    %2427 = vmatpush1.bf16.msra.mxu0 0
    %2428 = vmatprep.subr.bf16.mxu0 0
    %2429 = vmatpush1.bf16.msra.mxu0 0
    %2430 = vmatprep.subr.bf16.mxu0 0
    %2431 = vmatpush1.bf16.msra.mxu0 0
    %2432 = vmatprep.mubr.bf16.mxu0 0
    %2433 = vmatmul.mubr.bf16.gmra.mrb[0].mxu0 %v2399
    %v2434 = vpop.f32.mrb[0].mxu0
    %v2435 = vadd.f32 0.0, %v2434
    %v2436 = vpop.f32.mrb[0].mxu0
    %v2437 = vadd.f32 0.0, %v2436
    %v2438 = vpop.f32.mrb[0].mxu0
    %v2439 = vpop.f32.mrb[0].mxu0
    %2440 = vdwg.mxu0
    %2441 = vmatprep.subr.bf16.mxu0 0
    %2442 = vmatpush1.bf16.msra.mxu0 %v2027
    %2443 = vmatprep.subr.bf16.mxu0 0
    %2444 = vmatpush1.bf16.msra.mxu0 %v2030
    %2445 = vmatprep.subr.bf16.mxu0 0
    %2446 = vmatpush1.bf16.msra.mxu0 %v2033
    %2447 = vmatprep.subr.bf16.mxu0 0
    %2448 = vmatpush1.bf16.msra.mxu0 %v2036
    %2449 = vmatprep.subr.bf16.mxu0 0
    %2450 = vmatpush1.bf16.msra.mxu0 %v2039
    %2451 = vmatprep.subr.bf16.mxu0 0
    %2452 = vmatpush1.bf16.msra.mxu0 %v2042
    %2453 = vmatprep.subr.bf16.mxu0 0
    %2454 = vmatpush1.bf16.msra.mxu0 %v2045
    %2455 = vmatprep.subr.bf16.mxu0 0
    %2456 = vmatpush1.bf16.msra.mxu0 %v2048
    %2457 = vmatprep.subr.bf16.mxu0 0
    %2458 = vmatpush1.bf16.msra.mxu0 0
    %2459 = vmatprep.subr.bf16.mxu0 0
    %2460 = vmatpush1.bf16.msra.mxu0 0
    %2461 = vmatprep.subr.bf16.mxu0 0
    %2462 = vmatpush1.bf16.msra.mxu0 0
    %2463 = vmatprep.subr.bf16.mxu0 0
    %2464 = vmatpush1.bf16.msra.mxu0 0
    %2465 = vmatprep.subr.bf16.mxu0 0
    %2466 = vmatpush1.bf16.msra.mxu0 0
    %2467 = vmatprep.subr.bf16.mxu0 0
    %2468 = vmatpush1.bf16.msra.mxu0 0
    %2469 = vmatprep.subr.bf16.mxu0 0
    %2470 = vmatpush1.bf16.msra.mxu0 0
    %2471 = vmatprep.subr.bf16.mxu0 0
    %2472 = vmatpush1.bf16.msra.mxu0 0
    %2473 = vmatprep.mubr.bf16.mxu0 0
    %2474 = vmatmul.mubr.bf16.gmra.mrb[0].mxu0 %v2399
    %v2475 = vpop.f32.mrb[0].mxu0
    %v2476 = vadd.f32 0.0, %v2475
    %v2477 = vpop.f32.mrb[0].mxu0
    %v2478 = vpop.f32.mrb[0].mxu0
    %v2479 = vpop.f32.mrb[0].mxu0
    %2480 = vdwg.mxu0
    %v2481 = vadd.f32 %v2396, %v2435
    %v2482 = vxor.u32 %v2481, 2147483648
    %v2483 = vmul.f32 %v2482, 1.442695
    %v2484 = vpow.pop %v2483
    %v2485 = vadd.f32 %v2484, 1.0
    %v2486 = vrcp.pop %v2485
    %v2487 = vmul.f32 1.0, %v2486
    %v2488 = vadd.f32 %v2397, %v2437
    %v2489 = vxor.u32 %v2488, 2147483648
    %v2490 = vmul.f32 %v2489, 1.442695
    %v2491 = vpow.pop %v2490
    %v2492 = vadd.f32 %v2491, 1.0
    %v2493 = vrcp.pop %v2492
    %v2494 = vmul.f32 1.0, %v2493
    %v2495 = vadd.f32 %v2476, %v2172
    %v2496 = vmul.f32 %v2487, %v2495
    %v2497 = vadd.f32 %v2398, %v2496
    %v2498 = vtanh.pop %v2497
    %v2499 = vsub.f32 1.0, %v2494
    %v2500 = vmul.f32 %v2499, %v2498
    %v2501 = vmul.f32 %v2494, %v2395
    %v2502 = vadd.f32 %v2500, %v2501
    %v2503 = vld [vmem:[%s1098] sm:$0xff]
    %v2504 = vld [vmem:[%s1098 + $0x8] sm:$0xff]
    %v2505 = vld [vmem:[%s1098 + $0x10] sm:$0xff]
    %v2506 = vpack.c.bf16 %v2502, %v2502
    %2507 = vmatprep.subr.bf16.mxu0 %v2026
    %2508 = vmatpush1.bf16.msra.mxu0 %v2025
    %2509 = vmatprep.subr.bf16.mxu0 %v2029
    %2510 = vmatpush1.bf16.msra.mxu0 %v2028
    %2511 = vmatprep.subr.bf16.mxu0 %v2032
    %2512 = vmatpush1.bf16.msra.mxu0 %v2031
    %2513 = vmatprep.subr.bf16.mxu0 %v2035
    %2514 = vmatpush1.bf16.msra.mxu0 %v2034
    %2515 = vmatprep.subr.bf16.mxu0 %v2038
    %2516 = vmatpush1.bf16.msra.mxu0 %v2037
    %2517 = vmatprep.subr.bf16.mxu0 %v2041
    %2518 = vmatpush1.bf16.msra.mxu0 %v2040
    %2519 = vmatprep.subr.bf16.mxu0 %v2044
    %2520 = vmatpush1.bf16.msra.mxu0 %v2043
    %2521 = vmatprep.subr.bf16.mxu0 %v2047
    %2522 = vmatpush1.bf16.msra.mxu0 %v2046
    %2523 = vmatprep.subr.bf16.mxu0 0
    %2524 = vmatpush1.bf16.msra.mxu0 0
    %2525 = vmatprep.subr.bf16.mxu0 0
    %2526 = vmatpush1.bf16.msra.mxu0 0
    %2527 = vmatprep.subr.bf16.mxu0 0
    %2528 = vmatpush1.bf16.msra.mxu0 0
    %2529 = vmatprep.subr.bf16.mxu0 0
    %2530 = vmatpush1.bf16.msra.mxu0 0
    %2531 = vmatprep.subr.bf16.mxu0 0
    %2532 = vmatpush1.bf16.msra.mxu0 0
    %2533 = vmatprep.subr.bf16.mxu0 0
    %2534 = vmatpush1.bf16.msra.mxu0 0
    %2535 = vmatprep.subr.bf16.mxu0 0
    %2536 = vmatpush1.bf16.msra.mxu0 0
    %2537 = vmatprep.subr.bf16.mxu0 0
    %2538 = vmatpush1.bf16.msra.mxu0 0
    %2539 = vmatprep.mubr.bf16.mxu0 0
    %2540 = vmatmul.mubr.bf16.gmra.mrb[0].mxu0 %v2506
    %v2541 = vpop.f32.mrb[0].mxu0
    %v2542 = vadd.f32 0.0, %v2541
    %v2543 = vpop.f32.mrb[0].mxu0
    %v2544 = vadd.f32 0.0, %v2543
    %v2545 = vpop.f32.mrb[0].mxu0
    %v2546 = vpop.f32.mrb[0].mxu0
    %2547 = vdwg.mxu0
    %2548 = vmatprep.subr.bf16.mxu0 0
    %2549 = vmatpush1.bf16.msra.mxu0 %v2027
    %2550 = vmatprep.subr.bf16.mxu0 0
    %2551 = vmatpush1.bf16.msra.mxu0 %v2030
    %2552 = vmatprep.subr.bf16.mxu0 0
    %2553 = vmatpush1.bf16.msra.mxu0 %v2033
    %2554 = vmatprep.subr.bf16.mxu0 0
    %2555 = vmatpush1.bf16.msra.mxu0 %v2036
    %2556 = vmatprep.subr.bf16.mxu0 0
    %2557 = vmatpush1.bf16.msra.mxu0 %v2039
    %2558 = vmatprep.subr.bf16.mxu0 0
    %2559 = vmatpush1.bf16.msra.mxu0 %v2042
    %2560 = vmatprep.subr.bf16.mxu0 0
    %2561 = vmatpush1.bf16.msra.mxu0 %v2045
    %2562 = vmatprep.subr.bf16.mxu0 0
    %2563 = vmatpush1.bf16.msra.mxu0 %v2048
    %2564 = vmatprep.subr.bf16.mxu0 0
    %2565 = vmatpush1.bf16.msra.mxu0 0
    %2566 = vmatprep.subr.bf16.mxu0 0
    %2567 = vmatpush1.bf16.msra.mxu0 0
    %2568 = vmatprep.subr.bf16.mxu0 0
    %2569 = vmatpush1.bf16.msra.mxu0 0
    %2570 = vmatprep.subr.bf16.mxu0 0
    %2571 = vmatpush1.bf16.msra.mxu0 0
    %2572 = vmatprep.subr.bf16.mxu0 0
    %2573 = vmatpush1.bf16.msra.mxu0 0
    %2574 = vmatprep.subr.bf16.mxu0 0
    %2575 = vmatpush1.bf16.msra.mxu0 0
    %2576 = vmatprep.subr.bf16.mxu0 0
    %2577 = vmatpush1.bf16.msra.mxu0 0
    %2578 = vmatprep.subr.bf16.mxu0 0
    %2579 = vmatpush1.bf16.msra.mxu0 0
    %2580 = vmatprep.mubr.bf16.mxu0 0
    %2581 = vmatmul.mubr.bf16.gmra.mrb[0].mxu0 %v2506
    %v2582 = vpop.f32.mrb[0].mxu0
    %v2583 = vadd.f32 0.0, %v2582
    %v2584 = vpop.f32.mrb[0].mxu0
    %v2585 = vpop.f32.mrb[0].mxu0
    %v2586 = vpop.f32.mrb[0].mxu0
    %2587 = vdwg.mxu0
    %v2588 = vadd.f32 %v2503, %v2542
    %v2589 = vxor.u32 %v2588, 2147483648
    %v2590 = vmul.f32 %v2589, 1.442695
    %v2591 = vpow.pop %v2590
    %v2592 = vadd.f32 %v2591, 1.0
    %v2593 = vrcp.pop %v2592
    %v2594 = vmul.f32 1.0, %v2593
    %v2595 = vadd.f32 %v2504, %v2544
    %v2596 = vxor.u32 %v2595, 2147483648
    %v2597 = vmul.f32 %v2596, 1.442695
    %v2598 = vpow.pop %v2597
    %v2599 = vadd.f32 %v2598, 1.0
    %v2600 = vrcp.pop %v2599
    %v2601 = vmul.f32 1.0, %v2600
    %v2602 = vadd.f32 %v2583, %v2172
    %v2603 = vmul.f32 %v2594, %v2602
    %v2604 = vadd.f32 %v2505, %v2603
    %v2605 = vtanh.pop %v2604
    %v2606 = vsub.f32 1.0, %v2601
    %v2607 = vmul.f32 %v2606, %v2605
    %v2608 = vmul.f32 %v2601, %v2502
    %v2609 = vadd.f32 %v2607, %v2608
    %v2610 = vld [vmem:[%s1208] sm:$0xff]
    %v2611 = vld [vmem:[%s1208 + $0x8] sm:$0xff]
    %v2612 = vld [vmem:[%s1208 + $0x10] sm:$0xff]
    %v2613 = vpack.c.bf16 %v2609, %v2609
    %2614 = vmatprep.subr.bf16.mxu0 %v2026
    %2615 = vmatpush1.bf16.msra.mxu0 %v2025
    %2616 = vmatprep.subr.bf16.mxu0 %v2029
    %2617 = vmatpush1.bf16.msra.mxu0 %v2028
    %2618 = vmatprep.subr.bf16.mxu0 %v2032
    %2619 = vmatpush1.bf16.msra.mxu0 %v2031
    %2620 = vmatprep.subr.bf16.mxu0 %v2035
    %2621 = vmatpush1.bf16.msra.mxu0 %v2034
    %2622 = vmatprep.subr.bf16.mxu0 %v2038
    %2623 = vmatpush1.bf16.msra.mxu0 %v2037
    %2624 = vmatprep.subr.bf16.mxu0 %v2041
    %2625 = vmatpush1.bf16.msra.mxu0 %v2040
    %2626 = vmatprep.subr.bf16.mxu0 %v2044
    %2627 = vmatpush1.bf16.msra.mxu0 %v2043
    %2628 = vmatprep.subr.bf16.mxu0 %v2047
    %2629 = vmatpush1.bf16.msra.mxu0 %v2046
    %2630 = vmatprep.subr.bf16.mxu0 0
    %2631 = vmatpush1.bf16.msra.mxu0 0
    %2632 = vmatprep.subr.bf16.mxu0 0
    %2633 = vmatpush1.bf16.msra.mxu0 0
    %2634 = vmatprep.subr.bf16.mxu0 0
    %2635 = vmatpush1.bf16.msra.mxu0 0
    %2636 = vmatprep.subr.bf16.mxu0 0
    %2637 = vmatpush1.bf16.msra.mxu0 0
    %2638 = vmatprep.subr.bf16.mxu0 0
    %2639 = vmatpush1.bf16.msra.mxu0 0
    %2640 = vmatprep.subr.bf16.mxu0 0
    %2641 = vmatpush1.bf16.msra.mxu0 0
    %2642 = vmatprep.subr.bf16.mxu0 0
    %2643 = vmatpush1.bf16.msra.mxu0 0
    %2644 = vmatprep.subr.bf16.mxu0 0
    %2645 = vmatpush1.bf16.msra.mxu0 0
    %2646 = vmatprep.mubr.bf16.mxu0 0
    %2647 = vmatmul.mubr.bf16.gmra.mrb[0].mxu0 %v2613
    %v2648 = vpop.f32.mrb[0].mxu0
    %v2649 = vadd.f32 0.0, %v2648
    %v2650 = vpop.f32.mrb[0].mxu0
    %v2651 = vadd.f32 0.0, %v2650
    %v2652 = vpop.f32.mrb[0].mxu0
    %v2653 = vpop.f32.mrb[0].mxu0
    %2654 = vdwg.mxu0
    %2655 = vmatprep.subr.bf16.mxu0 0
    %2656 = vmatpush1.bf16.msra.mxu0 %v2027
    %2657 = vmatprep.subr.bf16.mxu0 0
    %2658 = vmatpush1.bf16.msra.mxu0 %v2030
    %2659 = vmatprep.subr.bf16.mxu0 0
    %2660 = vmatpush1.bf16.msra.mxu0 %v2033
    %2661 = vmatprep.subr.bf16.mxu0 0
    %2662 = vmatpush1.bf16.msra.mxu0 %v2036
    %2663 = vmatprep.subr.bf16.mxu0 0
    %2664 = vmatpush1.bf16.msra.mxu0 %v2039
    %2665 = vmatprep.subr.bf16.mxu0 0
    %2666 = vmatpush1.bf16.msra.mxu0 %v2042
    %2667 = vmatprep.subr.bf16.mxu0 0
    %2668 = vmatpush1.bf16.msra.mxu0 %v2045
    %2669 = vmatprep.subr.bf16.mxu0 0
    %2670 = vmatpush1.bf16.msra.mxu0 %v2048
    %2671 = vmatprep.subr.bf16.mxu0 0
    %2672 = vmatpush1.bf16.msra.mxu0 0
    %2673 = vmatprep.subr.bf16.mxu0 0
    %2674 = vmatpush1.bf16.msra.mxu0 0
    %2675 = vmatprep.subr.bf16.mxu0 0
    %2676 = vmatpush1.bf16.msra.mxu0 0
    %2677 = vmatprep.subr.bf16.mxu0 0
    %2678 = vmatpush1.bf16.msra.mxu0 0
    %2679 = vmatprep.subr.bf16.mxu0 0
    %2680 = vmatpush1.bf16.msra.mxu0 0
    %2681 = vmatprep.subr.bf16.mxu0 0
    %2682 = vmatpush1.bf16.msra.mxu0 0
    %2683 = vmatprep.subr.bf16.mxu0 0
    %2684 = vmatpush1.bf16.msra.mxu0 0
    %2685 = vmatprep.subr.bf16.mxu0 0
    %2686 = vmatpush1.bf16.msra.mxu0 0
    %2687 = vmatprep.mubr.bf16.mxu0 0
    %2688 = vmatmul.mubr.bf16.gmra.mrb[0].mxu0 %v2613
    %v2689 = vpop.f32.mrb[0].mxu0
    %v2690 = vadd.f32 0.0, %v2689
    %v2691 = vpop.f32.mrb[0].mxu0
    %v2692 = vpop.f32.mrb[0].mxu0
    %v2693 = vpop.f32.mrb[0].mxu0
    %2694 = vdwg.mxu0
    %v2695 = vadd.f32 %v2610, %v2649
    %v2696 = vxor.u32 %v2695, 2147483648
    %v2697 = vmul.f32 %v2696, 1.442695
    %v2698 = vpow.pop %v2697
    %v2699 = vadd.f32 %v2698, 1.0
    %v2700 = vrcp.pop %v2699
    %v2701 = vmul.f32 1.0, %v2700
    %v2702 = vadd.f32 %v2611, %v2651
    %v2703 = vxor.u32 %v2702, 2147483648
    %v2704 = vmul.f32 %v2703, 1.442695
    %v2705 = vpow.pop %v2704
    %v2706 = vadd.f32 %v2705, 1.0
    %v2707 = vrcp.pop %v2706
    %v2708 = vmul.f32 1.0, %v2707
    %v2709 = vadd.f32 %v2690, %v2172
    %v2710 = vmul.f32 %v2701, %v2709
    %v2711 = vadd.f32 %v2612, %v2710
    %v2712 = vtanh.pop %v2711
    %v2713 = vsub.f32 1.0, %v2708
    %v2714 = vmul.f32 %v2713, %v2712
    %v2715 = vmul.f32 %v2708, %v2609
    %v2716 = vadd.f32 %v2714, %v2715
    %v2717 = vld [vmem:[%s1318] sm:$0xff]
    %v2718 = vld [vmem:[%s1318 + $0x8] sm:$0xff]
    %v2719 = vld [vmem:[%s1318 + $0x10] sm:$0xff]
    %v2720 = vpack.c.bf16 %v2716, %v2716
    %2721 = vmatprep.subr.bf16.mxu0 %v2026
    %2722 = vmatpush1.bf16.msra.mxu0 %v2025
    %2723 = vmatprep.subr.bf16.mxu0 %v2029
    %2724 = vmatpush1.bf16.msra.mxu0 %v2028
    %2725 = vmatprep.subr.bf16.mxu0 %v2032
    %2726 = vmatpush1.bf16.msra.mxu0 %v2031
    %2727 = vmatprep.subr.bf16.mxu0 %v2035
    %2728 = vmatpush1.bf16.msra.mxu0 %v2034
    %2729 = vmatprep.subr.bf16.mxu0 %v2038
    %2730 = vmatpush1.bf16.msra.mxu0 %v2037
    %2731 = vmatprep.subr.bf16.mxu0 %v2041
    %2732 = vmatpush1.bf16.msra.mxu0 %v2040
    %2733 = vmatprep.subr.bf16.mxu0 %v2044
    %2734 = vmatpush1.bf16.msra.mxu0 %v2043
    %2735 = vmatprep.subr.bf16.mxu0 %v2047
    %2736 = vmatpush1.bf16.msra.mxu0 %v2046
    %2737 = vmatprep.subr.bf16.mxu0 0
    %2738 = vmatpush1.bf16.msra.mxu0 0
    %2739 = vmatprep.subr.bf16.mxu0 0
    %2740 = vmatpush1.bf16.msra.mxu0 0
    %2741 = vmatprep.subr.bf16.mxu0 0
    %2742 = vmatpush1.bf16.msra.mxu0 0
    %2743 = vmatprep.subr.bf16.mxu0 0
    %2744 = vmatpush1.bf16.msra.mxu0 0
    %2745 = vmatprep.subr.bf16.mxu0 0
    %2746 = vmatpush1.bf16.msra.mxu0 0
    %2747 = vmatprep.subr.bf16.mxu0 0
    %2748 = vmatpush1.bf16.msra.mxu0 0
    %2749 = vmatprep.subr.bf16.mxu0 0
    %2750 = vmatpush1.bf16.msra.mxu0 0
    %2751 = vmatprep.subr.bf16.mxu0 0
    %2752 = vmatpush1.bf16.msra.mxu0 0
    %2753 = vmatprep.mubr.bf16.mxu0 0
    %2754 = vmatmul.mubr.bf16.gmra.mrb[0].mxu0 %v2720
    %v2755 = vpop.f32.mrb[0].mxu0
    %v2756 = vadd.f32 0.0, %v2755
    %v2757 = vpop.f32.mrb[0].mxu0
    %v2758 = vadd.f32 0.0, %v2757
    %v2759 = vpop.f32.mrb[0].mxu0
    %v2760 = vpop.f32.mrb[0].mxu0
    %2761 = vdwg.mxu0
    %2762 = vmatprep.subr.bf16.mxu0 0
    %2763 = vmatpush1.bf16.msra.mxu0 %v2027
    %2764 = vmatprep.subr.bf16.mxu0 0
    %2765 = vmatpush1.bf16.msra.mxu0 %v2030
    %2766 = vmatprep.subr.bf16.mxu0 0
    %2767 = vmatpush1.bf16.msra.mxu0 %v2033
    %2768 = vmatprep.subr.bf16.mxu0 0
    %2769 = vmatpush1.bf16.msra.mxu0 %v2036
    %2770 = vmatprep.subr.bf16.mxu0 0
    %2771 = vmatpush1.bf16.msra.mxu0 %v2039
    %2772 = vmatprep.subr.bf16.mxu0 0
    %2773 = vmatpush1.bf16.msra.mxu0 %v2042
    %2774 = vmatprep.subr.bf16.mxu0 0
    %2775 = vmatpush1.bf16.msra.mxu0 %v2045
    %2776 = vmatprep.subr.bf16.mxu0 0
    %2777 = vmatpush1.bf16.msra.mxu0 %v2048
    %2778 = vmatprep.subr.bf16.mxu0 0
    %2779 = vmatpush1.bf16.msra.mxu0 0
    %2780 = vmatprep.subr.bf16.mxu0 0
    %2781 = vmatpush1.bf16.msra.mxu0 0
    %2782 = vmatprep.subr.bf16.mxu0 0
    %2783 = vmatpush1.bf16.msra.mxu0 0
    %2784 = vmatprep.subr.bf16.mxu0 0
    %2785 = vmatpush1.bf16.msra.mxu0 0
    %2786 = vmatprep.subr.bf16.mxu0 0
    %2787 = vmatpush1.bf16.msra.mxu0 0
    %2788 = vmatprep.subr.bf16.mxu0 0
    %2789 = vmatpush1.bf16.msra.mxu0 0
    %2790 = vmatprep.subr.bf16.mxu0 0
    %2791 = vmatpush1.bf16.msra.mxu0 0
    %2792 = vmatprep.subr.bf16.mxu0 0
    %2793 = vmatpush1.bf16.msra.mxu0 0
    %2794 = vmatprep.mubr.bf16.mxu0 0
    %2795 = vmatmul.mubr.bf16.gmra.mrb[0].mxu0 %v2720
    %v2796 = vpop.f32.mrb[0].mxu0
    %v2797 = vadd.f32 0.0, %v2796
    %v2798 = vpop.f32.mrb[0].mxu0
    %v2799 = vpop.f32.mrb[0].mxu0
    %v2800 = vpop.f32.mrb[0].mxu0
    %2801 = vdwg.mxu0
    %v2802 = vadd.f32 %v2717, %v2756
    %v2803 = vxor.u32 %v2802, 2147483648
    %v2804 = vmul.f32 %v2803, 1.442695
    %v2805 = vpow.pop %v2804
    %v2806 = vadd.f32 %v2805, 1.0
    %v2807 = vrcp.pop %v2806
    %v2808 = vmul.f32 1.0, %v2807
    %v2809 = vadd.f32 %v2718, %v2758
    %v2810 = vxor.u32 %v2809, 2147483648
    %v2811 = vmul.f32 %v2810, 1.442695
    %v2812 = vpow.pop %v2811
    %v2813 = vadd.f32 %v2812, 1.0
    %v2814 = vrcp.pop %v2813
    %v2815 = vmul.f32 1.0, %v2814
    %v2816 = vadd.f32 %v2797, %v2172
    %v2817 = vmul.f32 %v2808, %v2816
    %v2818 = vadd.f32 %v2719, %v2817
    %v2819 = vtanh.pop %v2818
    %v2820 = vsub.f32 1.0, %v2815
    %v2821 = vmul.f32 %v2820, %v2819
    %v2822 = vmul.f32 %v2815, %v2716
    %v2823 = vadd.f32 %v2821, %v2822
    %v2824 = vld [vmem:[%s1428] sm:$0xff]
    %v2825 = vld [vmem:[%s1428 + $0x8] sm:$0xff]
    %v2826 = vld [vmem:[%s1428 + $0x10] sm:$0xff]
    %v2827 = vpack.c.bf16 %v2823, %v2823
    %2828 = vmatprep.subr.bf16.mxu0 %v2026
    %2829 = vmatpush1.bf16.msra.mxu0 %v2025
    %2830 = vmatprep.subr.bf16.mxu0 %v2029
    %2831 = vmatpush1.bf16.msra.mxu0 %v2028
    %2832 = vmatprep.subr.bf16.mxu0 %v2032
    %2833 = vmatpush1.bf16.msra.mxu0 %v2031
    %2834 = vmatprep.subr.bf16.mxu0 %v2035
    %2835 = vmatpush1.bf16.msra.mxu0 %v2034
    %2836 = vmatprep.subr.bf16.mxu0 %v2038
    %2837 = vmatpush1.bf16.msra.mxu0 %v2037
    %2838 = vmatprep.subr.bf16.mxu0 %v2041
    %2839 = vmatpush1.bf16.msra.mxu0 %v2040
    %2840 = vmatprep.subr.bf16.mxu0 %v2044
    %2841 = vmatpush1.bf16.msra.mxu0 %v2043
    %2842 = vmatprep.subr.bf16.mxu0 %v2047
    %2843 = vmatpush1.bf16.msra.mxu0 %v2046
    %2844 = vmatprep.subr.bf16.mxu0 0
    %2845 = vmatpush1.bf16.msra.mxu0 0
    %2846 = vmatprep.subr.bf16.mxu0 0
    %2847 = vmatpush1.bf16.msra.mxu0 0
    %2848 = vmatprep.subr.bf16.mxu0 0
    %2849 = vmatpush1.bf16.msra.mxu0 0
    %2850 = vmatprep.subr.bf16.mxu0 0
    %2851 = vmatpush1.bf16.msra.mxu0 0
    %2852 = vmatprep.subr.bf16.mxu0 0
    %2853 = vmatpush1.bf16.msra.mxu0 0
    %2854 = vmatprep.subr.bf16.mxu0 0
    %2855 = vmatpush1.bf16.msra.mxu0 0
    %2856 = vmatprep.subr.bf16.mxu0 0
    %2857 = vmatpush1.bf16.msra.mxu0 0
    %2858 = vmatprep.subr.bf16.mxu0 0
    %2859 = vmatpush1.bf16.msra.mxu0 0
    %2860 = vmatprep.mubr.bf16.mxu0 0
    %2861 = vmatmul.mubr.bf16.gmra.mrb[0].mxu0 %v2827
    %v2862 = vpop.f32.mrb[0].mxu0
    %v2863 = vadd.f32 0.0, %v2862
    %v2864 = vpop.f32.mrb[0].mxu0
    %v2865 = vadd.f32 0.0, %v2864
    %v2866 = vpop.f32.mrb[0].mxu0
    %v2867 = vpop.f32.mrb[0].mxu0
    %2868 = vdwg.mxu0
    %2869 = vmatprep.subr.bf16.mxu0 0
    %2870 = vmatpush1.bf16.msra.mxu0 %v2027
    %2871 = vmatprep.subr.bf16.mxu0 0
    %2872 = vmatpush1.bf16.msra.mxu0 %v2030
    %2873 = vmatprep.subr.bf16.mxu0 0
    %2874 = vmatpush1.bf16.msra.mxu0 %v2033
    %2875 = vmatprep.subr.bf16.mxu0 0
    %2876 = vmatpush1.bf16.msra.mxu0 %v2036
    %2877 = vmatprep.subr.bf16.mxu0 0
    %2878 = vmatpush1.bf16.msra.mxu0 %v2039
    %2879 = vmatprep.subr.bf16.mxu0 0
    %2880 = vmatpush1.bf16.msra.mxu0 %v2042
    %2881 = vmatprep.subr.bf16.mxu0 0
    %2882 = vmatpush1.bf16.msra.mxu0 %v2045
    %2883 = vmatprep.subr.bf16.mxu0 0
    %2884 = vmatpush1.bf16.msra.mxu0 %v2048
    %2885 = vmatprep.subr.bf16.mxu0 0
    %2886 = vmatpush1.bf16.msra.mxu0 0
    %2887 = vmatprep.subr.bf16.mxu0 0
    %2888 = vmatpush1.bf16.msra.mxu0 0
    %2889 = vmatprep.subr.bf16.mxu0 0
    %2890 = vmatpush1.bf16.msra.mxu0 0
    %2891 = vmatprep.subr.bf16.mxu0 0
    %2892 = vmatpush1.bf16.msra.mxu0 0
    %2893 = vmatprep.subr.bf16.mxu0 0
    %2894 = vmatpush1.bf16.msra.mxu0 0
    %2895 = vmatprep.subr.bf16.mxu0 0
    %2896 = vmatpush1.bf16.msra.mxu0 0
    %2897 = vmatprep.subr.bf16.mxu0 0
    %2898 = vmatpush1.bf16.msra.mxu0 0
    %2899 = vmatprep.subr.bf16.mxu0 0
    %2900 = vmatpush1.bf16.msra.mxu0 0
    %2901 = vmatprep.mubr.bf16.mxu0 0
    %2902 = vmatmul.mubr.bf16.gmra.mrb[0].mxu0 %v2827
    %v2903 = vpop.f32.mrb[0].mxu0
    %v2904 = vadd.f32 0.0, %v2903
    %v2905 = vpop.f32.mrb[0].mxu0
    %v2906 = vpop.f32.mrb[0].mxu0
    %v2907 = vpop.f32.mrb[0].mxu0
    %2908 = vdwg.mxu0
    %v2909 = vadd.f32 %v2824, %v2863
    %v2910 = vxor.u32 %v2909, 2147483648
    %v2911 = vmul.f32 %v2910, 1.442695
    %v2912 = vpow.pop %v2911
    %v2913 = vadd.f32 %v2912, 1.0
    %v2914 = vrcp.pop %v2913
    %v2915 = vmul.f32 1.0, %v2914
    %v2916 = vadd.f32 %v2825, %v2865
    %v2917 = vxor.u32 %v2916, 2147483648
    %v2918 = vmul.f32 %v2917, 1.442695
    %v2919 = vpow.pop %v2918
    %v2920 = vadd.f32 %v2919, 1.0
    %v2921 = vrcp.pop %v2920
    %v2922 = vmul.f32 1.0, %v2921
    %v2923 = vadd.f32 %v2904, %v2172
    %v2924 = vmul.f32 %v2915, %v2923
    %v2925 = vadd.f32 %v2826, %v2924
    %v2926 = vtanh.pop %v2925
    %v2927 = vsub.f32 1.0, %v2922
    %v2928 = vmul.f32 %v2927, %v2926
    %v2929 = vmul.f32 %v2922, %v2823
    %v2930 = vadd.f32 %v2928, %v2929
    %v2931 = vpack.c.bf16 %v2930, %v2930
    %v2932 = vld [vmem:[%s9] sm:$0xf]
    %v2933 = vld [vmem:[%s9 + $0x4] sm:$0xf]
    %v2934 = vld [vmem:[%s9 + $0x8] sm:$0xf]
    %v2935 = vld [vmem:[%s9 + $0xc] sm:$0xf]
    %v2936 = vld [vmem:[%s9 + $0x10] sm:$0xf]
    %v2937 = vld [vmem:[%s9 + $0x14] sm:$0xf]
    %v2938 = vld [vmem:[%s9 + $0x18] sm:$0xf]
    %v2939 = vld [vmem:[%s9 + $0x1c] sm:$0xf]
    %v2940 = vld [vmem:[%s9 + $0x20] sm:$0xf]
    %v2941 = vld [vmem:[%s9 + $0x24] sm:$0xf]
    %v2942 = vld [vmem:[%s9 + $0x28] sm:$0xf]
    %v2943 = vld [vmem:[%s9 + $0x2c] sm:$0xf]
    %v2944 = vld [vmem:[%s9 + $0x30] sm:$0xf]
    %v2945 = vld [vmem:[%s9 + $0x34] sm:$0xf]
    %v2946 = vld [vmem:[%s9 + $0x38] sm:$0xf]
    %v2947 = vld [vmem:[%s9 + $0x3c] sm:$0xf]
    %v2948 = vld [vmem:[%s10] sm:$0x1]
    %v2950 = vlaneseq
    %v2951 = vshrl.u32 %v2950, 7
    %v2952 = vsub.s32 0, %v2951
    %v2953 = vrot.slane %v2948, %v2952
    %v2971 = vunpack.c.l.b16 %v2932
    %v2972 = vunpack.c.l.b16 %v2933
    %v2973 = vunpack.c.l.b16 %v2934
    %v2974 = vunpack.c.l.b16 %v2935
    %v2975 = vunpack.c.l.b16 %v2936
    %v2976 = vunpack.c.l.b16 %v2937
    %v2977 = vunpack.c.l.b16 %v2938
    %v2978 = vunpack.c.l.b16 %v2939
    %v2979 = vunpack.c.l.b16 %v2940
    %v2980 = vunpack.c.l.b16 %v2941
    %v2981 = vunpack.c.l.b16 %v2942
    %v2982 = vunpack.c.l.b16 %v2943
    %v2983 = vunpack.c.l.b16 %v2944
    %v2984 = vunpack.c.l.b16 %v2945
    %v2985 = vunpack.c.l.b16 %v2946
    %v2986 = vunpack.c.l.b16 %v2947
    %v2987 = vpack.c.b16 %v2972, %v2971
    %v2988 = vpack.c.b16 %v2974, %v2973
    %v2989 = vpack.c.b16 %v2976, %v2975
    %v2990 = vpack.c.b16 %v2978, %v2977
    %v2991 = vpack.c.b16 %v2980, %v2979
    %v2992 = vpack.c.b16 %v2982, %v2981
    %v2993 = vpack.c.b16 %v2984, %v2983
    %v2994 = vpack.c.b16 %v2986, %v2985
    %3003 = vmatprep.subr.bf16.mxu0 0
    %3004 = vmatpush1.bf16.msra.mxu0 %v2987
    %3005 = vmatprep.subr.bf16.mxu0 0
    %3006 = vmatpush1.bf16.msra.mxu0 %v2988
    %3007 = vmatprep.subr.bf16.mxu0 0
    %3008 = vmatpush1.bf16.msra.mxu0 %v2989
    %3009 = vmatprep.subr.bf16.mxu0 0
    %3010 = vmatpush1.bf16.msra.mxu0 %v2990
    %3011 = vmatprep.subr.bf16.mxu0 0
    %3012 = vmatpush1.bf16.msra.mxu0 %v2991
    %3013 = vmatprep.subr.bf16.mxu0 0
    %3014 = vmatpush1.bf16.msra.mxu0 %v2992
    %3015 = vmatprep.subr.bf16.mxu0 0
    %3016 = vmatpush1.bf16.msra.mxu0 %v2993
    %3017 = vmatprep.subr.bf16.mxu0 0
    %3018 = vmatpush1.bf16.msra.mxu0 %v2994
    %3019 = vmatprep.subr.bf16.mxu0 0
    %3020 = vmatpush1.bf16.msra.mxu0 0
    %3021 = vmatprep.subr.bf16.mxu0 0
    %3022 = vmatpush1.bf16.msra.mxu0 0
    %3023 = vmatprep.subr.bf16.mxu0 0
    %3024 = vmatpush1.bf16.msra.mxu0 0
    %3025 = vmatprep.subr.bf16.mxu0 0
    %3026 = vmatpush1.bf16.msra.mxu0 0
    %3027 = vmatprep.subr.bf16.mxu0 0
    %3028 = vmatpush1.bf16.msra.mxu0 0
    %3029 = vmatprep.subr.bf16.mxu0 0
    %3030 = vmatpush1.bf16.msra.mxu0 0
    %3031 = vmatprep.subr.bf16.mxu0 0
    %3032 = vmatpush1.bf16.msra.mxu0 0
    %3033 = vmatprep.subr.bf16.mxu0 0
    %3034 = vmatpush1.bf16.msra.mxu0 0
    %3035 = vmatprep.mubr.bf16.mxu0 0
    %3036 = vmatmul.mubr.bf16.gmra.mrb[0].mxu0 %v2931
    %v3037 = vpop.f32.mrb[0].mxu0
    %v3038 = vadd.f32 %v2953, %v3037
    %v3039 = vpop.f32.mrb[0].mxu0
    %v3040 = vpop.f32.mrb[0].mxu0
    %v3041 = vpop.f32.mrb[0].mxu0
    %3042 = vdwg.mxu0
    %v3043 = vmax.f32 %v3038, 0.0
    %v3044 = vpack.c.bf16 %v3043, %v3043
    %v3045 = vld [vmem:[#allocation12] sm:$0xf]
    %v3046 = vld [vmem:[#allocation12 + $0x4] sm:$0xf]
    %v3047 = vld [vmem:[#allocation12 + $0x8] sm:$0xf]
    %v3048 = vld [vmem:[#allocation12 + $0xc] sm:$0xf]
    %v3049 = vld [vmem:[#allocation12 + $0x10] sm:$0xf]
    %v3050 = vld [vmem:[#allocation12 + $0x14] sm:$0xf]
    %v3051 = vld [vmem:[#allocation12 + $0x18] sm:$0xf]
    %v3052 = vld [vmem:[#allocation12 + $0x1c] sm:$0xf]
    %v3053 = vld [vmem:[#allocation12 + $0x20] sm:$0xf]
    %v3054 = vld [vmem:[#allocation12 + $0x24] sm:$0xf]
    %v3055 = vld [vmem:[#allocation12 + $0x28] sm:$0xf]
    %v3056 = vld [vmem:[#allocation12 + $0x2c] sm:$0xf]
    %v3057 = vld [vmem:[#allocation12 + $0x30] sm:$0xf]
    %v3058 = vld [vmem:[#allocation12 + $0x34] sm:$0xf]
    %v3059 = vld [vmem:[#allocation12 + $0x38] sm:$0xf]
    %v3060 = vld [vmem:[#allocation12 + $0x3c] sm:$0xf]
    %v3061 = vld [vmem:[%s12] sm:$0x1]
    %v3063 = vlaneseq
    %v3064 = vshrl.u32 %v3063, 7
    %v3065 = vsub.s32 0, %v3064
    %v3066 = vrot.slane %v3061, %v3065
    %v3084 = vunpack.c.l.b16 %v3045
    %v3085 = vunpack.c.l.b16 %v3046
    %v3086 = vunpack.c.l.b16 %v3047
    %v3087 = vunpack.c.l.b16 %v3048
    %v3088 = vunpack.c.l.b16 %v3049
    %v3089 = vunpack.c.l.b16 %v3050
    %v3090 = vunpack.c.l.b16 %v3051
    %v3091 = vunpack.c.l.b16 %v3052
    %v3092 = vunpack.c.l.b16 %v3053
    %v3093 = vunpack.c.l.b16 %v3054
    %v3094 = vunpack.c.l.b16 %v3055
    %v3095 = vunpack.c.l.b16 %v3056
    %v3096 = vunpack.c.l.b16 %v3057
    %v3097 = vunpack.c.l.b16 %v3058
    %v3098 = vunpack.c.l.b16 %v3059
    %v3099 = vunpack.c.l.b16 %v3060
    %v3100 = vpack.c.b16 %v3085, %v3084
    %v3101 = vpack.c.b16 %v3087, %v3086
    %v3102 = vpack.c.b16 %v3089, %v3088
    %v3103 = vpack.c.b16 %v3091, %v3090
    %v3104 = vpack.c.b16 %v3093, %v3092
    %v3105 = vpack.c.b16 %v3095, %v3094
    %v3106 = vpack.c.b16 %v3097, %v3096
    %v3107 = vpack.c.b16 %v3099, %v3098
    %3116 = vmatprep.subr.bf16.mxu0 0
    %3117 = vmatpush1.bf16.msra.mxu0 %v3100
    %3118 = vmatprep.subr.bf16.mxu0 0
    %3119 = vmatpush1.bf16.msra.mxu0 %v3101
    %3120 = vmatprep.subr.bf16.mxu0 0
    %3121 = vmatpush1.bf16.msra.mxu0 %v3102
    %3122 = vmatprep.subr.bf16.mxu0 0
    %3123 = vmatpush1.bf16.msra.mxu0 %v3103
    %3124 = vmatprep.subr.bf16.mxu0 0
    %3125 = vmatpush1.bf16.msra.mxu0 %v3104
    %3126 = vmatprep.subr.bf16.mxu0 0
    %3127 = vmatpush1.bf16.msra.mxu0 %v3105
    %3128 = vmatprep.subr.bf16.mxu0 0
    %3129 = vmatpush1.bf16.msra.mxu0 %v3106
    %3130 = vmatprep.subr.bf16.mxu0 0
    %3131 = vmatpush1.bf16.msra.mxu0 %v3107
    %3132 = vmatprep.subr.bf16.mxu0 0
    %3133 = vmatpush1.bf16.msra.mxu0 0
    %3134 = vmatprep.subr.bf16.mxu0 0
    %3135 = vmatpush1.bf16.msra.mxu0 0
    %3136 = vmatprep.subr.bf16.mxu0 0
    %3137 = vmatpush1.bf16.msra.mxu0 0
    %3138 = vmatprep.subr.bf16.mxu0 0
    %3139 = vmatpush1.bf16.msra.mxu0 0
    %3140 = vmatprep.subr.bf16.mxu0 0
    %3141 = vmatpush1.bf16.msra.mxu0 0
    %3142 = vmatprep.subr.bf16.mxu0 0
    %3143 = vmatpush1.bf16.msra.mxu0 0
    %3144 = vmatprep.subr.bf16.mxu0 0
    %3145 = vmatpush1.bf16.msra.mxu0 0
    %3146 = vmatprep.subr.bf16.mxu0 0
    %3147 = vmatpush1.bf16.msra.mxu0 0
    %3148 = vmatprep.mubr.bf16.mxu0 0
    %3149 = vmatmul.mubr.bf16.gmra.mrb[0].mxu0 %v3044
    %v3150 = vpop.f32.mrb[0].mxu0
    %v3151 = vadd.f32 %v3066, %v3150
    %v3152 = vpop.f32.mrb[0].mxu0
    %v3153 = vpop.f32.mrb[0].mxu0
    %v3154 = vpop.f32.mrb[0].mxu0
    %3155 = vdwg.mxu0
    %3156 = vst [vmem:[#allocation13] sm:$0xff] %v3151
    // Predicated region
    $region74: #{_gru_model_forward_padded.1} parent=1 // pred_check
      _
    $region75: #{_gru_model_forward_padded.1} parent=1 // pred_check_branch
      %3158 = sbr.rel (0) target = $region77
    $region76: #{_gru_model_forward_padded.1} parent=1 // pred_region
      %s3160 = ssub.s32 128, 128
      %3161 = vsyncadd [#allocation6], %s3160
      %s3163 = sshll.u32 [#allocation13], 4
      %s3164 = int_to_ptr.vmem [resolvable:$true] %s3163
      %3166 = dma.vmem_to_hbm [thread:$0]  %s3164, 128, %s13, [#allocation6]
    $region77: #{_gru_model_forward_padded.1} parent=1 // pred_fallthru
      _
    // Predicated region
    $region78: #{_gru_model_forward_padded.1} parent=1 // pred_check
      _
    $region79: #{_gru_model_forward_padded.1} parent=1 // pred_check_branch
      %3168 = sbr.rel (0) target = $region81
    $region80: #{_gru_model_forward_padded.1} parent=1 // pred_region
      %3169 = dma.done [#allocation6], 128
    $region81: #{_gru_model_forward_padded.1} parent=1 // pred_fallthru
      _
    %3170 = vsyncpa [#allocation5], 1
    %3171 = vsyncpa [#allocation8], 1
    %3172 = vsyncpa [#allocation11], 1
    %3173 = vsyncpa [#allocation6], 1

</llo_original>
